<compile_context>
chip_gen: v7x
topology: tpu7x:2x2x1
jax: 0.10.0
libtpu: 0.0.40
codegen_flags: <defaults>
</compile_context>

<pallas_src>
import functools

import jax
import jax.numpy as jnp
from jax.experimental import pallas as pl
from jax.experimental.pallas import tpu as pltpu

LANE = 128  # lane width; hidden/class dims are padded to multiples of this


def _round_up(n, m):
    return ((n + m - 1) // m) * m


def _mlp_kernel(*refs, num_layers):
    """Fused MLP on one batch tile: dot->bias->ReLU ... dot->bias->softmax."""
    x_ref = refs[0]
    o_ref = refs[-1]
    params = refs[1:-1]  # (w0, b0, w1, b1, ...)

    s = x_ref[...]                       # (tm, D), f32 or bf16
    for layer in range(num_layers):
        w = params[2 * layer][...]       # (K_pad, M_pad), f32 or bf16
        b = params[2 * layer + 1][...]   # (1, M_pad), always f32
        if s.dtype != w.dtype:
            # bf16 MXU-operand path: only in-kernel activations need a cast;
            # X and the weights already arrive as bf16 from HBM.
            s = s.astype(w.dtype)
        z = jnp.dot(s, w, preferred_element_type=jnp.float32)
        z = z + b                        # f32 epilogue on all generations

        if layer < num_layers - 1:
            # Hidden layer: ReLU.  Padded hidden columns stay exactly 0
            # (zero weights + zero bias), so padding never leaks downstream.
            s = jnp.maximum(z, 0.0)
        else:
            # Final layer: padded class columns already carry a -1e30 bias
            # (mask folded into the bias), so a plain stable softmax suffices.
            z = z - jnp.max(z, axis=-1, keepdims=True)
            e = jnp.exp(z)
            s = e / jnp.sum(e, axis=-1, keepdims=True)   # exact divide

    o_ref[...] = s.astype(o_ref.dtype)


def pt_deep_forward(x, weights, biases, *, tm_max=512, use_bf16=False,
                    out_dtype=None, vmem_limit_bytes=None):
    """PTDeep.forward: hidden layers with ReLU, final layer softmax(dim=1).

    One fused pallas_call; grid only over batch tiles.  Hidden/class dims are
    padded to lane-dense multiples of 128 (sliced off before returning); X's
    feature dim and the batch are left unpadded whenever possible.
    """
    N, D = x.shape
    num_layers = len(weights)
    dims = [D] + [int(w.shape[1]) for w in weights]
    C = dims[-1]
    out_dtype = jnp.float32 if out_dtype is None else out_dtype
    in_dtype = jnp.bfloat16 if use_bf16 else jnp.float32

    # Lane-dense padded sizes for hidden/class dims only.
    pdims = [D] + [_round_up(d, LANE) for d in dims[1:]]

    # Batch tile: big tiles amortize the ~0.35us/step pipeline overhead, but
    # never exceed the 8-aligned batch so tiny batches are not padded.  On
    # v7x pick tm_max so n_pad // tm >= 2 and both TensorCores get work.
    tm = min(tm_max, _round_up(max(N, 1), 8))
    n_pad = _round_up(N, tm)

    # HBM-side dtype cast; only pad the batch when strictly needed.
    x_p = x.astype(in_dtype)
    if n_pad != N:
        x_p = jnp.pad(x_p, ((0, n_pad - N), (0, 0)))

    flat_params = []
    for l, (w, b) in enumerate(zip(weights, biases)):
        w_p = jnp.pad(w.astype(in_dtype),
                      ((0, pdims[l] - dims[l]), (0, pdims[l + 1] - dims[l + 1])))
        # Biases stay f32 (negligible bytes; keeps the epilogue f32 on v5e).
        # Padded class columns of the LAST bias get a large negative so the
        # softmax mask costs nothing inside the kernel.
        pad_val = -1e30 if l == num_layers - 1 else 0.0
        b_p = jnp.pad(b.astype(jnp.float32),
                      ((0, 0), (0, pdims[l + 1] - dims[l + 1])),
                      constant_values=pad_val)
        flat_params += [w_p, b_p]

    kernel = functools.partial(_mlp_kernel, num_layers=num_layers)

    flops = sum(2 * n_pad * pdims[l] * pdims[l + 1] for l in range(num_layers))
    bytes_accessed = (int(x_p.size) * x_p.dtype.itemsize
                      + sum(int(p.size) * p.dtype.itemsize for p in flat_params)
                      + n_pad * pdims[-1] * jnp.dtype(out_dtype).itemsize)
    cost = pl.CostEstimate(flops=flops,
                           transcendentals=n_pad * pdims[-1],
                           bytes_accessed=int(bytes_accessed))

    def call(single_buffer_params):
        in_specs = [pl.BlockSpec((tm, D), lambda i: (i, 0))]   # batch tile of X
        for l in range(num_layers):
            kw = {}
            if single_buffer_params:
                # Constant index_map => block is resident across the whole
                # grid; double-buffering it only doubles its VMEM footprint.
                kw = dict(pipeline_mode=pl.Buffered(1))
            in_specs.append(
                pl.BlockSpec((pdims[l], pdims[l + 1]), lambda i: (0, 0), **kw))
            in_specs.append(
                pl.BlockSpec((1, pdims[l + 1]), lambda i: (0, 0), **kw))

        return pl.pallas_call(
            kernel,
            out_shape=jax.ShapeDtypeStruct((n_pad, pdims[-1]), out_dtype),
            grid_spec=pltpu.PrefetchScalarGridSpec(
                num_scalar_prefetch=0,
                grid=(n_pad // tm,),
                in_specs=in_specs,
                out_specs=pl.BlockSpec((tm, pdims[-1]), lambda i: (i, 0)),
            ),
            compiler_params=pltpu.CompilerParams(
                dimension_semantics=("parallel",),
                vmem_limit_bytes=vmem_limit_bytes,
            ),
            cost_estimate=cost,
        )(x_p, *flat_params)

    try:
        out_p = call(single_buffer_params=True)
    except Exception:
        # pipeline_mode=pl.Buffered(1) unsupported here -> default buffering.
        out_p = call(single_buffer_params=False)

    return out_p[:N, :C]


def init_params(neurons, key):
    """Deterministic xavier_normal_ weights and zero biases (as in __init__)."""
    weights, biases = [], []
    for idx in range(len(neurons) - 1):
        fan_in, fan_out = neurons[idx], neurons[idx + 1]
        key, sub = jax.random.split(key)
        std = jnp.sqrt(2.0 / (fan_in + fan_out))  # xavier normal, gain=1
        weights.append(std * jax.random.normal(sub, (fan_in, fan_out), jnp.float32))
        biases.append(jnp.zeros((1, fan_out), jnp.float32))
    return weights, biases


def _reference_forward(x, weights, biases):
    """Pure-JAX reference (activation = ReLU, final softmax along dim 1)."""
    s = x
    for w, b in zip(weights[:-1], biases[:-1]):
        s = jnp.maximum(s @ w + b, 0.0)
    logits = s @ weights[-1] + biases[-1]
    return jax.nn.softmax(logits, axis=1)


if __name__ == "__main__":
    # Pin matmuls to exact f32 everywhere (kernel trace + reference) so the
    # correctness check is not polluted by TPU default bf16 matmul precision.
    jax.config.update("jax_default_matmul_precision", "highest")

    key = jax.random.PRNGKey(0)
    neurons = [16, 32, 32, 10]   # D -> H1 -> H2 -> C
    batch = 32

    key, kx = jax.random.split(key)
    x = jax.random.normal(kx, (batch, neurons[0]), jnp.float32)
    weights, biases = init_params(neurons, key)

    ref = _reference_forward(x, weights, biases)

    # Default f32 path.
    out = pt_deep_forward(x, weights, biases)
    out = jax.block_until_ready(out)
    assert out.shape == (batch, neurons[-1])
    assert jnp.allclose(out, ref, atol=2e-3, rtol=2e-3), "f32 mismatch vs reference"
    assert jnp.allclose(jnp.sum(out, axis=1), jnp.ones((batch,)), atol=1e-3)

    # bf16 MXU-operand path (v6e/v7x knob) with bf16 output; loose tolerance.
    out_bf16 = pt_deep_forward(x, weights, biases, use_bf16=True,
                               out_dtype=jnp.bfloat16)
    out_bf16 = jax.block_until_ready(out_bf16)
    assert out_bf16.shape == (batch, neurons[-1])
    assert jnp.allclose(out_bf16.astype(jnp.float32), ref,
                        atol=5e-2, rtol=5e-2), "bf16 mismatch vs reference"

    print("KERNEL_OK")
</pallas_src>

<mosaic_0001>
module attributes {stable_mosaic.version = 11 : i64} {
  func.func @_mlp_kernel(%arg0: i32, %arg1: memref<32x16xf32, #tpu.memory_space<vmem>>, %arg2: memref<16x128xf32, #tpu.memory_space<vmem>>, %arg3: memref<1x128xf32, #tpu.memory_space<vmem>>, %arg4: memref<128x128xf32, #tpu.memory_space<vmem>>, %arg5: memref<1x128xf32, #tpu.memory_space<vmem>>, %arg6: memref<128x128xf32, #tpu.memory_space<vmem>>, %arg7: memref<1x128xf32, #tpu.memory_space<vmem>>, %arg8: memref<32x128xf32, #tpu.memory_space<vmem>>) attributes {dimension_semantics = [#tpu.dimension_semantics<parallel>], iteration_bounds = array<i64: 1>, scalar_prefetch = 0 : i64, scratch_operands = 0 : i64, tpu.core_type = #tpu.core_type<tc>, window_params = [{transform_indices = @transform_0, window_bounds = array<i64: 32, 16>}, {pipeline_mode = #tpu.pipeline_mode<synchronous>, transform_indices = @transform_1, window_bounds = array<i64: 16, 128>}, {pipeline_mode = #tpu.pipeline_mode<synchronous>, transform_indices = @transform_2, window_bounds = array<i64: 1, 128>}, {pipeline_mode = #tpu.pipeline_mode<synchronous>, transform_indices = @transform_3, window_bounds = array<i64: 128, 128>}, {pipeline_mode = #tpu.pipeline_mode<synchronous>, transform_indices = @transform_4, window_bounds = array<i64: 1, 128>}, {pipeline_mode = #tpu.pipeline_mode<synchronous>, transform_indices = @transform_5, window_bounds = array<i64: 128, 128>}, {pipeline_mode = #tpu.pipeline_mode<synchronous>, transform_indices = @transform_6, window_bounds = array<i64: 1, 128>}, {transform_indices = @transform_7, window_bounds = array<i64: 32, 128>}]} {
    %c0 = arith.constant 0 : index
    %c0_0 = arith.constant 0 : index
    %0 = vector.load %arg1[%c0, %c0_0] : memref<32x16xf32, #tpu.memory_space<vmem>>, vector<32x16xf32>
    %c0_1 = arith.constant 0 : index
    %c0_2 = arith.constant 0 : index
    %1 = vector.load %arg2[%c0_1, %c0_2] : memref<16x128xf32, #tpu.memory_space<vmem>>, vector<16x128xf32>
    %c0_3 = arith.constant 0 : index
    %c0_4 = arith.constant 0 : index
    %2 = vector.load %arg3[%c0_3, %c0_4] : memref<1x128xf32, #tpu.memory_space<vmem>>, vector<1x128xf32>
    %cst = arith.constant dense<0.000000e+00> : vector<32x128xf32>
    %3 = tpu.matmul %0, %1, %cst {dimension_numbers = #tpu.dot_dimension_numbers<[1], [0], [0], [1], [0, 0, 1, 1], [], []>, precision = #tpu.contract_precision<fp32>} : vector<32x16xf32>, vector<16x128xf32>, vector<32x128xf32> -> vector<32x128xf32>
    %4 = vector.broadcast %2 : vector<1x128xf32> to vector<32x128xf32>
    %5 = arith.addf %3, %4 : vector<32x128xf32>
    %cst_5 = arith.constant 0.000000e+00 : f32
    %6 = vector.broadcast %cst_5 : f32 to vector<32x128xf32>
    %7 = arith.maximumf %5, %6 : vector<32x128xf32>
    %c0_6 = arith.constant 0 : index
    %c0_7 = arith.constant 0 : index
    %8 = vector.load %arg4[%c0_6, %c0_7] : memref<128x128xf32, #tpu.memory_space<vmem>>, vector<128x128xf32>
    %c0_8 = arith.constant 0 : index
    %c0_9 = arith.constant 0 : index
    %9 = vector.load %arg5[%c0_8, %c0_9] : memref<1x128xf32, #tpu.memory_space<vmem>>, vector<1x128xf32>
    %cst_10 = arith.constant dense<0.000000e+00> : vector<32x128xf32>
    %10 = tpu.matmul %7, %8, %cst_10 {dimension_numbers = #tpu.dot_dimension_numbers<[1], [0], [0], [1], [0, 0, 1, 1], [], []>, precision = #tpu.contract_precision<fp32>} : vector<32x128xf32>, vector<128x128xf32>, vector<32x128xf32> -> vector<32x128xf32>
    %11 = vector.broadcast %9 : vector<1x128xf32> to vector<32x128xf32>
    %12 = arith.addf %10, %11 : vector<32x128xf32>
    %cst_11 = arith.constant 0.000000e+00 : f32
    %13 = vector.broadcast %cst_11 : f32 to vector<32x128xf32>
    %14 = arith.maximumf %12, %13 : vector<32x128xf32>
    %c0_12 = arith.constant 0 : index
    %c0_13 = arith.constant 0 : index
    %15 = vector.load %arg6[%c0_12, %c0_13] : memref<128x128xf32, #tpu.memory_space<vmem>>, vector<128x128xf32>
    %c0_14 = arith.constant 0 : index
    %c0_15 = arith.constant 0 : index
    %16 = vector.load %arg7[%c0_14, %c0_15] : memref<1x128xf32, #tpu.memory_space<vmem>>, vector<1x128xf32>
    %cst_16 = arith.constant dense<0.000000e+00> : vector<32x128xf32>
    %17 = tpu.matmul %14, %15, %cst_16 {dimension_numbers = #tpu.dot_dimension_numbers<[1], [0], [0], [1], [0, 0, 1, 1], [], []>, precision = #tpu.contract_precision<fp32>} : vector<32x128xf32>, vector<128x128xf32>, vector<32x128xf32> -> vector<32x128xf32>
    %18 = vector.broadcast %16 : vector<1x128xf32> to vector<32x128xf32>
    %19 = arith.addf %17, %18 : vector<32x128xf32>
    %cst_17 = arith.constant dense<0xFF800000> : vector<32xf32>
    %20 = vector.multi_reduction <maximumf>, %19, %cst_17 [1] : vector<32x128xf32> to vector<32xf32>
    %21 = vector.shape_cast %20 : vector<32xf32> to vector<32x1xf32>
    %22 = vector.broadcast %21 : vector<32x1xf32> to vector<32x128xf32>
    %23 = arith.subf %19, %22 : vector<32x128xf32>
    %24 = math.exp %23 : vector<32x128xf32>
    %cst_18 = arith.constant dense<0.000000e+00> : vector<32xf32>
    %25 = vector.multi_reduction <add>, %24, %cst_18 [1] : vector<32x128xf32> to vector<32xf32>
    %26 = vector.shape_cast %25 : vector<32xf32> to vector<32x1xf32>
    %27 = vector.broadcast %26 : vector<32x1xf32> to vector<32x128xf32>
    %28 = arith.divf %24, %27 : vector<32x128xf32>
    %c0_19 = arith.constant 0 : index
    %c0_20 = arith.constant 0 : index
    %29 = vector.load %arg8[%c0_19, %c0_20] : memref<32x128xf32, #tpu.memory_space<vmem>>, vector<32x128xf32>
    tpu.vector_store %arg8[%c0_19, %c0_20], %28 {strides = array<i32>} : memref<32x128xf32, #tpu.memory_space<vmem>>, vector<32x128xf32>,
    return
  }
  func.func @transform_0(%arg0: i32) -> (i32, i32) {
    %c0_i32 = arith.constant 0 : i32
    %c0_i32_0 = arith.constant 0 : i32
    return %arg0, %c0_i32 : i32, i32
  }
  func.func @transform_1(%arg0: i32) -> (i32, i32) {
    %c0_i32 = arith.constant 0 : i32
    %c0_i32_0 = arith.constant 0 : i32
    %c0_i32_1 = arith.constant 0 : i32
    return %c0_i32, %c0_i32_0 : i32, i32
  }
  func.func @transform_2(%arg0: i32) -> (i32, i32) {
    %c0_i32 = arith.constant 0 : i32
    %c0_i32_0 = arith.constant 0 : i32
    %c0_i32_1 = arith.constant 0 : i32
    return %c0_i32, %c0_i32_0 : i32, i32
  }
  func.func @transform_3(%arg0: i32) -> (i32, i32) {
    %c0_i32 = arith.constant 0 : i32
    %c0_i32_0 = arith.constant 0 : i32
    %c0_i32_1 = arith.constant 0 : i32
    return %c0_i32, %c0_i32_0 : i32, i32
  }
  func.func @transform_4(%arg0: i32) -> (i32, i32) {
    %c0_i32 = arith.constant 0 : i32
    %c0_i32_0 = arith.constant 0 : i32
    %c0_i32_1 = arith.constant 0 : i32
    return %c0_i32, %c0_i32_0 : i32, i32
  }
  func.func @transform_5(%arg0: i32) -> (i32, i32) {
    %c0_i32 = arith.constant 0 : i32
    %c0_i32_0 = arith.constant 0 : i32
    %c0_i32_1 = arith.constant 0 : i32
    return %c0_i32, %c0_i32_0 : i32, i32
  }
  func.func @transform_6(%arg0: i32) -> (i32, i32) {
    %c0_i32 = arith.constant 0 : i32
    %c0_i32_0 = arith.constant 0 : i32
    %c0_i32_1 = arith.constant 0 : i32
    return %c0_i32, %c0_i32_0 : i32, i32
  }
  func.func @transform_7(%arg0: i32) -> (i32, i32) {
    %c0_i32 = arith.constant 0 : i32
    %c0_i32_0 = arith.constant 0 : i32
    return %arg0, %c0_i32 : i32, i32
  }
}

module attributes {stable_mosaic.version = 11 : i64} {
  func.func @_mlp_kernel(%arg0: i32, %arg1: memref<32x16xf32, #tpu.memory_space<vmem>>, %arg2: memref<16x128xf32, #tpu.memory_space<vmem>>, %arg3: memref<1x128xf32, #tpu.memory_space<vmem>>, %arg4: memref<128x128xf32, #tpu.memory_space<vmem>>, %arg5: memref<1x128xf32, #tpu.memory_space<vmem>>, %arg6: memref<128x128xf32, #tpu.memory_space<vmem>>, %arg7: memref<1x128xf32, #tpu.memory_space<vmem>>, %arg8: memref<32x128xf32, #tpu.memory_space<vmem>>) attributes {dimension_semantics = [#tpu.dimension_semantics<parallel>], iteration_bounds = array<i64: 1>, scalar_prefetch = 0 : i64, scratch_operands = 0 : i64, tpu.core_type = #tpu.core_type<tc>, window_params = [{transform_indices = @transform_0, window_bounds = array<i64: 32, 16>}, {pipeline_mode = #tpu.pipeline_mode<synchronous>, transform_indices = @transform_1, window_bounds = array<i64: 16, 128>}, {pipeline_mode = #tpu.pipeline_mode<synchronous>, transform_indices = @transform_2, window_bounds = array<i64: 1, 128>}, {pipeline_mode = #tpu.pipeline_mode<synchronous>, transform_indices = @transform_3, window_bounds = array<i64: 128, 128>}, {pipeline_mode = #tpu.pipeline_mode<synchronous>, transform_indices = @transform_4, window_bounds = array<i64: 1, 128>}, {pipeline_mode = #tpu.pipeline_mode<synchronous>, transform_indices = @transform_5, window_bounds = array<i64: 128, 128>}, {pipeline_mode = #tpu.pipeline_mode<synchronous>, transform_indices = @transform_6, window_bounds = array<i64: 1, 128>}, {transform_indices = @transform_7, window_bounds = array<i64: 32, 128>}]} {
    %c0 = arith.constant 0 : index
    %c0_0 = arith.constant 0 : index
    %0 = vector.load %arg1[%c0, %c0_0] : memref<32x16xf32, #tpu.memory_space<vmem>>, vector<32x16xf32>
    %c0_1 = arith.constant 0 : index
    %c0_2 = arith.constant 0 : index
    %1 = vector.load %arg2[%c0_1, %c0_2] : memref<16x128xf32, #tpu.memory_space<vmem>>, vector<16x128xf32>
    %c0_3 = arith.constant 0 : index
    %c0_4 = arith.constant 0 : index
    %2 = vector.load %arg3[%c0_3, %c0_4] : memref<1x128xf32, #tpu.memory_space<vmem>>, vector<1x128xf32>
    %cst = arith.constant dense<0.000000e+00> : vector<32x128xf32>
    %3 = tpu.matmul %0, %1, %cst {dimension_numbers = #tpu.dot_dimension_numbers<[1], [0], [0], [1], [0, 0, 1, 1], [], []>, precision = #tpu.contract_precision<fp32>} : vector<32x16xf32>, vector<16x128xf32>, vector<32x128xf32> -> vector<32x128xf32>
    %4 = vector.broadcast %2 : vector<1x128xf32> to vector<32x128xf32>
    %5 = arith.addf %3, %4 : vector<32x128xf32>
    %cst_5 = arith.constant 0.000000e+00 : f32
    %6 = vector.broadcast %cst_5 : f32 to vector<32x128xf32>
    %7 = arith.maximumf %5, %6 : vector<32x128xf32>
    %c0_6 = arith.constant 0 : index
    %c0_7 = arith.constant 0 : index
    %8 = vector.load %arg4[%c0_6, %c0_7] : memref<128x128xf32, #tpu.memory_space<vmem>>, vector<128x128xf32>
    %c0_8 = arith.constant 0 : index
    %c0_9 = arith.constant 0 : index
    %9 = vector.load %arg5[%c0_8, %c0_9] : memref<1x128xf32, #tpu.memory_space<vmem>>, vector<1x128xf32>
    %cst_10 = arith.constant dense<0.000000e+00> : vector<32x128xf32>
    %10 = tpu.matmul %7, %8, %cst_10 {dimension_numbers = #tpu.dot_dimension_numbers<[1], [0], [0], [1], [0, 0, 1, 1], [], []>, precision = #tpu.contract_precision<fp32>} : vector<32x128xf32>, vector<128x128xf32>, vector<32x128xf32> -> vector<32x128xf32>
    %11 = vector.broadcast %9 : vector<1x128xf32> to vector<32x128xf32>
    %12 = arith.addf %10, %11 : vector<32x128xf32>
    %cst_11 = arith.constant 0.000000e+00 : f32
    %13 = vector.broadcast %cst_11 : f32 to vector<32x128xf32>
    %14 = arith.maximumf %12, %13 : vector<32x128xf32>
    %c0_12 = arith.constant 0 : index
    %c0_13 = arith.constant 0 : index
    %15 = vector.load %arg6[%c0_12, %c0_13] : memref<128x128xf32, #tpu.memory_space<vmem>>, vector<128x128xf32>
    %c0_14 = arith.constant 0 : index
    %c0_15 = arith.constant 0 : index
    %16 = vector.load %arg7[%c0_14, %c0_15] : memref<1x128xf32, #tpu.memory_space<vmem>>, vector<1x128xf32>
    %cst_16 = arith.constant dense<0.000000e+00> : vector<32x128xf32>
    %17 = tpu.matmul %14, %15, %cst_16 {dimension_numbers = #tpu.dot_dimension_numbers<[1], [0], [0], [1], [0, 0, 1, 1], [], []>, precision = #tpu.contract_precision<fp32>} : vector<32x128xf32>, vector<128x128xf32>, vector<32x128xf32> -> vector<32x128xf32>
    %18 = vector.broadcast %16 : vector<1x128xf32> to vector<32x128xf32>
    %19 = arith.addf %17, %18 : vector<32x128xf32>
    %cst_17 = arith.constant dense<0xFF800000> : vector<32xf32>
    %20 = vector.multi_reduction <maximumf>, %19, %cst_17 [1] : vector<32x128xf32> to vector<32xf32>
    %21 = vector.shape_cast %20 : vector<32xf32> to vector<32x1xf32>
    %22 = vector.broadcast %21 : vector<32x1xf32> to vector<32x128xf32>
    %23 = arith.subf %19, %22 : vector<32x128xf32>
    %24 = math.exp %23 : vector<32x128xf32>
    %cst_18 = arith.constant dense<0.000000e+00> : vector<32xf32>
    %25 = vector.multi_reduction <add>, %24, %cst_18 [1] : vector<32x128xf32> to vector<32xf32>
    %26 = vector.shape_cast %25 : vector<32xf32> to vector<32x1xf32>
    %27 = vector.broadcast %26 : vector<32x1xf32> to vector<32x128xf32>
    %28 = arith.divf %24, %27 : vector<32x128xf32>
    %c0_19 = arith.constant 0 : index
    %c0_20 = arith.constant 0 : index
    %29 = vector.load %arg8[%c0_19, %c0_20] : memref<32x128xf32, #tpu.memory_space<vmem>>, vector<32x128xf32>
    tpu.vector_store %arg8[%c0_19, %c0_20], %28 {strides = array<i32>} : memref<32x128xf32, #tpu.memory_space<vmem>>, vector<32x128xf32>,
    return
  }
  func.func @transform_0(%arg0: i32) -> (i32, i32) {
    %c0_i32 = arith.constant 0 : i32
    %c0_i32_0 = arith.constant 0 : i32
    return %arg0, %c0_i32 : i32, i32
  }
  func.func @transform_1(%arg0: i32) -> (i32, i32) {
    %c0_i32 = arith.constant 0 : i32
    %c0_i32_0 = arith.constant 0 : i32
    %c0_i32_1 = arith.constant 0 : i32
    return %c0_i32, %c0_i32_0 : i32, i32
  }
  func.func @transform_2(%arg0: i32) -> (i32, i32) {
    %c0_i32 = arith.constant 0 : i32
    %c0_i32_0 = arith.constant 0 : i32
    %c0_i32_1 = arith.constant 0 : i32
    return %c0_i32, %c0_i32_0 : i32, i32
  }
  func.func @transform_3(%arg0: i32) -> (i32, i32) {
    %c0_i32 = arith.constant 0 : i32
    %c0_i32_0 = arith.constant 0 : i32
    %c0_i32_1 = arith.constant 0 : i32
    return %c0_i32, %c0_i32_0 : i32, i32
  }
  func.func @transform_4(%arg0: i32) -> (i32, i32) {
    %c0_i32 = arith.constant 0 : i32
    %c0_i32_0 = arith.constant 0 : i32
    %c0_i32_1 = arith.constant 0 : i32
    return %c0_i32, %c0_i32_0 : i32, i32
  }
  func.func @transform_5(%arg0: i32) -> (i32, i32) {
    %c0_i32 = arith.constant 0 : i32
    %c0_i32_0 = arith.constant 0 : i32
    %c0_i32_1 = arith.constant 0 : i32
    return %c0_i32, %c0_i32_0 : i32, i32
  }
  func.func @transform_6(%arg0: i32) -> (i32, i32) {
    %c0_i32 = arith.constant 0 : i32
    %c0_i32_0 = arith.constant 0 : i32
    %c0_i32_1 = arith.constant 0 : i32
    return %c0_i32, %c0_i32_0 : i32, i32
  }
  func.func @transform_7(%arg0: i32) -> (i32, i32) {
    %c0_i32 = arith.constant 0 : i32
    %c0_i32_0 = arith.constant 0 : i32
    return %arg0, %c0_i32 : i32, i32
  }
}

</mosaic_0001>

<llo_original>
// kernel: tpu_custom_call.1
$region0: #{tpu_custom_call.1}
  #allocation0 [shape = 'u32[]', space=smem, size = 0x4, offset = 0x4, fixed_abs, tag = 'smem constant byte address 0x4 - core index']
  #allocation1 [shape = 'u32[144,128]{1,0:T(1,128)}', space=vmem, size = 0x12000, scoped, tag = 'internal scratch']
  %s0 = inlined_call_operand.vmem [shape: f32[32,16], index: 0, kind: input, shape index: {}]
  %s1 = inlined_call_operand.vmem [shape: f32[16,128], index: 1, kind: input, shape index: {}]
  %s2 = inlined_call_operand.vmem [shape: f32[1,128], index: 2, kind: input, shape index: {}]
  %s3 = inlined_call_operand.hbm [shape: f32[128,128], index: 3, kind: input, shape index: {}]
  %s4 = inlined_call_operand.vmem [shape: f32[1,128], index: 4, kind: input, shape index: {}]
  %s5 = inlined_call_operand.hbm [shape: f32[128,128], index: 5, kind: input, shape index: {}]
  %s6 = inlined_call_operand.vmem [shape: f32[1,128], index: 6, kind: input, shape index: {}]
  %s7 = inlined_call_operand.hbm [shape: f32[32,128], index: 7, kind: output, shape index: {}]
  %s8 = sld [smem:[#allocation0]]
  $region46: #{tpu_custom_call.1} parent=0
    _
  %s10 = ssub.s32 1, %s8
  %s11 = scalar_select 0, %s10, %s8
  $region1: #{tpu_custom_call.1} parent=0
    #allocation2 [shape = 'u8[65536]{0}', space=vmem, size = 0x10000, scoped, tag = 'input window, operand 3, single buffered']
    #allocation3 [shape = 's32[1]{0}', space=sflag, size = 0x4, scoped, tag = 'scoped memory for tpu_custom_call.1']
    #allocation4 [shape = 's32[1]{0}', space=sflag, size = 0x4, scoped, tag = 'scoped memory for tpu_custom_call.1']
    #allocation5 [shape = 'u8[65536]{0}', space=vmem, size = 0x10000, scoped, tag = 'input window, operand 5, single buffered']
    #allocation6 [shape = 's32[1]{0}', space=sflag, size = 0x4, scoped, tag = 'scoped memory for tpu_custom_call.1']
    #allocation7 [shape = 'u8[16384]{0}', space=vmem, size = 0x4000, scoped, tag = 'output window, operand 0, single buffered']
    %12 = vsyncpa [#allocation3], 0
    %13 = vsyncpa [#allocation6], 0
    %14 = vsyncpa [#allocation4], 0
    // Predicated region
    $region2: #{tpu_custom_call.1} parent=1 // pred_check
      _
    $region3: #{tpu_custom_call.1} parent=1 // pred_check_branch
      %16 = sbr.rel (0) target = $region5
    $region4: #{tpu_custom_call.1} parent=1 // pred_region
      _
    $region5: #{tpu_custom_call.1} parent=1 // pred_fallthru
      _
    // Predicated region
    $region6: #{tpu_custom_call.1} parent=1 // pred_check
      _
    $region7: #{tpu_custom_call.1} parent=1 // pred_check_branch
      %18 = sbr.rel (0) target = $region9
    $region8: #{tpu_custom_call.1} parent=1 // pred_region
      _
    $region9: #{tpu_custom_call.1} parent=1 // pred_fallthru
      _
    // Predicated region
    $region10: #{tpu_custom_call.1} parent=1 // pred_check
      _
    $region11: #{tpu_custom_call.1} parent=1 // pred_check_branch
      %20 = sbr.rel (0) target = $region13
    $region12: #{tpu_custom_call.1} parent=1 // pred_region
      _
    $region13: #{tpu_custom_call.1} parent=1 // pred_fallthru
      _
    // Predicated region
    $region14: #{tpu_custom_call.1} parent=1 // pred_check
      _
    $region15: #{tpu_custom_call.1} parent=1 // pred_check_branch
      %22 = sbr.rel (0) target = $region17
    $region16: #{tpu_custom_call.1} parent=1 // pred_region
      %s24 = ssub.s32 2048, 2048
      %25 = vsyncadd [#allocation3], %s24
      %s26 = sshll.u32 [#allocation2], 4
      %s27 = int_to_ptr.vmem [resolvable:$true] %s26
      %32 = dma.hbm_to_vmem [thread:$0]  %s3, 2048, %s27, [#allocation3], 128, 128, 8
    $region17: #{tpu_custom_call.1} parent=1 // pred_fallthru
      _
    // Predicated region
    $region18: #{tpu_custom_call.1} parent=1 // pred_check
      _
    $region19: #{tpu_custom_call.1} parent=1 // pred_check_branch
      %34 = sbr.rel (0) target = $region21
    $region20: #{tpu_custom_call.1} parent=1 // pred_region
      _
    $region21: #{tpu_custom_call.1} parent=1 // pred_fallthru
      _
    // Predicated region
    $region22: #{tpu_custom_call.1} parent=1 // pred_check
      _
    $region23: #{tpu_custom_call.1} parent=1 // pred_check_branch
      %36 = sbr.rel (0) target = $region25
    $region24: #{tpu_custom_call.1} parent=1 // pred_region
      %s38 = ssub.s32 2048, 2048
      %39 = vsyncadd [#allocation6], %s38
      %s40 = sshll.u32 [#allocation5], 4
      %s41 = int_to_ptr.vmem [resolvable:$true] %s40
      %46 = dma.hbm_to_vmem [thread:$0]  %s5, 2048, %s41, [#allocation6], 128, 128, 8
    $region25: #{tpu_custom_call.1} parent=1 // pred_fallthru
      _
    // Predicated region
    $region26: #{tpu_custom_call.1} parent=1 // pred_check
      _
    $region27: #{tpu_custom_call.1} parent=1 // pred_check_branch
      %48 = sbr.rel (0) target = $region29
    $region28: #{tpu_custom_call.1} parent=1 // pred_region
      _
    $region29: #{tpu_custom_call.1} parent=1 // pred_fallthru
      _
    // Predicated region
    $region30: #{tpu_custom_call.1} parent=1 // pred_check
      _
    $region31: #{tpu_custom_call.1} parent=1 // pred_check_branch
      %50 = sbr.rel (0) target = $region33
    $region32: #{tpu_custom_call.1} parent=1 // pred_region
      %51 = dma.done [#allocation3], 2048
    $region33: #{tpu_custom_call.1} parent=1 // pred_fallthru
      _
    // Predicated region
    $region34: #{tpu_custom_call.1} parent=1 // pred_check
      _
    $region35: #{tpu_custom_call.1} parent=1 // pred_check_branch
      %53 = sbr.rel (0) target = $region37
    $region36: #{tpu_custom_call.1} parent=1 // pred_region
      %54 = dma.done [#allocation6], 2048
    $region37: #{tpu_custom_call.1} parent=1 // pred_fallthru
      _
    %v55 = vld [vmem:[%s0] sm:$0xff]
    %v56 = vld [vmem:[%s0 + $0x8] sm:$0xff]
    %v57 = vld [vmem:[%s0 + $0x10] sm:$0xff]
    %v58 = vld [vmem:[%s0 + $0x18] sm:$0xff]
    %v59 = vld [vmem:[%s1] sm:$0xff]
    %v60 = vld [vmem:[%s1 + $0x8] sm:$0xff]
    %v61 = vld [vmem:[%s2] sm:$0x1]
    %v63 = vlaneseq
    %v64 = vshrl.u32 %v63, 7
    %v65 = vsub.s32 0, %v64
    %v66 = vrot.slane %v61, %v65
    %vm68 = vcmask 130048
    %v70 = vsel %vm68, %v55, 0
    %v73 = vsel %vm68, %v56, 0
    %v76 = vsel %vm68, %v57, 0
    %v79 = vsel %vm68, %v58, 0
    %81 = vmatprep.subr.mxu0 0.0
    %v82 = vand.u32 %v59, 4294901760
    %83 = vmatpush1.msra.mxu0 %v82
    %84 = vmatprep.subr.mxu0 0.0
    %v85 = vand.u32 %v60, 4294901760
    %86 = vmatpush1.msra.mxu0 %v85
    %87 = vmatprep.subr.mxu0 0.0
    %88 = vmatpush1.msra.mxu0 0.0
    %89 = vmatprep.subr.mxu0 0.0
    %90 = vmatpush1.msra.mxu0 0.0
    %91 = vmatprep.subr.mxu0 0.0
    %92 = vmatpush1.msra.mxu0 0.0
    %93 = vmatprep.subr.mxu0 0.0
    %94 = vmatpush1.msra.mxu0 0.0
    %95 = vmatprep.subr.mxu0 0.0
    %96 = vmatpush1.msra.mxu0 0.0
    %97 = vmatprep.subr.mxu0 0.0
    %98 = vmatpush1.msra.mxu0 0.0
    %99 = vmatprep.subr.mxu0 0.0
    %100 = vmatpush1.msra.mxu0 0.0
    %101 = vmatprep.subr.mxu0 0.0
    %102 = vmatpush1.msra.mxu0 0.0
    %103 = vmatprep.subr.mxu0 0.0
    %104 = vmatpush1.msra.mxu0 0.0
    %105 = vmatprep.subr.mxu0 0.0
    %106 = vmatpush1.msra.mxu0 0.0
    %107 = vmatprep.subr.mxu0 0.0
    %108 = vmatpush1.msra.mxu0 0.0
    %109 = vmatprep.subr.mxu0 0.0
    %110 = vmatpush1.msra.mxu0 0.0
    %111 = vmatprep.subr.mxu0 0.0
    %112 = vmatpush1.msra.mxu0 0.0
    %113 = vmatprep.subr.mxu0 0.0
    %114 = vmatpush1.msra.mxu0 0.0
    %115 = vmatprep.subr.mxu0 0.0
    %116 = vmatpush1.msra.mxu0 0.0
    %117 = vmatprep.subr.mxu0 0.0
    %118 = vmatpush1.msra.mxu0 0.0
    %119 = vmatprep.subr.mxu0 0.0
    %120 = vmatpush1.msra.mxu0 0.0
    %121 = vmatprep.subr.mxu0 0.0
    %122 = vmatpush1.msra.mxu0 0.0
    %123 = vmatprep.subr.mxu0 0.0
    %124 = vmatpush1.msra.mxu0 0.0
    %125 = vmatprep.subr.mxu0 0.0
    %126 = vmatpush1.msra.mxu0 0.0
    %127 = vmatprep.subr.mxu0 0.0
    %128 = vmatpush1.msra.mxu0 0.0
    %129 = vmatprep.subr.mxu0 0.0
    %130 = vmatpush1.msra.mxu0 0.0
    %131 = vmatprep.subr.mxu0 0.0
    %132 = vmatpush1.msra.mxu0 0.0
    %133 = vmatprep.subr.mxu0 0.0
    %134 = vmatpush1.msra.mxu0 0.0
    %135 = vmatprep.subr.mxu0 0.0
    %136 = vmatpush1.msra.mxu0 0.0
    %137 = vmatprep.subr.mxu0 0.0
    %138 = vmatpush1.msra.mxu0 0.0
    %139 = vmatprep.subr.mxu0 0.0
    %140 = vmatpush1.msra.mxu0 0.0
    %141 = vmatprep.subr.mxu0 0.0
    %142 = vmatpush1.msra.mxu0 0.0
    %143 = vmatprep.subr.mxu0 0.0
    %144 = vmatpush1.msra.mxu0 0.0
    %145 = vmatprep.subr.mxu0 0.0
    %146 = vmatpush1.msra.mxu0 0.0
    %147 = vmatprep.mubr.f32.mxu0 0.0
    %v148 = vand.u32 %v70, 4294901760
    %v149 = vsub.f32 %v70, %v148
    %v150 = vand.u32 %v149, 4294901760
    %v151 = vsub.f32 %v149, %v150
    %v152 = vand.u32 %v151, 4294901760
    %153 = vmatmul.mubr.f32.gmra.mrb[0].mxu0 %v152
    %v154 = vpop.f32.mrb[0].mxu0
    %v155 = vadd.f32 %v66, %v154
    %v156 = vpop.f32.mrb[0].mxu0
    %157 = vmatprep.mubr.f32.mxu0 0.0
    %v158 = vand.u32 %v73, 4294901760
    %v159 = vsub.f32 %v73, %v158
    %v160 = vand.u32 %v159, 4294901760
    %v161 = vsub.f32 %v159, %v160
    %v162 = vand.u32 %v161, 4294901760
    %163 = vmatmul.mubr.f32.gmra.mrb[0].mxu0 %v162
    %v164 = vpop.f32.mrb[0].mxu0
    %v165 = vadd.f32 %v66, %v164
    %v166 = vpop.f32.mrb[0].mxu0
    %167 = vmatprep.mubr.f32.mxu0 0.0
    %v168 = vand.u32 %v76, 4294901760
    %v169 = vsub.f32 %v76, %v168
    %v170 = vand.u32 %v169, 4294901760
    %v171 = vsub.f32 %v169, %v170
    %v172 = vand.u32 %v171, 4294901760
    %173 = vmatmul.mubr.f32.gmra.mrb[0].mxu0 %v172
    %v174 = vpop.f32.mrb[0].mxu0
    %v175 = vadd.f32 %v66, %v174
    %v176 = vpop.f32.mrb[0].mxu0
    %177 = vmatprep.mubr.f32.mxu0 0.0
    %v178 = vand.u32 %v79, 4294901760
    %v179 = vsub.f32 %v79, %v178
    %v180 = vand.u32 %v179, 4294901760
    %v181 = vsub.f32 %v179, %v180
    %v182 = vand.u32 %v181, 4294901760
    %183 = vmatmul.mubr.f32.gmra.mrb[0].mxu0 %v182
    %v184 = vpop.f32.mrb[0].mxu0
    %v185 = vadd.f32 %v66, %v184
    %v186 = vpop.f32.mrb[0].mxu0
    %187 = vdwg.mxu0
    %188 = vmatprep.subr.mxu0 0.0
    %v189 = vand.u32 %v59, 4294901760
    %v190 = vsub.f32 %v59, %v189
    %v191 = vand.u32 %v190, 4294901760
    %v192 = vsub.f32 %v190, %v191
    %v193 = vand.u32 %v192, 4294901760
    %194 = vmatpush1.msra.mxu0 %v193
    %195 = vmatprep.subr.mxu0 0.0
    %v196 = vand.u32 %v60, 4294901760
    %v197 = vsub.f32 %v60, %v196
    %v198 = vand.u32 %v197, 4294901760
    %v199 = vsub.f32 %v197, %v198
    %v200 = vand.u32 %v199, 4294901760
    %201 = vmatpush1.msra.mxu0 %v200
    %202 = vmatprep.subr.mxu0 0.0
    %203 = vmatpush1.msra.mxu0 0.0
    %204 = vmatprep.subr.mxu0 0.0
    %205 = vmatpush1.msra.mxu0 0.0
    %206 = vmatprep.subr.mxu0 0.0
    %207 = vmatpush1.msra.mxu0 0.0
    %208 = vmatprep.subr.mxu0 0.0
    %209 = vmatpush1.msra.mxu0 0.0
    %210 = vmatprep.subr.mxu0 0.0
    %211 = vmatpush1.msra.mxu0 0.0
    %212 = vmatprep.subr.mxu0 0.0
    %213 = vmatpush1.msra.mxu0 0.0
    %214 = vmatprep.subr.mxu0 0.0
    %215 = vmatpush1.msra.mxu0 0.0
    %216 = vmatprep.subr.mxu0 0.0
    %217 = vmatpush1.msra.mxu0 0.0
    %218 = vmatprep.subr.mxu0 0.0
    %219 = vmatpush1.msra.mxu0 0.0
    %220 = vmatprep.subr.mxu0 0.0
    %221 = vmatpush1.msra.mxu0 0.0
    %222 = vmatprep.subr.mxu0 0.0
    %223 = vmatpush1.msra.mxu0 0.0
    %224 = vmatprep.subr.mxu0 0.0
    %225 = vmatpush1.msra.mxu0 0.0
    %226 = vmatprep.subr.mxu0 0.0
    %227 = vmatpush1.msra.mxu0 0.0
    %228 = vmatprep.subr.mxu0 0.0
    %229 = vmatpush1.msra.mxu0 0.0
    %230 = vmatprep.subr.mxu0 0.0
    %231 = vmatpush1.msra.mxu0 0.0
    %232 = vmatprep.subr.mxu0 0.0
    %233 = vmatpush1.msra.mxu0 0.0
    %234 = vmatprep.subr.mxu0 0.0
    %235 = vmatpush1.msra.mxu0 0.0
    %236 = vmatprep.subr.mxu0 0.0
    %237 = vmatpush1.msra.mxu0 0.0
    %238 = vmatprep.subr.mxu0 0.0
    %239 = vmatpush1.msra.mxu0 0.0
    %240 = vmatprep.subr.mxu0 0.0
    %241 = vmatpush1.msra.mxu0 0.0
    %242 = vmatprep.subr.mxu0 0.0
    %243 = vmatpush1.msra.mxu0 0.0
    %244 = vmatprep.subr.mxu0 0.0
    %245 = vmatpush1.msra.mxu0 0.0
    %246 = vmatprep.subr.mxu0 0.0
    %247 = vmatpush1.msra.mxu0 0.0
    %248 = vmatprep.subr.mxu0 0.0
    %249 = vmatpush1.msra.mxu0 0.0
    %250 = vmatprep.subr.mxu0 0.0
    %251 = vmatpush1.msra.mxu0 0.0
    %252 = vmatprep.subr.mxu0 0.0
    %253 = vmatpush1.msra.mxu0 0.0
    %254 = vmatprep.subr.mxu0 0.0
    %255 = vmatpush1.msra.mxu0 0.0
    %256 = vmatprep.subr.mxu0 0.0
    %257 = vmatpush1.msra.mxu0 0.0
    %258 = vmatprep.subr.mxu0 0.0
    %259 = vmatpush1.msra.mxu0 0.0
    %260 = vmatprep.subr.mxu0 0.0
    %261 = vmatpush1.msra.mxu0 0.0
    %262 = vmatprep.mubr.f32.mxu0 0.0
    %v263 = vand.u32 %v70, 4294901760
    %264 = vmatmul.mubr.f32.gmra.mrb[0].mxu0 %v263
    %v265 = vpop.f32.mrb[0].mxu0
    %v266 = vadd.f32 %v155, %v265
    %v267 = vpop.f32.mrb[0].mxu0
    %268 = vmatprep.mubr.f32.mxu0 0.0
    %v269 = vand.u32 %v73, 4294901760
    %270 = vmatmul.mubr.f32.gmra.mrb[0].mxu0 %v269
    %v271 = vpop.f32.mrb[0].mxu0
    %v272 = vadd.f32 %v165, %v271
    %v273 = vpop.f32.mrb[0].mxu0
    %274 = vmatprep.mubr.f32.mxu0 0.0
    %v275 = vand.u32 %v76, 4294901760
    %276 = vmatmul.mubr.f32.gmra.mrb[0].mxu0 %v275
    %v277 = vpop.f32.mrb[0].mxu0
    %v278 = vadd.f32 %v175, %v277
    %v279 = vpop.f32.mrb[0].mxu0
    %280 = vmatprep.mubr.f32.mxu0 0.0
    %v281 = vand.u32 %v79, 4294901760
    %282 = vmatmul.mubr.f32.gmra.mrb[0].mxu0 %v281
    %v283 = vpop.f32.mrb[0].mxu0
    %v284 = vadd.f32 %v185, %v283
    %v285 = vpop.f32.mrb[0].mxu0
    %286 = vdwg.mxu0
    %287 = vmatprep.subr.mxu0 0.0
    %v288 = vand.u32 %v59, 4294901760
    %v289 = vsub.f32 %v59, %v288
    %290 = vmatpush1.msra.mxu0 %v289
    %291 = vmatprep.subr.mxu0 0.0
    %v292 = vand.u32 %v60, 4294901760
    %v293 = vsub.f32 %v60, %v292
    %294 = vmatpush1.msra.mxu0 %v293
    %295 = vmatprep.subr.mxu0 0.0
    %296 = vmatpush1.msra.mxu0 0.0
    %297 = vmatprep.subr.mxu0 0.0
    %298 = vmatpush1.msra.mxu0 0.0
    %299 = vmatprep.subr.mxu0 0.0
    %300 = vmatpush1.msra.mxu0 0.0
    %301 = vmatprep.subr.mxu0 0.0
    %302 = vmatpush1.msra.mxu0 0.0
    %303 = vmatprep.subr.mxu0 0.0
    %304 = vmatpush1.msra.mxu0 0.0
    %305 = vmatprep.subr.mxu0 0.0
    %306 = vmatpush1.msra.mxu0 0.0
    %307 = vmatprep.subr.mxu0 0.0
    %308 = vmatpush1.msra.mxu0 0.0
    %309 = vmatprep.subr.mxu0 0.0
    %310 = vmatpush1.msra.mxu0 0.0
    %311 = vmatprep.subr.mxu0 0.0
    %312 = vmatpush1.msra.mxu0 0.0
    %313 = vmatprep.subr.mxu0 0.0
    %314 = vmatpush1.msra.mxu0 0.0
    %315 = vmatprep.subr.mxu0 0.0
    %316 = vmatpush1.msra.mxu0 0.0
    %317 = vmatprep.subr.mxu0 0.0
    %318 = vmatpush1.msra.mxu0 0.0
    %319 = vmatprep.subr.mxu0 0.0
    %320 = vmatpush1.msra.mxu0 0.0
    %321 = vmatprep.subr.mxu0 0.0
    %322 = vmatpush1.msra.mxu0 0.0
    %323 = vmatprep.subr.mxu0 0.0
    %324 = vmatpush1.msra.mxu0 0.0
    %325 = vmatprep.subr.mxu0 0.0
    %326 = vmatpush1.msra.mxu0 0.0
    %327 = vmatprep.subr.mxu0 0.0
    %328 = vmatpush1.msra.mxu0 0.0
    %329 = vmatprep.subr.mxu0 0.0
    %330 = vmatpush1.msra.mxu0 0.0
    %331 = vmatprep.subr.mxu0 0.0
    %332 = vmatpush1.msra.mxu0 0.0
    %333 = vmatprep.subr.mxu0 0.0
    %334 = vmatpush1.msra.mxu0 0.0
    %335 = vmatprep.subr.mxu0 0.0
    %336 = vmatpush1.msra.mxu0 0.0
    %337 = vmatprep.subr.mxu0 0.0
    %338 = vmatpush1.msra.mxu0 0.0
    %339 = vmatprep.subr.mxu0 0.0
    %340 = vmatpush1.msra.mxu0 0.0
    %341 = vmatprep.subr.mxu0 0.0
    %342 = vmatpush1.msra.mxu0 0.0
    %343 = vmatprep.subr.mxu0 0.0
    %344 = vmatpush1.msra.mxu0 0.0
    %345 = vmatprep.subr.mxu0 0.0
    %346 = vmatpush1.msra.mxu0 0.0
    %347 = vmatprep.subr.mxu0 0.0
    %348 = vmatpush1.msra.mxu0 0.0
    %349 = vmatprep.subr.mxu0 0.0
    %350 = vmatpush1.msra.mxu0 0.0
    %351 = vmatprep.subr.mxu0 0.0
    %352 = vmatpush1.msra.mxu0 0.0
    %353 = vmatprep.subr.mxu0 0.0
    %354 = vmatpush1.msra.mxu0 0.0
    %355 = vmatprep.mubr.f32.mxu0 0.0
    %v356 = vand.u32 %v70, 4294901760
    %v357 = vsub.f32 %v70, %v356
    %358 = vmatmul.mubr.f32.gmra.mrb[0].mxu0 %v357
    %v359 = vpop.f32.mrb[0].mxu0
    %v360 = vadd.f32 %v266, %v359
    %v361 = vpop.f32.mrb[0].mxu0
    %362 = vmatprep.mubr.f32.mxu0 0.0
    %v363 = vand.u32 %v73, 4294901760
    %v364 = vsub.f32 %v73, %v363
    %365 = vmatmul.mubr.f32.gmra.mrb[0].mxu0 %v364
    %v366 = vpop.f32.mrb[0].mxu0
    %v367 = vadd.f32 %v272, %v366
    %v368 = vpop.f32.mrb[0].mxu0
    %369 = vmatprep.mubr.f32.mxu0 0.0
    %v370 = vand.u32 %v76, 4294901760
    %v371 = vsub.f32 %v76, %v370
    %372 = vmatmul.mubr.f32.gmra.mrb[0].mxu0 %v371
    %v373 = vpop.f32.mrb[0].mxu0
    %v374 = vadd.f32 %v278, %v373
    %v375 = vpop.f32.mrb[0].mxu0
    %376 = vmatprep.mubr.f32.mxu0 0.0
    %v377 = vand.u32 %v79, 4294901760
    %v378 = vsub.f32 %v79, %v377
    %379 = vmatmul.mubr.f32.gmra.mrb[0].mxu0 %v378
    %v380 = vpop.f32.mrb[0].mxu0
    %v381 = vadd.f32 %v284, %v380
    %v382 = vpop.f32.mrb[0].mxu0
    %383 = vdwg.mxu0
    %384 = vmatprep.subr.mxu0 0.0
    %v385 = vand.u32 %v59, 4294901760
    %386 = vmatpush1.msra.mxu0 %v385
    %387 = vmatprep.subr.mxu0 0.0
    %v388 = vand.u32 %v60, 4294901760
    %389 = vmatpush1.msra.mxu0 %v388
    %390 = vmatprep.subr.mxu0 0.0
    %391 = vmatpush1.msra.mxu0 0.0
    %392 = vmatprep.subr.mxu0 0.0
    %393 = vmatpush1.msra.mxu0 0.0
    %394 = vmatprep.subr.mxu0 0.0
    %395 = vmatpush1.msra.mxu0 0.0
    %396 = vmatprep.subr.mxu0 0.0
    %397 = vmatpush1.msra.mxu0 0.0
    %398 = vmatprep.subr.mxu0 0.0
    %399 = vmatpush1.msra.mxu0 0.0
    %400 = vmatprep.subr.mxu0 0.0
    %401 = vmatpush1.msra.mxu0 0.0
    %402 = vmatprep.subr.mxu0 0.0
    %403 = vmatpush1.msra.mxu0 0.0
    %404 = vmatprep.subr.mxu0 0.0
    %405 = vmatpush1.msra.mxu0 0.0
    %406 = vmatprep.subr.mxu0 0.0
    %407 = vmatpush1.msra.mxu0 0.0
    %408 = vmatprep.subr.mxu0 0.0
    %409 = vmatpush1.msra.mxu0 0.0
    %410 = vmatprep.subr.mxu0 0.0
    %411 = vmatpush1.msra.mxu0 0.0
    %412 = vmatprep.subr.mxu0 0.0
    %413 = vmatpush1.msra.mxu0 0.0
    %414 = vmatprep.subr.mxu0 0.0
    %415 = vmatpush1.msra.mxu0 0.0
    %416 = vmatprep.subr.mxu0 0.0
    %417 = vmatpush1.msra.mxu0 0.0
    %418 = vmatprep.subr.mxu0 0.0
    %419 = vmatpush1.msra.mxu0 0.0
    %420 = vmatprep.subr.mxu0 0.0
    %421 = vmatpush1.msra.mxu0 0.0
    %422 = vmatprep.subr.mxu0 0.0
    %423 = vmatpush1.msra.mxu0 0.0
    %424 = vmatprep.subr.mxu0 0.0
    %425 = vmatpush1.msra.mxu0 0.0
    %426 = vmatprep.subr.mxu0 0.0
    %427 = vmatpush1.msra.mxu0 0.0
    %428 = vmatprep.subr.mxu0 0.0
    %429 = vmatpush1.msra.mxu0 0.0
    %430 = vmatprep.subr.mxu0 0.0
    %431 = vmatpush1.msra.mxu0 0.0
    %432 = vmatprep.subr.mxu0 0.0
    %433 = vmatpush1.msra.mxu0 0.0
    %434 = vmatprep.subr.mxu0 0.0
    %435 = vmatpush1.msra.mxu0 0.0
    %436 = vmatprep.subr.mxu0 0.0
    %437 = vmatpush1.msra.mxu0 0.0
    %438 = vmatprep.subr.mxu0 0.0
    %439 = vmatpush1.msra.mxu0 0.0
    %440 = vmatprep.subr.mxu0 0.0
    %441 = vmatpush1.msra.mxu0 0.0
    %442 = vmatprep.subr.mxu0 0.0
    %443 = vmatpush1.msra.mxu0 0.0
    %444 = vmatprep.subr.mxu0 0.0
    %445 = vmatpush1.msra.mxu0 0.0
    %446 = vmatprep.subr.mxu0 0.0
    %447 = vmatpush1.msra.mxu0 0.0
    %448 = vmatprep.subr.mxu0 0.0
    %449 = vmatpush1.msra.mxu0 0.0
    %450 = vmatprep.mubr.f32.mxu0 0.0
    %v451 = vand.u32 %v70, 4294901760
    %v452 = vsub.f32 %v70, %v451
    %v453 = vand.u32 %v452, 4294901760
    %454 = vmatmul.mubr.f32.gmra.mrb[0].mxu0 %v453
    %v455 = vpop.f32.mrb[0].mxu0
    %v456 = vadd.f32 %v360, %v455
    %v457 = vpop.f32.mrb[0].mxu0
    %458 = vmatprep.mubr.f32.mxu0 0.0
    %v459 = vand.u32 %v73, 4294901760
    %v460 = vsub.f32 %v73, %v459
    %v461 = vand.u32 %v460, 4294901760
    %462 = vmatmul.mubr.f32.gmra.mrb[0].mxu0 %v461
    %v463 = vpop.f32.mrb[0].mxu0
    %v464 = vadd.f32 %v367, %v463
    %v465 = vpop.f32.mrb[0].mxu0
    %466 = vmatprep.mubr.f32.mxu0 0.0
    %v467 = vand.u32 %v76, 4294901760
    %v468 = vsub.f32 %v76, %v467
    %v469 = vand.u32 %v468, 4294901760
    %470 = vmatmul.mubr.f32.gmra.mrb[0].mxu0 %v469
    %v471 = vpop.f32.mrb[0].mxu0
    %v472 = vadd.f32 %v374, %v471
    %v473 = vpop.f32.mrb[0].mxu0
    %474 = vmatprep.mubr.f32.mxu0 0.0
    %v475 = vand.u32 %v79, 4294901760
    %v476 = vsub.f32 %v79, %v475
    %v477 = vand.u32 %v476, 4294901760
    %478 = vmatmul.mubr.f32.gmra.mrb[0].mxu0 %v477
    %v479 = vpop.f32.mrb[0].mxu0
    %v480 = vadd.f32 %v381, %v479
    %v481 = vpop.f32.mrb[0].mxu0
    %482 = vdwg.mxu0
    %483 = vmatprep.subr.mxu0 0.0
    %v484 = vand.u32 %v59, 4294901760
    %v485 = vsub.f32 %v59, %v484
    %v486 = vand.u32 %v485, 4294901760
    %487 = vmatpush1.msra.mxu0 %v486
    %488 = vmatprep.subr.mxu0 0.0
    %v489 = vand.u32 %v60, 4294901760
    %v490 = vsub.f32 %v60, %v489
    %v491 = vand.u32 %v490, 4294901760
    %492 = vmatpush1.msra.mxu0 %v491
    %493 = vmatprep.subr.mxu0 0.0
    %494 = vmatpush1.msra.mxu0 0.0
    %495 = vmatprep.subr.mxu0 0.0
    %496 = vmatpush1.msra.mxu0 0.0
    %497 = vmatprep.subr.mxu0 0.0
    %498 = vmatpush1.msra.mxu0 0.0
    %499 = vmatprep.subr.mxu0 0.0
    %500 = vmatpush1.msra.mxu0 0.0
    %501 = vmatprep.subr.mxu0 0.0
    %502 = vmatpush1.msra.mxu0 0.0
    %503 = vmatprep.subr.mxu0 0.0
    %504 = vmatpush1.msra.mxu0 0.0
    %505 = vmatprep.subr.mxu0 0.0
    %506 = vmatpush1.msra.mxu0 0.0
    %507 = vmatprep.subr.mxu0 0.0
    %508 = vmatpush1.msra.mxu0 0.0
    %509 = vmatprep.subr.mxu0 0.0
    %510 = vmatpush1.msra.mxu0 0.0
    %511 = vmatprep.subr.mxu0 0.0
    %512 = vmatpush1.msra.mxu0 0.0
    %513 = vmatprep.subr.mxu0 0.0
    %514 = vmatpush1.msra.mxu0 0.0
    %515 = vmatprep.subr.mxu0 0.0
    %516 = vmatpush1.msra.mxu0 0.0
    %517 = vmatprep.subr.mxu0 0.0
    %518 = vmatpush1.msra.mxu0 0.0
    %519 = vmatprep.subr.mxu0 0.0
    %520 = vmatpush1.msra.mxu0 0.0
    %521 = vmatprep.subr.mxu0 0.0
    %522 = vmatpush1.msra.mxu0 0.0
    %523 = vmatprep.subr.mxu0 0.0
    %524 = vmatpush1.msra.mxu0 0.0
    %525 = vmatprep.subr.mxu0 0.0
    %526 = vmatpush1.msra.mxu0 0.0
    %527 = vmatprep.subr.mxu0 0.0
    %528 = vmatpush1.msra.mxu0 0.0
    %529 = vmatprep.subr.mxu0 0.0
    %530 = vmatpush1.msra.mxu0 0.0
    %531 = vmatprep.subr.mxu0 0.0
    %532 = vmatpush1.msra.mxu0 0.0
    %533 = vmatprep.subr.mxu0 0.0
    %534 = vmatpush1.msra.mxu0 0.0
    %535 = vmatprep.subr.mxu0 0.0
    %536 = vmatpush1.msra.mxu0 0.0
    %537 = vmatprep.subr.mxu0 0.0
    %538 = vmatpush1.msra.mxu0 0.0
    %539 = vmatprep.subr.mxu0 0.0
    %540 = vmatpush1.msra.mxu0 0.0
    %541 = vmatprep.subr.mxu0 0.0
    %542 = vmatpush1.msra.mxu0 0.0
    %543 = vmatprep.subr.mxu0 0.0
    %544 = vmatpush1.msra.mxu0 0.0
    %545 = vmatprep.subr.mxu0 0.0
    %546 = vmatpush1.msra.mxu0 0.0
    %547 = vmatprep.subr.mxu0 0.0
    %548 = vmatpush1.msra.mxu0 0.0
    %549 = vmatprep.subr.mxu0 0.0
    %550 = vmatpush1.msra.mxu0 0.0
    %551 = vmatprep.subr.mxu0 0.0
    %552 = vmatpush1.msra.mxu0 0.0
    %553 = vmatprep.mubr.f32.mxu0 0.0
    %v554 = vand.u32 %v70, 4294901760
    %555 = vmatmul.mubr.f32.gmra.mrb[0].mxu0 %v554
    %v556 = vpop.f32.mrb[0].mxu0
    %v557 = vadd.f32 %v456, %v556
    %v558 = vpop.f32.mrb[0].mxu0
    %559 = vmatprep.mubr.f32.mxu0 0.0
    %v560 = vand.u32 %v73, 4294901760
    %561 = vmatmul.mubr.f32.gmra.mrb[0].mxu0 %v560
    %v562 = vpop.f32.mrb[0].mxu0
    %v563 = vadd.f32 %v464, %v562
    %v564 = vpop.f32.mrb[0].mxu0
    %565 = vmatprep.mubr.f32.mxu0 0.0
    %v566 = vand.u32 %v76, 4294901760
    %567 = vmatmul.mubr.f32.gmra.mrb[0].mxu0 %v566
    %v568 = vpop.f32.mrb[0].mxu0
    %v569 = vadd.f32 %v472, %v568
    %v570 = vpop.f32.mrb[0].mxu0
    %571 = vmatprep.mubr.f32.mxu0 0.0
    %v572 = vand.u32 %v79, 4294901760
    %573 = vmatmul.mubr.f32.gmra.mrb[0].mxu0 %v572
    %v574 = vpop.f32.mrb[0].mxu0
    %v575 = vadd.f32 %v480, %v574
    %v576 = vpop.f32.mrb[0].mxu0
    %577 = vdwg.mxu0
    %578 = vmatprep.subr.mxu0 0.0
    %v579 = vand.u32 %v59, 4294901760
    %580 = vmatpush1.msra.mxu0 %v579
    %581 = vmatprep.subr.mxu0 0.0
    %v582 = vand.u32 %v60, 4294901760
    %583 = vmatpush1.msra.mxu0 %v582
    %584 = vmatprep.subr.mxu0 0.0
    %585 = vmatpush1.msra.mxu0 0.0
    %586 = vmatprep.subr.mxu0 0.0
    %587 = vmatpush1.msra.mxu0 0.0
    %588 = vmatprep.subr.mxu0 0.0
    %589 = vmatpush1.msra.mxu0 0.0
    %590 = vmatprep.subr.mxu0 0.0
    %591 = vmatpush1.msra.mxu0 0.0
    %592 = vmatprep.subr.mxu0 0.0
    %593 = vmatpush1.msra.mxu0 0.0
    %594 = vmatprep.subr.mxu0 0.0
    %595 = vmatpush1.msra.mxu0 0.0
    %596 = vmatprep.subr.mxu0 0.0
    %597 = vmatpush1.msra.mxu0 0.0
    %598 = vmatprep.subr.mxu0 0.0
    %599 = vmatpush1.msra.mxu0 0.0
    %600 = vmatprep.subr.mxu0 0.0
    %601 = vmatpush1.msra.mxu0 0.0
    %602 = vmatprep.subr.mxu0 0.0
    %603 = vmatpush1.msra.mxu0 0.0
    %604 = vmatprep.subr.mxu0 0.0
    %605 = vmatpush1.msra.mxu0 0.0
    %606 = vmatprep.subr.mxu0 0.0
    %607 = vmatpush1.msra.mxu0 0.0
    %608 = vmatprep.subr.mxu0 0.0
    %609 = vmatpush1.msra.mxu0 0.0
    %610 = vmatprep.subr.mxu0 0.0
    %611 = vmatpush1.msra.mxu0 0.0
    %612 = vmatprep.subr.mxu0 0.0
    %613 = vmatpush1.msra.mxu0 0.0
    %614 = vmatprep.subr.mxu0 0.0
    %615 = vmatpush1.msra.mxu0 0.0
    %616 = vmatprep.subr.mxu0 0.0
    %617 = vmatpush1.msra.mxu0 0.0
    %618 = vmatprep.subr.mxu0 0.0
    %619 = vmatpush1.msra.mxu0 0.0
    %620 = vmatprep.subr.mxu0 0.0
    %621 = vmatpush1.msra.mxu0 0.0
    %622 = vmatprep.subr.mxu0 0.0
    %623 = vmatpush1.msra.mxu0 0.0
    %624 = vmatprep.subr.mxu0 0.0
    %625 = vmatpush1.msra.mxu0 0.0
    %626 = vmatprep.subr.mxu0 0.0
    %627 = vmatpush1.msra.mxu0 0.0
    %628 = vmatprep.subr.mxu0 0.0
    %629 = vmatpush1.msra.mxu0 0.0
    %630 = vmatprep.subr.mxu0 0.0
    %631 = vmatpush1.msra.mxu0 0.0
    %632 = vmatprep.subr.mxu0 0.0
    %633 = vmatpush1.msra.mxu0 0.0
    %634 = vmatprep.subr.mxu0 0.0
    %635 = vmatpush1.msra.mxu0 0.0
    %636 = vmatprep.subr.mxu0 0.0
    %637 = vmatpush1.msra.mxu0 0.0
    %638 = vmatprep.subr.mxu0 0.0
    %639 = vmatpush1.msra.mxu0 0.0
    %640 = vmatprep.subr.mxu0 0.0
    %641 = vmatpush1.msra.mxu0 0.0
    %642 = vmatprep.subr.mxu0 0.0
    %643 = vmatpush1.msra.mxu0 0.0
    %644 = vmatprep.mubr.f32.mxu0 0.0
    %v645 = vand.u32 %v70, 4294901760
    %646 = vmatmul.mubr.f32.gmra.mrb[0].mxu0 %v645
    %v647 = vpop.f32.mrb[0].mxu0
    %v648 = vadd.f32 %v557, %v647
    %v649 = vpop.f32.mrb[0].mxu0
    %650 = vmatprep.mubr.f32.mxu0 0.0
    %v651 = vand.u32 %v73, 4294901760
    %652 = vmatmul.mubr.f32.gmra.mrb[0].mxu0 %v651
    %v653 = vpop.f32.mrb[0].mxu0
    %v654 = vadd.f32 %v563, %v653
    %v655 = vpop.f32.mrb[0].mxu0
    %656 = vmatprep.mubr.f32.mxu0 0.0
    %v657 = vand.u32 %v76, 4294901760
    %658 = vmatmul.mubr.f32.gmra.mrb[0].mxu0 %v657
    %v659 = vpop.f32.mrb[0].mxu0
    %v660 = vadd.f32 %v569, %v659
    %v661 = vpop.f32.mrb[0].mxu0
    %662 = vmatprep.mubr.f32.mxu0 0.0
    %v663 = vand.u32 %v79, 4294901760
    %664 = vmatmul.mubr.f32.gmra.mrb[0].mxu0 %v663
    %v665 = vpop.f32.mrb[0].mxu0
    %v666 = vadd.f32 %v575, %v665
    %v667 = vpop.f32.mrb[0].mxu0
    %668 = vdwg.mxu0
    %v669 = vmax.f32 %v648, 0.0
    %v670 = vmax.f32 %v654, 0.0
    %v671 = vmax.f32 %v660, 0.0
    %v672 = vmax.f32 %v666, 0.0
    %v673 = vld [vmem:[#allocation2] sm:$0xff]
    %v674 = vld [vmem:[#allocation2 + $0x8] sm:$0xff]
    %v675 = vld [vmem:[#allocation2 + $0x10] sm:$0xff]
    %v676 = vld [vmem:[#allocation2 + $0x18] sm:$0xff]
    %v677 = vld [vmem:[#allocation2 + $0x20] sm:$0xff]
    %v678 = vld [vmem:[#allocation2 + $0x28] sm:$0xff]
    %v679 = vld [vmem:[#allocation2 + $0x30] sm:$0xff]
    %v680 = vld [vmem:[#allocation2 + $0x38] sm:$0xff]
    %v681 = vld [vmem:[#allocation2 + $0x40] sm:$0xff]
    %v682 = vld [vmem:[#allocation2 + $0x48] sm:$0xff]
    %v683 = vld [vmem:[#allocation2 + $0x50] sm:$0xff]
    %v684 = vld [vmem:[#allocation2 + $0x58] sm:$0xff]
    %v685 = vld [vmem:[#allocation2 + $0x60] sm:$0xff]
    %v686 = vld [vmem:[#allocation2 + $0x68] sm:$0xff]
    %v687 = vld [vmem:[#allocation2 + $0x70] sm:$0xff]
    %v688 = vld [vmem:[#allocation2 + $0x78] sm:$0xff]
    %v689 = vld [vmem:[%s4] sm:$0x1]
    %v691 = vlaneseq
    %v692 = vshrl.u32 %v691, 7
    %v693 = vsub.s32 0, %v692
    %v694 = vrot.slane %v689, %v693
    %696 = vmatprep.subr.mxu0 0.0
    %v697 = vand.u32 %v673, 4294901760
    %698 = vmatpush1.msra.mxu0 %v697
    %699 = vmatprep.subr.mxu0 0.0
    %v700 = vand.u32 %v674, 4294901760
    %701 = vmatpush1.msra.mxu0 %v700
    %702 = vmatprep.subr.mxu0 0.0
    %v703 = vand.u32 %v675, 4294901760
    %704 = vmatpush1.msra.mxu0 %v703
    %705 = vmatprep.subr.mxu0 0.0
    %v706 = vand.u32 %v676, 4294901760
    %707 = vmatpush1.msra.mxu0 %v706
    %708 = vmatprep.subr.mxu0 0.0
    %v709 = vand.u32 %v677, 4294901760
    %710 = vmatpush1.msra.mxu0 %v709
    %711 = vmatprep.subr.mxu0 0.0
    %v712 = vand.u32 %v678, 4294901760
    %713 = vmatpush1.msra.mxu0 %v712
    %714 = vmatprep.subr.mxu0 0.0
    %v715 = vand.u32 %v679, 4294901760
    %716 = vmatpush1.msra.mxu0 %v715
    %717 = vmatprep.subr.mxu0 0.0
    %v718 = vand.u32 %v680, 4294901760
    %719 = vmatpush1.msra.mxu0 %v718
    %720 = vmatprep.subr.mxu0 0.0
    %v721 = vand.u32 %v681, 4294901760
    %722 = vmatpush1.msra.mxu0 %v721
    %723 = vmatprep.subr.mxu0 0.0
    %v724 = vand.u32 %v682, 4294901760
    %725 = vmatpush1.msra.mxu0 %v724
    %726 = vmatprep.subr.mxu0 0.0
    %v727 = vand.u32 %v683, 4294901760
    %728 = vmatpush1.msra.mxu0 %v727
    %729 = vmatprep.subr.mxu0 0.0
    %v730 = vand.u32 %v684, 4294901760
    %731 = vmatpush1.msra.mxu0 %v730
    %732 = vmatprep.subr.mxu0 0.0
    %v733 = vand.u32 %v685, 4294901760
    %734 = vmatpush1.msra.mxu0 %v733
    %735 = vmatprep.subr.mxu0 0.0
    %v736 = vand.u32 %v686, 4294901760
    %737 = vmatpush1.msra.mxu0 %v736
    %738 = vmatprep.subr.mxu0 0.0
    %v739 = vand.u32 %v687, 4294901760
    %740 = vmatpush1.msra.mxu0 %v739
    %741 = vmatprep.subr.mxu0 0.0
    %v742 = vand.u32 %v688, 4294901760
    %743 = vmatpush1.msra.mxu0 %v742
    %744 = vmatprep.subr.mxu0 0.0
    %745 = vmatpush1.msra.mxu0 0.0
    %746 = vmatprep.subr.mxu0 0.0
    %747 = vmatpush1.msra.mxu0 0.0
    %748 = vmatprep.subr.mxu0 0.0
    %749 = vmatpush1.msra.mxu0 0.0
    %750 = vmatprep.subr.mxu0 0.0
    %751 = vmatpush1.msra.mxu0 0.0
    %752 = vmatprep.subr.mxu0 0.0
    %753 = vmatpush1.msra.mxu0 0.0
    %754 = vmatprep.subr.mxu0 0.0
    %755 = vmatpush1.msra.mxu0 0.0
    %756 = vmatprep.subr.mxu0 0.0
    %757 = vmatpush1.msra.mxu0 0.0
    %758 = vmatprep.subr.mxu0 0.0
    %759 = vmatpush1.msra.mxu0 0.0
    %760 = vmatprep.subr.mxu0 0.0
    %761 = vmatpush1.msra.mxu0 0.0
    %762 = vmatprep.subr.mxu0 0.0
    %763 = vmatpush1.msra.mxu0 0.0
    %764 = vmatprep.subr.mxu0 0.0
    %765 = vmatpush1.msra.mxu0 0.0
    %766 = vmatprep.subr.mxu0 0.0
    %767 = vmatpush1.msra.mxu0 0.0
    %768 = vmatprep.subr.mxu0 0.0
    %769 = vmatpush1.msra.mxu0 0.0
    %770 = vmatprep.subr.mxu0 0.0
    %771 = vmatpush1.msra.mxu0 0.0
    %772 = vmatprep.subr.mxu0 0.0
    %773 = vmatpush1.msra.mxu0 0.0
    %774 = vmatprep.subr.mxu0 0.0
    %775 = vmatpush1.msra.mxu0 0.0
    %776 = vmatprep.mubr.f32.mxu0 0.0
    %v777 = vand.u32 %v669, 4294901760
    %v778 = vsub.f32 %v669, %v777
    %v779 = vand.u32 %v778, 4294901760
    %v780 = vsub.f32 %v778, %v779
    %v781 = vand.u32 %v780, 4294901760
    %782 = vmatmul.mubr.f32.gmra.mrb[0].mxu0 %v781
    %v783 = vpop.f32.mrb[0].mxu0
    %v784 = vadd.f32 %v694, %v783
    %v785 = vpop.f32.mrb[0].mxu0
    %786 = vmatprep.mubr.f32.mxu0 0.0
    %v787 = vand.u32 %v670, 4294901760
    %v788 = vsub.f32 %v670, %v787
    %v789 = vand.u32 %v788, 4294901760
    %v790 = vsub.f32 %v788, %v789
    %v791 = vand.u32 %v790, 4294901760
    %792 = vmatmul.mubr.f32.gmra.mrb[0].mxu0 %v791
    %v793 = vpop.f32.mrb[0].mxu0
    %v794 = vadd.f32 %v694, %v793
    %v795 = vpop.f32.mrb[0].mxu0
    %796 = vmatprep.mubr.f32.mxu0 0.0
    %v797 = vand.u32 %v671, 4294901760
    %v798 = vsub.f32 %v671, %v797
    %v799 = vand.u32 %v798, 4294901760
    %v800 = vsub.f32 %v798, %v799
    %v801 = vand.u32 %v800, 4294901760
    %802 = vmatmul.mubr.f32.gmra.mrb[0].mxu0 %v801
    %v803 = vpop.f32.mrb[0].mxu0
    %v804 = vadd.f32 %v694, %v803
    %v805 = vpop.f32.mrb[0].mxu0
    %806 = vmatprep.mubr.f32.mxu0 0.0
    %v807 = vand.u32 %v672, 4294901760
    %v808 = vsub.f32 %v672, %v807
    %v809 = vand.u32 %v808, 4294901760
    %v810 = vsub.f32 %v808, %v809
    %v811 = vand.u32 %v810, 4294901760
    %812 = vmatmul.mubr.f32.gmra.mrb[0].mxu0 %v811
    %v813 = vpop.f32.mrb[0].mxu0
    %v814 = vadd.f32 %v694, %v813
    %v815 = vpop.f32.mrb[0].mxu0
    %816 = vdwg.mxu0
    %817 = vmatprep.subr.mxu0 0.0
    %v818 = vand.u32 %v673, 4294901760
    %v819 = vsub.f32 %v673, %v818
    %v820 = vand.u32 %v819, 4294901760
    %v821 = vsub.f32 %v819, %v820
    %v822 = vand.u32 %v821, 4294901760
    %823 = vmatpush1.msra.mxu0 %v822
    %824 = vmatprep.subr.mxu0 0.0
    %v825 = vand.u32 %v674, 4294901760
    %v826 = vsub.f32 %v674, %v825
    %v827 = vand.u32 %v826, 4294901760
    %v828 = vsub.f32 %v826, %v827
    %v829 = vand.u32 %v828, 4294901760
    %830 = vmatpush1.msra.mxu0 %v829
    %831 = vmatprep.subr.mxu0 0.0
    %v832 = vand.u32 %v675, 4294901760
    %v833 = vsub.f32 %v675, %v832
    %v834 = vand.u32 %v833, 4294901760
    %v835 = vsub.f32 %v833, %v834
    %v836 = vand.u32 %v835, 4294901760
    %837 = vmatpush1.msra.mxu0 %v836
    %838 = vmatprep.subr.mxu0 0.0
    %v839 = vand.u32 %v676, 4294901760
    %v840 = vsub.f32 %v676, %v839
    %v841 = vand.u32 %v840, 4294901760
    %v842 = vsub.f32 %v840, %v841
    %v843 = vand.u32 %v842, 4294901760
    %844 = vmatpush1.msra.mxu0 %v843
    %845 = vmatprep.subr.mxu0 0.0
    %v846 = vand.u32 %v677, 4294901760
    %v847 = vsub.f32 %v677, %v846
    %v848 = vand.u32 %v847, 4294901760
    %v849 = vsub.f32 %v847, %v848
    %v850 = vand.u32 %v849, 4294901760
    %851 = vmatpush1.msra.mxu0 %v850
    %852 = vmatprep.subr.mxu0 0.0
    %v853 = vand.u32 %v678, 4294901760
    %v854 = vsub.f32 %v678, %v853
    %v855 = vand.u32 %v854, 4294901760
    %v856 = vsub.f32 %v854, %v855
    %v857 = vand.u32 %v856, 4294901760
    %858 = vmatpush1.msra.mxu0 %v857
    %859 = vmatprep.subr.mxu0 0.0
    %v860 = vand.u32 %v679, 4294901760
    %v861 = vsub.f32 %v679, %v860
    %v862 = vand.u32 %v861, 4294901760
    %v863 = vsub.f32 %v861, %v862
    %v864 = vand.u32 %v863, 4294901760
    %865 = vmatpush1.msra.mxu0 %v864
    %866 = vmatprep.subr.mxu0 0.0
    %v867 = vand.u32 %v680, 4294901760
    %v868 = vsub.f32 %v680, %v867
    %v869 = vand.u32 %v868, 4294901760
    %v870 = vsub.f32 %v868, %v869
    %v871 = vand.u32 %v870, 4294901760
    %872 = vmatpush1.msra.mxu0 %v871
    %873 = vmatprep.subr.mxu0 0.0
    %v874 = vand.u32 %v681, 4294901760
    %v875 = vsub.f32 %v681, %v874
    %v876 = vand.u32 %v875, 4294901760
    %v877 = vsub.f32 %v875, %v876
    %v878 = vand.u32 %v877, 4294901760
    %879 = vmatpush1.msra.mxu0 %v878
    %880 = vmatprep.subr.mxu0 0.0
    %v881 = vand.u32 %v682, 4294901760
    %v882 = vsub.f32 %v682, %v881
    %v883 = vand.u32 %v882, 4294901760
    %v884 = vsub.f32 %v882, %v883
    %v885 = vand.u32 %v884, 4294901760
    %886 = vmatpush1.msra.mxu0 %v885
    %887 = vmatprep.subr.mxu0 0.0
    %v888 = vand.u32 %v683, 4294901760
    %v889 = vsub.f32 %v683, %v888
    %v890 = vand.u32 %v889, 4294901760
    %v891 = vsub.f32 %v889, %v890
    %v892 = vand.u32 %v891, 4294901760
    %893 = vmatpush1.msra.mxu0 %v892
    %894 = vmatprep.subr.mxu0 0.0
    %v895 = vand.u32 %v684, 4294901760
    %v896 = vsub.f32 %v684, %v895
    %v897 = vand.u32 %v896, 4294901760
    %v898 = vsub.f32 %v896, %v897
    %v899 = vand.u32 %v898, 4294901760
    %900 = vmatpush1.msra.mxu0 %v899
    %901 = vmatprep.subr.mxu0 0.0
    %v902 = vand.u32 %v685, 4294901760
    %v903 = vsub.f32 %v685, %v902
    %v904 = vand.u32 %v903, 4294901760
    %v905 = vsub.f32 %v903, %v904
    %v906 = vand.u32 %v905, 4294901760
    %907 = vmatpush1.msra.mxu0 %v906
    %908 = vmatprep.subr.mxu0 0.0
    %v909 = vand.u32 %v686, 4294901760
    %v910 = vsub.f32 %v686, %v909
    %v911 = vand.u32 %v910, 4294901760
    %v912 = vsub.f32 %v910, %v911
    %v913 = vand.u32 %v912, 4294901760
    %914 = vmatpush1.msra.mxu0 %v913
    %915 = vmatprep.subr.mxu0 0.0
    %v916 = vand.u32 %v687, 4294901760
    %v917 = vsub.f32 %v687, %v916
    %v918 = vand.u32 %v917, 4294901760
    %v919 = vsub.f32 %v917, %v918
    %v920 = vand.u32 %v919, 4294901760
    %921 = vmatpush1.msra.mxu0 %v920
    %922 = vmatprep.subr.mxu0 0.0
    %v923 = vand.u32 %v688, 4294901760
    %v924 = vsub.f32 %v688, %v923
    %v925 = vand.u32 %v924, 4294901760
    %v926 = vsub.f32 %v924, %v925
    %v927 = vand.u32 %v926, 4294901760
    %928 = vmatpush1.msra.mxu0 %v927
    %929 = vmatprep.subr.mxu0 0.0
    %930 = vmatpush1.msra.mxu0 0.0
    %931 = vmatprep.subr.mxu0 0.0
    %932 = vmatpush1.msra.mxu0 0.0
    %933 = vmatprep.subr.mxu0 0.0
    %934 = vmatpush1.msra.mxu0 0.0
    %935 = vmatprep.subr.mxu0 0.0
    %936 = vmatpush1.msra.mxu0 0.0
    %937 = vmatprep.subr.mxu0 0.0
    %938 = vmatpush1.msra.mxu0 0.0
    %939 = vmatprep.subr.mxu0 0.0
    %940 = vmatpush1.msra.mxu0 0.0
    %941 = vmatprep.subr.mxu0 0.0
    %942 = vmatpush1.msra.mxu0 0.0
    %943 = vmatprep.subr.mxu0 0.0
    %944 = vmatpush1.msra.mxu0 0.0
    %945 = vmatprep.subr.mxu0 0.0
    %946 = vmatpush1.msra.mxu0 0.0
    %947 = vmatprep.subr.mxu0 0.0
    %948 = vmatpush1.msra.mxu0 0.0
    %949 = vmatprep.subr.mxu0 0.0
    %950 = vmatpush1.msra.mxu0 0.0
    %951 = vmatprep.subr.mxu0 0.0
    %952 = vmatpush1.msra.mxu0 0.0
    %953 = vmatprep.subr.mxu0 0.0
    %954 = vmatpush1.msra.mxu0 0.0
    %955 = vmatprep.subr.mxu0 0.0
    %956 = vmatpush1.msra.mxu0 0.0
    %957 = vmatprep.subr.mxu0 0.0
    %958 = vmatpush1.msra.mxu0 0.0
    %959 = vmatprep.subr.mxu0 0.0
    %960 = vmatpush1.msra.mxu0 0.0
    %961 = vmatprep.mubr.f32.mxu0 0.0
    %v962 = vand.u32 %v669, 4294901760
    %963 = vmatmul.mubr.f32.gmra.mrb[0].mxu0 %v962
    %v964 = vpop.f32.mrb[0].mxu0
    %v965 = vadd.f32 %v784, %v964
    %v966 = vpop.f32.mrb[0].mxu0
    %967 = vmatprep.mubr.f32.mxu0 0.0
    %v968 = vand.u32 %v670, 4294901760
    %969 = vmatmul.mubr.f32.gmra.mrb[0].mxu0 %v968
    %v970 = vpop.f32.mrb[0].mxu0
    %v971 = vadd.f32 %v794, %v970
    %v972 = vpop.f32.mrb[0].mxu0
    %973 = vmatprep.mubr.f32.mxu0 0.0
    %v974 = vand.u32 %v671, 4294901760
    %975 = vmatmul.mubr.f32.gmra.mrb[0].mxu0 %v974
    %v976 = vpop.f32.mrb[0].mxu0
    %v977 = vadd.f32 %v804, %v976
    %v978 = vpop.f32.mrb[0].mxu0
    %979 = vmatprep.mubr.f32.mxu0 0.0
    %v980 = vand.u32 %v672, 4294901760
    %981 = vmatmul.mubr.f32.gmra.mrb[0].mxu0 %v980
    %v982 = vpop.f32.mrb[0].mxu0
    %v983 = vadd.f32 %v814, %v982
    %v984 = vpop.f32.mrb[0].mxu0
    %985 = vdwg.mxu0
    %986 = vmatprep.subr.mxu0 0.0
    %v987 = vand.u32 %v673, 4294901760
    %v988 = vsub.f32 %v673, %v987
    %989 = vmatpush1.msra.mxu0 %v988
    %990 = vmatprep.subr.mxu0 0.0
    %v991 = vand.u32 %v674, 4294901760
    %v992 = vsub.f32 %v674, %v991
    %993 = vmatpush1.msra.mxu0 %v992
    %994 = vmatprep.subr.mxu0 0.0
    %v995 = vand.u32 %v675, 4294901760
    %v996 = vsub.f32 %v675, %v995
    %997 = vmatpush1.msra.mxu0 %v996
    %998 = vmatprep.subr.mxu0 0.0
    %v999 = vand.u32 %v676, 4294901760
    %v1000 = vsub.f32 %v676, %v999
    %1001 = vmatpush1.msra.mxu0 %v1000
    %1002 = vmatprep.subr.mxu0 0.0
    %v1003 = vand.u32 %v677, 4294901760
    %v1004 = vsub.f32 %v677, %v1003
    %1005 = vmatpush1.msra.mxu0 %v1004
    %1006 = vmatprep.subr.mxu0 0.0
    %v1007 = vand.u32 %v678, 4294901760
    %v1008 = vsub.f32 %v678, %v1007
    %1009 = vmatpush1.msra.mxu0 %v1008
    %1010 = vmatprep.subr.mxu0 0.0
    %v1011 = vand.u32 %v679, 4294901760
    %v1012 = vsub.f32 %v679, %v1011
    %1013 = vmatpush1.msra.mxu0 %v1012
    %1014 = vmatprep.subr.mxu0 0.0
    %v1015 = vand.u32 %v680, 4294901760
    %v1016 = vsub.f32 %v680, %v1015
    %1017 = vmatpush1.msra.mxu0 %v1016
    %1018 = vmatprep.subr.mxu0 0.0
    %v1019 = vand.u32 %v681, 4294901760
    %v1020 = vsub.f32 %v681, %v1019
    %1021 = vmatpush1.msra.mxu0 %v1020
    %1022 = vmatprep.subr.mxu0 0.0
    %v1023 = vand.u32 %v682, 4294901760
    %v1024 = vsub.f32 %v682, %v1023
    %1025 = vmatpush1.msra.mxu0 %v1024
    %1026 = vmatprep.subr.mxu0 0.0
    %v1027 = vand.u32 %v683, 4294901760
    %v1028 = vsub.f32 %v683, %v1027
    %1029 = vmatpush1.msra.mxu0 %v1028
    %1030 = vmatprep.subr.mxu0 0.0
    %v1031 = vand.u32 %v684, 4294901760
    %v1032 = vsub.f32 %v684, %v1031
    %1033 = vmatpush1.msra.mxu0 %v1032
    %1034 = vmatprep.subr.mxu0 0.0
    %v1035 = vand.u32 %v685, 4294901760
    %v1036 = vsub.f32 %v685, %v1035
    %1037 = vmatpush1.msra.mxu0 %v1036
    %1038 = vmatprep.subr.mxu0 0.0
    %v1039 = vand.u32 %v686, 4294901760
    %v1040 = vsub.f32 %v686, %v1039
    %1041 = vmatpush1.msra.mxu0 %v1040
    %1042 = vmatprep.subr.mxu0 0.0
    %v1043 = vand.u32 %v687, 4294901760
    %v1044 = vsub.f32 %v687, %v1043
    %1045 = vmatpush1.msra.mxu0 %v1044
    %1046 = vmatprep.subr.mxu0 0.0
    %v1047 = vand.u32 %v688, 4294901760
    %v1048 = vsub.f32 %v688, %v1047
    %1049 = vmatpush1.msra.mxu0 %v1048
    %1050 = vmatprep.subr.mxu0 0.0
    %1051 = vmatpush1.msra.mxu0 0.0
    %1052 = vmatprep.subr.mxu0 0.0
    %1053 = vmatpush1.msra.mxu0 0.0
    %1054 = vmatprep.subr.mxu0 0.0
    %1055 = vmatpush1.msra.mxu0 0.0
    %1056 = vmatprep.subr.mxu0 0.0
    %1057 = vmatpush1.msra.mxu0 0.0
    %1058 = vmatprep.subr.mxu0 0.0
    %1059 = vmatpush1.msra.mxu0 0.0
    %1060 = vmatprep.subr.mxu0 0.0
    %1061 = vmatpush1.msra.mxu0 0.0
    %1062 = vmatprep.subr.mxu0 0.0
    %1063 = vmatpush1.msra.mxu0 0.0
    %1064 = vmatprep.subr.mxu0 0.0
    %1065 = vmatpush1.msra.mxu0 0.0
    %1066 = vmatprep.subr.mxu0 0.0
    %1067 = vmatpush1.msra.mxu0 0.0
    %1068 = vmatprep.subr.mxu0 0.0
    %1069 = vmatpush1.msra.mxu0 0.0
    %1070 = vmatprep.subr.mxu0 0.0
    %1071 = vmatpush1.msra.mxu0 0.0
    %1072 = vmatprep.subr.mxu0 0.0
    %1073 = vmatpush1.msra.mxu0 0.0
    %1074 = vmatprep.subr.mxu0 0.0
    %1075 = vmatpush1.msra.mxu0 0.0
    %1076 = vmatprep.subr.mxu0 0.0
    %1077 = vmatpush1.msra.mxu0 0.0
    %1078 = vmatprep.subr.mxu0 0.0
    %1079 = vmatpush1.msra.mxu0 0.0
    %1080 = vmatprep.subr.mxu0 0.0
    %1081 = vmatpush1.msra.mxu0 0.0
    %1082 = vmatprep.mubr.f32.mxu0 0.0
    %v1083 = vand.u32 %v669, 4294901760
    %v1084 = vsub.f32 %v669, %v1083
    %1085 = vmatmul.mubr.f32.gmra.mrb[0].mxu0 %v1084
    %v1086 = vpop.f32.mrb[0].mxu0
    %v1087 = vadd.f32 %v965, %v1086
    %v1088 = vpop.f32.mrb[0].mxu0
    %1089 = vmatprep.mubr.f32.mxu0 0.0
    %v1090 = vand.u32 %v670, 4294901760
    %v1091 = vsub.f32 %v670, %v1090
    %1092 = vmatmul.mubr.f32.gmra.mrb[0].mxu0 %v1091
    %v1093 = vpop.f32.mrb[0].mxu0
    %v1094 = vadd.f32 %v971, %v1093
    %v1095 = vpop.f32.mrb[0].mxu0
    %1096 = vmatprep.mubr.f32.mxu0 0.0
    %v1097 = vand.u32 %v671, 4294901760
    %v1098 = vsub.f32 %v671, %v1097
    %1099 = vmatmul.mubr.f32.gmra.mrb[0].mxu0 %v1098
    %v1100 = vpop.f32.mrb[0].mxu0
    %v1101 = vadd.f32 %v977, %v1100
    %v1102 = vpop.f32.mrb[0].mxu0
    %1103 = vmatprep.mubr.f32.mxu0 0.0
    %v1104 = vand.u32 %v672, 4294901760
    %v1105 = vsub.f32 %v672, %v1104
    %1106 = vmatmul.mubr.f32.gmra.mrb[0].mxu0 %v1105
    %v1107 = vpop.f32.mrb[0].mxu0
    %v1108 = vadd.f32 %v983, %v1107
    %v1109 = vpop.f32.mrb[0].mxu0
    %1110 = vdwg.mxu0
    %1111 = vmatprep.subr.mxu0 0.0
    %v1112 = vand.u32 %v673, 4294901760
    %1113 = vmatpush1.msra.mxu0 %v1112
    %1114 = vmatprep.subr.mxu0 0.0
    %v1115 = vand.u32 %v674, 4294901760
    %1116 = vmatpush1.msra.mxu0 %v1115
    %1117 = vmatprep.subr.mxu0 0.0
    %v1118 = vand.u32 %v675, 4294901760
    %1119 = vmatpush1.msra.mxu0 %v1118
    %1120 = vmatprep.subr.mxu0 0.0
    %v1121 = vand.u32 %v676, 4294901760
    %1122 = vmatpush1.msra.mxu0 %v1121
    %1123 = vmatprep.subr.mxu0 0.0
    %v1124 = vand.u32 %v677, 4294901760
    %1125 = vmatpush1.msra.mxu0 %v1124
    %1126 = vmatprep.subr.mxu0 0.0
    %v1127 = vand.u32 %v678, 4294901760
    %1128 = vmatpush1.msra.mxu0 %v1127
    %1129 = vmatprep.subr.mxu0 0.0
    %v1130 = vand.u32 %v679, 4294901760
    %1131 = vmatpush1.msra.mxu0 %v1130
    %1132 = vmatprep.subr.mxu0 0.0
    %v1133 = vand.u32 %v680, 4294901760
    %1134 = vmatpush1.msra.mxu0 %v1133
    %1135 = vmatprep.subr.mxu0 0.0
    %v1136 = vand.u32 %v681, 4294901760
    %1137 = vmatpush1.msra.mxu0 %v1136
    %1138 = vmatprep.subr.mxu0 0.0
    %v1139 = vand.u32 %v682, 4294901760
    %1140 = vmatpush1.msra.mxu0 %v1139
    %1141 = vmatprep.subr.mxu0 0.0
    %v1142 = vand.u32 %v683, 4294901760
    %1143 = vmatpush1.msra.mxu0 %v1142
    %1144 = vmatprep.subr.mxu0 0.0
    %v1145 = vand.u32 %v684, 4294901760
    %1146 = vmatpush1.msra.mxu0 %v1145
    %1147 = vmatprep.subr.mxu0 0.0
    %v1148 = vand.u32 %v685, 4294901760
    %1149 = vmatpush1.msra.mxu0 %v1148
    %1150 = vmatprep.subr.mxu0 0.0
    %v1151 = vand.u32 %v686, 4294901760
    %1152 = vmatpush1.msra.mxu0 %v1151
    %1153 = vmatprep.subr.mxu0 0.0
    %v1154 = vand.u32 %v687, 4294901760
    %1155 = vmatpush1.msra.mxu0 %v1154
    %1156 = vmatprep.subr.mxu0 0.0
    %v1157 = vand.u32 %v688, 4294901760
    %1158 = vmatpush1.msra.mxu0 %v1157
    %1159 = vmatprep.subr.mxu0 0.0
    %1160 = vmatpush1.msra.mxu0 0.0
    %1161 = vmatprep.subr.mxu0 0.0
    %1162 = vmatpush1.msra.mxu0 0.0
    %1163 = vmatprep.subr.mxu0 0.0
    %1164 = vmatpush1.msra.mxu0 0.0
    %1165 = vmatprep.subr.mxu0 0.0
    %1166 = vmatpush1.msra.mxu0 0.0
    %1167 = vmatprep.subr.mxu0 0.0
    %1168 = vmatpush1.msra.mxu0 0.0
    %1169 = vmatprep.subr.mxu0 0.0
    %1170 = vmatpush1.msra.mxu0 0.0
    %1171 = vmatprep.subr.mxu0 0.0
    %1172 = vmatpush1.msra.mxu0 0.0
    %1173 = vmatprep.subr.mxu0 0.0
    %1174 = vmatpush1.msra.mxu0 0.0
    %1175 = vmatprep.subr.mxu0 0.0
    %1176 = vmatpush1.msra.mxu0 0.0
    %1177 = vmatprep.subr.mxu0 0.0
    %1178 = vmatpush1.msra.mxu0 0.0
    %1179 = vmatprep.subr.mxu0 0.0
    %1180 = vmatpush1.msra.mxu0 0.0
    %1181 = vmatprep.subr.mxu0 0.0
    %1182 = vmatpush1.msra.mxu0 0.0
    %1183 = vmatprep.subr.mxu0 0.0
    %1184 = vmatpush1.msra.mxu0 0.0
    %1185 = vmatprep.subr.mxu0 0.0
    %1186 = vmatpush1.msra.mxu0 0.0
    %1187 = vmatprep.subr.mxu0 0.0
    %1188 = vmatpush1.msra.mxu0 0.0
    %1189 = vmatprep.subr.mxu0 0.0
    %1190 = vmatpush1.msra.mxu0 0.0
    %1191 = vmatprep.mubr.f32.mxu0 0.0
    %v1192 = vand.u32 %v669, 4294901760
    %v1193 = vsub.f32 %v669, %v1192
    %v1194 = vand.u32 %v1193, 4294901760
    %1195 = vmatmul.mubr.f32.gmra.mrb[0].mxu0 %v1194
    %v1196 = vpop.f32.mrb[0].mxu0
    %v1197 = vadd.f32 %v1087, %v1196
    %v1198 = vpop.f32.mrb[0].mxu0
    %1199 = vmatprep.mubr.f32.mxu0 0.0
    %v1200 = vand.u32 %v670, 4294901760
    %v1201 = vsub.f32 %v670, %v1200
    %v1202 = vand.u32 %v1201, 4294901760
    %1203 = vmatmul.mubr.f32.gmra.mrb[0].mxu0 %v1202
    %v1204 = vpop.f32.mrb[0].mxu0
    %v1205 = vadd.f32 %v1094, %v1204
    %v1206 = vpop.f32.mrb[0].mxu0
    %1207 = vmatprep.mubr.f32.mxu0 0.0
    %v1208 = vand.u32 %v671, 4294901760
    %v1209 = vsub.f32 %v671, %v1208
    %v1210 = vand.u32 %v1209, 4294901760
    %1211 = vmatmul.mubr.f32.gmra.mrb[0].mxu0 %v1210
    %v1212 = vpop.f32.mrb[0].mxu0
    %v1213 = vadd.f32 %v1101, %v1212
    %v1214 = vpop.f32.mrb[0].mxu0
    %1215 = vmatprep.mubr.f32.mxu0 0.0
    %v1216 = vand.u32 %v672, 4294901760
    %v1217 = vsub.f32 %v672, %v1216
    %v1218 = vand.u32 %v1217, 4294901760
    %1219 = vmatmul.mubr.f32.gmra.mrb[0].mxu0 %v1218
    %v1220 = vpop.f32.mrb[0].mxu0
    %v1221 = vadd.f32 %v1108, %v1220
    %v1222 = vpop.f32.mrb[0].mxu0
    %1223 = vdwg.mxu0
    %1224 = vmatprep.subr.mxu0 0.0
    %v1225 = vand.u32 %v673, 4294901760
    %v1226 = vsub.f32 %v673, %v1225
    %v1227 = vand.u32 %v1226, 4294901760
    %1228 = vmatpush1.msra.mxu0 %v1227
    %1229 = vmatprep.subr.mxu0 0.0
    %v1230 = vand.u32 %v674, 4294901760
    %v1231 = vsub.f32 %v674, %v1230
    %v1232 = vand.u32 %v1231, 4294901760
    %1233 = vmatpush1.msra.mxu0 %v1232
    %1234 = vmatprep.subr.mxu0 0.0
    %v1235 = vand.u32 %v675, 4294901760
    %v1236 = vsub.f32 %v675, %v1235
    %v1237 = vand.u32 %v1236, 4294901760
    %1238 = vmatpush1.msra.mxu0 %v1237
    %1239 = vmatprep.subr.mxu0 0.0
    %v1240 = vand.u32 %v676, 4294901760
    %v1241 = vsub.f32 %v676, %v1240
    %v1242 = vand.u32 %v1241, 4294901760
    %1243 = vmatpush1.msra.mxu0 %v1242
    %1244 = vmatprep.subr.mxu0 0.0
    %v1245 = vand.u32 %v677, 4294901760
    %v1246 = vsub.f32 %v677, %v1245
    %v1247 = vand.u32 %v1246, 4294901760
    %1248 = vmatpush1.msra.mxu0 %v1247
    %1249 = vmatprep.subr.mxu0 0.0
    %v1250 = vand.u32 %v678, 4294901760
    %v1251 = vsub.f32 %v678, %v1250
    %v1252 = vand.u32 %v1251, 4294901760
    %1253 = vmatpush1.msra.mxu0 %v1252
    %1254 = vmatprep.subr.mxu0 0.0
    %v1255 = vand.u32 %v679, 4294901760
    %v1256 = vsub.f32 %v679, %v1255
    %v1257 = vand.u32 %v1256, 4294901760
    %1258 = vmatpush1.msra.mxu0 %v1257
    %1259 = vmatprep.subr.mxu0 0.0
    %v1260 = vand.u32 %v680, 4294901760
    %v1261 = vsub.f32 %v680, %v1260
    %v1262 = vand.u32 %v1261, 4294901760
    %1263 = vmatpush1.msra.mxu0 %v1262
    %1264 = vmatprep.subr.mxu0 0.0
    %v1265 = vand.u32 %v681, 4294901760
    %v1266 = vsub.f32 %v681, %v1265
    %v1267 = vand.u32 %v1266, 4294901760
    %1268 = vmatpush1.msra.mxu0 %v1267
    %1269 = vmatprep.subr.mxu0 0.0
    %v1270 = vand.u32 %v682, 4294901760
    %v1271 = vsub.f32 %v682, %v1270
    %v1272 = vand.u32 %v1271, 4294901760
    %1273 = vmatpush1.msra.mxu0 %v1272
    %1274 = vmatprep.subr.mxu0 0.0
    %v1275 = vand.u32 %v683, 4294901760
    %v1276 = vsub.f32 %v683, %v1275
    %v1277 = vand.u32 %v1276, 4294901760
    %1278 = vmatpush1.msra.mxu0 %v1277
    %1279 = vmatprep.subr.mxu0 0.0
    %v1280 = vand.u32 %v684, 4294901760
    %v1281 = vsub.f32 %v684, %v1280
    %v1282 = vand.u32 %v1281, 4294901760
    %1283 = vmatpush1.msra.mxu0 %v1282
    %1284 = vmatprep.subr.mxu0 0.0
    %v1285 = vand.u32 %v685, 4294901760
    %v1286 = vsub.f32 %v685, %v1285
    %v1287 = vand.u32 %v1286, 4294901760
    %1288 = vmatpush1.msra.mxu0 %v1287
    %1289 = vmatprep.subr.mxu0 0.0
    %v1290 = vand.u32 %v686, 4294901760
    %v1291 = vsub.f32 %v686, %v1290
    %v1292 = vand.u32 %v1291, 4294901760
    %1293 = vmatpush1.msra.mxu0 %v1292
    %1294 = vmatprep.subr.mxu0 0.0
    %v1295 = vand.u32 %v687, 4294901760
    %v1296 = vsub.f32 %v687, %v1295
    %v1297 = vand.u32 %v1296, 4294901760
    %1298 = vmatpush1.msra.mxu0 %v1297
    %1299 = vmatprep.subr.mxu0 0.0
    %v1300 = vand.u32 %v688, 4294901760
    %v1301 = vsub.f32 %v688, %v1300
    %v1302 = vand.u32 %v1301, 4294901760
    %1303 = vmatpush1.msra.mxu0 %v1302
    %1304 = vmatprep.subr.mxu0 0.0
    %1305 = vmatpush1.msra.mxu0 0.0
    %1306 = vmatprep.subr.mxu0 0.0
    %1307 = vmatpush1.msra.mxu0 0.0
    %1308 = vmatprep.subr.mxu0 0.0
    %1309 = vmatpush1.msra.mxu0 0.0
    %1310 = vmatprep.subr.mxu0 0.0
    %1311 = vmatpush1.msra.mxu0 0.0
    %1312 = vmatprep.subr.mxu0 0.0
    %1313 = vmatpush1.msra.mxu0 0.0
    %1314 = vmatprep.subr.mxu0 0.0
    %1315 = vmatpush1.msra.mxu0 0.0
    %1316 = vmatprep.subr.mxu0 0.0
    %1317 = vmatpush1.msra.mxu0 0.0
    %1318 = vmatprep.subr.mxu0 0.0
    %1319 = vmatpush1.msra.mxu0 0.0
    %1320 = vmatprep.subr.mxu0 0.0
    %1321 = vmatpush1.msra.mxu0 0.0
    %1322 = vmatprep.subr.mxu0 0.0
    %1323 = vmatpush1.msra.mxu0 0.0
    %1324 = vmatprep.subr.mxu0 0.0
    %1325 = vmatpush1.msra.mxu0 0.0
    %1326 = vmatprep.subr.mxu0 0.0
    %1327 = vmatpush1.msra.mxu0 0.0
    %1328 = vmatprep.subr.mxu0 0.0
    %1329 = vmatpush1.msra.mxu0 0.0
    %1330 = vmatprep.subr.mxu0 0.0
    %1331 = vmatpush1.msra.mxu0 0.0
    %1332 = vmatprep.subr.mxu0 0.0
    %1333 = vmatpush1.msra.mxu0 0.0
    %1334 = vmatprep.subr.mxu0 0.0
    %1335 = vmatpush1.msra.mxu0 0.0
    %1336 = vmatprep.mubr.f32.mxu0 0.0
    %v1337 = vand.u32 %v669, 4294901760
    %1338 = vmatmul.mubr.f32.gmra.mrb[0].mxu0 %v1337
    %v1339 = vpop.f32.mrb[0].mxu0
    %v1340 = vadd.f32 %v1197, %v1339
    %v1341 = vpop.f32.mrb[0].mxu0
    %1342 = vmatprep.mubr.f32.mxu0 0.0
    %v1343 = vand.u32 %v670, 4294901760
    %1344 = vmatmul.mubr.f32.gmra.mrb[0].mxu0 %v1343
    %v1345 = vpop.f32.mrb[0].mxu0
    %v1346 = vadd.f32 %v1205, %v1345
    %v1347 = vpop.f32.mrb[0].mxu0
    %1348 = vmatprep.mubr.f32.mxu0 0.0
    %v1349 = vand.u32 %v671, 4294901760
    %1350 = vmatmul.mubr.f32.gmra.mrb[0].mxu0 %v1349
    %v1351 = vpop.f32.mrb[0].mxu0
    %v1352 = vadd.f32 %v1213, %v1351
    %v1353 = vpop.f32.mrb[0].mxu0
    %1354 = vmatprep.mubr.f32.mxu0 0.0
    %v1355 = vand.u32 %v672, 4294901760
    %1356 = vmatmul.mubr.f32.gmra.mrb[0].mxu0 %v1355
    %v1357 = vpop.f32.mrb[0].mxu0
    %v1358 = vadd.f32 %v1221, %v1357
    %v1359 = vpop.f32.mrb[0].mxu0
    %1360 = vdwg.mxu0
    %1361 = vmatprep.subr.mxu0 0.0
    %v1362 = vand.u32 %v673, 4294901760
    %1363 = vmatpush1.msra.mxu0 %v1362
    %1364 = vmatprep.subr.mxu0 0.0
    %v1365 = vand.u32 %v674, 4294901760
    %1366 = vmatpush1.msra.mxu0 %v1365
    %1367 = vmatprep.subr.mxu0 0.0
    %v1368 = vand.u32 %v675, 4294901760
    %1369 = vmatpush1.msra.mxu0 %v1368
    %1370 = vmatprep.subr.mxu0 0.0
    %v1371 = vand.u32 %v676, 4294901760
    %1372 = vmatpush1.msra.mxu0 %v1371
    %1373 = vmatprep.subr.mxu0 0.0
    %v1374 = vand.u32 %v677, 4294901760
    %1375 = vmatpush1.msra.mxu0 %v1374
    %1376 = vmatprep.subr.mxu0 0.0
    %v1377 = vand.u32 %v678, 4294901760
    %1378 = vmatpush1.msra.mxu0 %v1377
    %1379 = vmatprep.subr.mxu0 0.0
    %v1380 = vand.u32 %v679, 4294901760
    %1381 = vmatpush1.msra.mxu0 %v1380
    %1382 = vmatprep.subr.mxu0 0.0
    %v1383 = vand.u32 %v680, 4294901760
    %1384 = vmatpush1.msra.mxu0 %v1383
    %1385 = vmatprep.subr.mxu0 0.0
    %v1386 = vand.u32 %v681, 4294901760
    %1387 = vmatpush1.msra.mxu0 %v1386
    %1388 = vmatprep.subr.mxu0 0.0
    %v1389 = vand.u32 %v682, 4294901760
    %1390 = vmatpush1.msra.mxu0 %v1389
    %1391 = vmatprep.subr.mxu0 0.0
    %v1392 = vand.u32 %v683, 4294901760
    %1393 = vmatpush1.msra.mxu0 %v1392
    %1394 = vmatprep.subr.mxu0 0.0
    %v1395 = vand.u32 %v684, 4294901760
    %1396 = vmatpush1.msra.mxu0 %v1395
    %1397 = vmatprep.subr.mxu0 0.0
    %v1398 = vand.u32 %v685, 4294901760
    %1399 = vmatpush1.msra.mxu0 %v1398
    %1400 = vmatprep.subr.mxu0 0.0
    %v1401 = vand.u32 %v686, 4294901760
    %1402 = vmatpush1.msra.mxu0 %v1401
    %1403 = vmatprep.subr.mxu0 0.0
    %v1404 = vand.u32 %v687, 4294901760
    %1405 = vmatpush1.msra.mxu0 %v1404
    %1406 = vmatprep.subr.mxu0 0.0
    %v1407 = vand.u32 %v688, 4294901760
    %1408 = vmatpush1.msra.mxu0 %v1407
    %1409 = vmatprep.subr.mxu0 0.0
    %1410 = vmatpush1.msra.mxu0 0.0
    %1411 = vmatprep.subr.mxu0 0.0
    %1412 = vmatpush1.msra.mxu0 0.0
    %1413 = vmatprep.subr.mxu0 0.0
    %1414 = vmatpush1.msra.mxu0 0.0
    %1415 = vmatprep.subr.mxu0 0.0
    %1416 = vmatpush1.msra.mxu0 0.0
    %1417 = vmatprep.subr.mxu0 0.0
    %1418 = vmatpush1.msra.mxu0 0.0
    %1419 = vmatprep.subr.mxu0 0.0
    %1420 = vmatpush1.msra.mxu0 0.0
    %1421 = vmatprep.subr.mxu0 0.0
    %1422 = vmatpush1.msra.mxu0 0.0
    %1423 = vmatprep.subr.mxu0 0.0
    %1424 = vmatpush1.msra.mxu0 0.0
    %1425 = vmatprep.subr.mxu0 0.0
    %1426 = vmatpush1.msra.mxu0 0.0
    %1427 = vmatprep.subr.mxu0 0.0
    %1428 = vmatpush1.msra.mxu0 0.0
    %1429 = vmatprep.subr.mxu0 0.0
    %1430 = vmatpush1.msra.mxu0 0.0
    %1431 = vmatprep.subr.mxu0 0.0
    %1432 = vmatpush1.msra.mxu0 0.0
    %1433 = vmatprep.subr.mxu0 0.0
    %1434 = vmatpush1.msra.mxu0 0.0
    %1435 = vmatprep.subr.mxu0 0.0
    %1436 = vmatpush1.msra.mxu0 0.0
    %1437 = vmatprep.subr.mxu0 0.0
    %1438 = vmatpush1.msra.mxu0 0.0
    %1439 = vmatprep.subr.mxu0 0.0
    %1440 = vmatpush1.msra.mxu0 0.0
    %1441 = vmatprep.mubr.f32.mxu0 0.0
    %v1442 = vand.u32 %v669, 4294901760
    %1443 = vmatmul.mubr.f32.gmra.mrb[0].mxu0 %v1442
    %v1444 = vpop.f32.mrb[0].mxu0
    %v1445 = vadd.f32 %v1340, %v1444
    %v1446 = vpop.f32.mrb[0].mxu0
    %1447 = vmatprep.mubr.f32.mxu0 0.0
    %v1448 = vand.u32 %v670, 4294901760
    %1449 = vmatmul.mubr.f32.gmra.mrb[0].mxu0 %v1448
    %v1450 = vpop.f32.mrb[0].mxu0
    %v1451 = vadd.f32 %v1346, %v1450
    %v1452 = vpop.f32.mrb[0].mxu0
    %1453 = vmatprep.mubr.f32.mxu0 0.0
    %v1454 = vand.u32 %v671, 4294901760
    %1455 = vmatmul.mubr.f32.gmra.mrb[0].mxu0 %v1454
    %v1456 = vpop.f32.mrb[0].mxu0
    %v1457 = vadd.f32 %v1352, %v1456
    %v1458 = vpop.f32.mrb[0].mxu0
    %1459 = vmatprep.mubr.f32.mxu0 0.0
    %v1460 = vand.u32 %v672, 4294901760
    %1461 = vmatmul.mubr.f32.gmra.mrb[0].mxu0 %v1460
    %v1462 = vpop.f32.mrb[0].mxu0
    %v1463 = vadd.f32 %v1358, %v1462
    %v1464 = vpop.f32.mrb[0].mxu0
    %1465 = vdwg.mxu0
    %v1466 = vmax.f32 %v1445, 0.0
    %v1467 = vmax.f32 %v1451, 0.0
    %v1468 = vmax.f32 %v1457, 0.0
    %v1469 = vmax.f32 %v1463, 0.0
    %v1470 = vld [vmem:[#allocation5] sm:$0xff]
    %v1471 = vld [vmem:[#allocation5 + $0x8] sm:$0xff]
    %v1472 = vld [vmem:[#allocation5 + $0x10] sm:$0xff]
    %v1473 = vld [vmem:[#allocation5 + $0x18] sm:$0xff]
    %v1474 = vld [vmem:[#allocation5 + $0x20] sm:$0xff]
    %v1475 = vld [vmem:[#allocation5 + $0x28] sm:$0xff]
    %v1476 = vld [vmem:[#allocation5 + $0x30] sm:$0xff]
    %v1477 = vld [vmem:[#allocation5 + $0x38] sm:$0xff]
    %v1478 = vld [vmem:[#allocation5 + $0x40] sm:$0xff]
    %v1479 = vld [vmem:[#allocation5 + $0x48] sm:$0xff]
    %v1480 = vld [vmem:[#allocation5 + $0x50] sm:$0xff]
    %v1481 = vld [vmem:[#allocation5 + $0x58] sm:$0xff]
    %v1482 = vld [vmem:[#allocation5 + $0x60] sm:$0xff]
    %v1483 = vld [vmem:[#allocation5 + $0x68] sm:$0xff]
    %v1484 = vld [vmem:[#allocation5 + $0x70] sm:$0xff]
    %v1485 = vld [vmem:[#allocation5 + $0x78] sm:$0xff]
    %v1486 = vld [vmem:[%s6] sm:$0x1]
    %v1488 = vlaneseq
    %v1489 = vshrl.u32 %v1488, 7
    %v1490 = vsub.s32 0, %v1489
    %v1491 = vrot.slane %v1486, %v1490
    %1493 = vmatprep.subr.mxu0 0.0
    %v1494 = vand.u32 %v1470, 4294901760
    %1495 = vmatpush1.msra.mxu0 %v1494
    %1496 = vmatprep.subr.mxu0 0.0
    %v1497 = vand.u32 %v1471, 4294901760
    %1498 = vmatpush1.msra.mxu0 %v1497
    %1499 = vmatprep.subr.mxu0 0.0
    %v1500 = vand.u32 %v1472, 4294901760
    %1501 = vmatpush1.msra.mxu0 %v1500
    %1502 = vmatprep.subr.mxu0 0.0
    %v1503 = vand.u32 %v1473, 4294901760
    %1504 = vmatpush1.msra.mxu0 %v1503
    %1505 = vmatprep.subr.mxu0 0.0
    %v1506 = vand.u32 %v1474, 4294901760
    %1507 = vmatpush1.msra.mxu0 %v1506
    %1508 = vmatprep.subr.mxu0 0.0
    %v1509 = vand.u32 %v1475, 4294901760
    %1510 = vmatpush1.msra.mxu0 %v1509
    %1511 = vmatprep.subr.mxu0 0.0
    %v1512 = vand.u32 %v1476, 4294901760
    %1513 = vmatpush1.msra.mxu0 %v1512
    %1514 = vmatprep.subr.mxu0 0.0
    %v1515 = vand.u32 %v1477, 4294901760
    %1516 = vmatpush1.msra.mxu0 %v1515
    %1517 = vmatprep.subr.mxu0 0.0
    %v1518 = vand.u32 %v1478, 4294901760
    %1519 = vmatpush1.msra.mxu0 %v1518
    %1520 = vmatprep.subr.mxu0 0.0
    %v1521 = vand.u32 %v1479, 4294901760
    %1522 = vmatpush1.msra.mxu0 %v1521
    %1523 = vmatprep.subr.mxu0 0.0
    %v1524 = vand.u32 %v1480, 4294901760
    %1525 = vmatpush1.msra.mxu0 %v1524
    %1526 = vmatprep.subr.mxu0 0.0
    %v1527 = vand.u32 %v1481, 4294901760
    %1528 = vmatpush1.msra.mxu0 %v1527
    %1529 = vmatprep.subr.mxu0 0.0
    %v1530 = vand.u32 %v1482, 4294901760
    %1531 = vmatpush1.msra.mxu0 %v1530
    %1532 = vmatprep.subr.mxu0 0.0
    %v1533 = vand.u32 %v1483, 4294901760
    %1534 = vmatpush1.msra.mxu0 %v1533
    %1535 = vmatprep.subr.mxu0 0.0
    %v1536 = vand.u32 %v1484, 4294901760
    %1537 = vmatpush1.msra.mxu0 %v1536
    %1538 = vmatprep.subr.mxu0 0.0
    %v1539 = vand.u32 %v1485, 4294901760
    %1540 = vmatpush1.msra.mxu0 %v1539
    %1541 = vmatprep.subr.mxu0 0.0
    %1542 = vmatpush1.msra.mxu0 0.0
    %1543 = vmatprep.subr.mxu0 0.0
    %1544 = vmatpush1.msra.mxu0 0.0
    %1545 = vmatprep.subr.mxu0 0.0
    %1546 = vmatpush1.msra.mxu0 0.0
    %1547 = vmatprep.subr.mxu0 0.0
    %1548 = vmatpush1.msra.mxu0 0.0
    %1549 = vmatprep.subr.mxu0 0.0
    %1550 = vmatpush1.msra.mxu0 0.0
    %1551 = vmatprep.subr.mxu0 0.0
    %1552 = vmatpush1.msra.mxu0 0.0
    %1553 = vmatprep.subr.mxu0 0.0
    %1554 = vmatpush1.msra.mxu0 0.0
    %1555 = vmatprep.subr.mxu0 0.0
    %1556 = vmatpush1.msra.mxu0 0.0
    %1557 = vmatprep.subr.mxu0 0.0
    %1558 = vmatpush1.msra.mxu0 0.0
    %1559 = vmatprep.subr.mxu0 0.0
    %1560 = vmatpush1.msra.mxu0 0.0
    %1561 = vmatprep.subr.mxu0 0.0
    %1562 = vmatpush1.msra.mxu0 0.0
    %1563 = vmatprep.subr.mxu0 0.0
    %1564 = vmatpush1.msra.mxu0 0.0
    %1565 = vmatprep.subr.mxu0 0.0
    %1566 = vmatpush1.msra.mxu0 0.0
    %1567 = vmatprep.subr.mxu0 0.0
    %1568 = vmatpush1.msra.mxu0 0.0
    %1569 = vmatprep.subr.mxu0 0.0
    %1570 = vmatpush1.msra.mxu0 0.0
    %1571 = vmatprep.subr.mxu0 0.0
    %1572 = vmatpush1.msra.mxu0 0.0
    %1573 = vmatprep.mubr.f32.mxu0 0.0
    %v1574 = vand.u32 %v1466, 4294901760
    %v1575 = vsub.f32 %v1466, %v1574
    %v1576 = vand.u32 %v1575, 4294901760
    %v1577 = vsub.f32 %v1575, %v1576
    %v1578 = vand.u32 %v1577, 4294901760
    %1579 = vmatmul.mubr.f32.gmra.mrb[0].mxu0 %v1578
    %v1580 = vpop.f32.mrb[0].mxu0
    %v1581 = vadd.f32 %v1491, %v1580
    %v1582 = vpop.f32.mrb[0].mxu0
    %1583 = vmatprep.mubr.f32.mxu0 0.0
    %v1584 = vand.u32 %v1467, 4294901760
    %v1585 = vsub.f32 %v1467, %v1584
    %v1586 = vand.u32 %v1585, 4294901760
    %v1587 = vsub.f32 %v1585, %v1586
    %v1588 = vand.u32 %v1587, 4294901760
    %1589 = vmatmul.mubr.f32.gmra.mrb[0].mxu0 %v1588
    %v1590 = vpop.f32.mrb[0].mxu0
    %v1591 = vadd.f32 %v1491, %v1590
    %v1592 = vpop.f32.mrb[0].mxu0
    %1593 = vmatprep.mubr.f32.mxu0 0.0
    %v1594 = vand.u32 %v1468, 4294901760
    %v1595 = vsub.f32 %v1468, %v1594
    %v1596 = vand.u32 %v1595, 4294901760
    %v1597 = vsub.f32 %v1595, %v1596
    %v1598 = vand.u32 %v1597, 4294901760
    %1599 = vmatmul.mubr.f32.gmra.mrb[0].mxu0 %v1598
    %v1600 = vpop.f32.mrb[0].mxu0
    %v1601 = vadd.f32 %v1491, %v1600
    %v1602 = vpop.f32.mrb[0].mxu0
    %1603 = vmatprep.mubr.f32.mxu0 0.0
    %v1604 = vand.u32 %v1469, 4294901760
    %v1605 = vsub.f32 %v1469, %v1604
    %v1606 = vand.u32 %v1605, 4294901760
    %v1607 = vsub.f32 %v1605, %v1606
    %v1608 = vand.u32 %v1607, 4294901760
    %1609 = vmatmul.mubr.f32.gmra.mrb[0].mxu0 %v1608
    %v1610 = vpop.f32.mrb[0].mxu0
    %v1611 = vadd.f32 %v1491, %v1610
    %v1612 = vpop.f32.mrb[0].mxu0
    %1613 = vdwg.mxu0
    %1614 = vmatprep.subr.mxu0 0.0
    %v1615 = vand.u32 %v1470, 4294901760
    %v1616 = vsub.f32 %v1470, %v1615
    %v1617 = vand.u32 %v1616, 4294901760
    %v1618 = vsub.f32 %v1616, %v1617
    %v1619 = vand.u32 %v1618, 4294901760
    %1620 = vmatpush1.msra.mxu0 %v1619
    %1621 = vmatprep.subr.mxu0 0.0
    %v1622 = vand.u32 %v1471, 4294901760
    %v1623 = vsub.f32 %v1471, %v1622
    %v1624 = vand.u32 %v1623, 4294901760
    %v1625 = vsub.f32 %v1623, %v1624
    %v1626 = vand.u32 %v1625, 4294901760
    %1627 = vmatpush1.msra.mxu0 %v1626
    %1628 = vmatprep.subr.mxu0 0.0
    %v1629 = vand.u32 %v1472, 4294901760
    %v1630 = vsub.f32 %v1472, %v1629
    %v1631 = vand.u32 %v1630, 4294901760
    %v1632 = vsub.f32 %v1630, %v1631
    %v1633 = vand.u32 %v1632, 4294901760
    %1634 = vmatpush1.msra.mxu0 %v1633
    %1635 = vmatprep.subr.mxu0 0.0
    %v1636 = vand.u32 %v1473, 4294901760
    %v1637 = vsub.f32 %v1473, %v1636
    %v1638 = vand.u32 %v1637, 4294901760
    %v1639 = vsub.f32 %v1637, %v1638
    %v1640 = vand.u32 %v1639, 4294901760
    %1641 = vmatpush1.msra.mxu0 %v1640
    %1642 = vmatprep.subr.mxu0 0.0
    %v1643 = vand.u32 %v1474, 4294901760
    %v1644 = vsub.f32 %v1474, %v1643
    %v1645 = vand.u32 %v1644, 4294901760
    %v1646 = vsub.f32 %v1644, %v1645
    %v1647 = vand.u32 %v1646, 4294901760
    %1648 = vmatpush1.msra.mxu0 %v1647
    %1649 = vmatprep.subr.mxu0 0.0
    %v1650 = vand.u32 %v1475, 4294901760
    %v1651 = vsub.f32 %v1475, %v1650
    %v1652 = vand.u32 %v1651, 4294901760
    %v1653 = vsub.f32 %v1651, %v1652
    %v1654 = vand.u32 %v1653, 4294901760
    %1655 = vmatpush1.msra.mxu0 %v1654
    %1656 = vmatprep.subr.mxu0 0.0
    %v1657 = vand.u32 %v1476, 4294901760
    %v1658 = vsub.f32 %v1476, %v1657
    %v1659 = vand.u32 %v1658, 4294901760
    %v1660 = vsub.f32 %v1658, %v1659
    %v1661 = vand.u32 %v1660, 4294901760
    %1662 = vmatpush1.msra.mxu0 %v1661
    %1663 = vmatprep.subr.mxu0 0.0
    %v1664 = vand.u32 %v1477, 4294901760
    %v1665 = vsub.f32 %v1477, %v1664
    %v1666 = vand.u32 %v1665, 4294901760
    %v1667 = vsub.f32 %v1665, %v1666
    %v1668 = vand.u32 %v1667, 4294901760
    %1669 = vmatpush1.msra.mxu0 %v1668
    %1670 = vmatprep.subr.mxu0 0.0
    %v1671 = vand.u32 %v1478, 4294901760
    %v1672 = vsub.f32 %v1478, %v1671
    %v1673 = vand.u32 %v1672, 4294901760
    %v1674 = vsub.f32 %v1672, %v1673
    %v1675 = vand.u32 %v1674, 4294901760
    %1676 = vmatpush1.msra.mxu0 %v1675
    %1677 = vmatprep.subr.mxu0 0.0
    %v1678 = vand.u32 %v1479, 4294901760
    %v1679 = vsub.f32 %v1479, %v1678
    %v1680 = vand.u32 %v1679, 4294901760
    %v1681 = vsub.f32 %v1679, %v1680
    %v1682 = vand.u32 %v1681, 4294901760
    %1683 = vmatpush1.msra.mxu0 %v1682
    %1684 = vmatprep.subr.mxu0 0.0
    %v1685 = vand.u32 %v1480, 4294901760
    %v1686 = vsub.f32 %v1480, %v1685
    %v1687 = vand.u32 %v1686, 4294901760
    %v1688 = vsub.f32 %v1686, %v1687
    %v1689 = vand.u32 %v1688, 4294901760
    %1690 = vmatpush1.msra.mxu0 %v1689
    %1691 = vmatprep.subr.mxu0 0.0
    %v1692 = vand.u32 %v1481, 4294901760
    %v1693 = vsub.f32 %v1481, %v1692
    %v1694 = vand.u32 %v1693, 4294901760
    %v1695 = vsub.f32 %v1693, %v1694
    %v1696 = vand.u32 %v1695, 4294901760
    %1697 = vmatpush1.msra.mxu0 %v1696
    %1698 = vmatprep.subr.mxu0 0.0
    %v1699 = vand.u32 %v1482, 4294901760
    %v1700 = vsub.f32 %v1482, %v1699
    %v1701 = vand.u32 %v1700, 4294901760
    %v1702 = vsub.f32 %v1700, %v1701
    %v1703 = vand.u32 %v1702, 4294901760
    %1704 = vmatpush1.msra.mxu0 %v1703
    %1705 = vmatprep.subr.mxu0 0.0
    %v1706 = vand.u32 %v1483, 4294901760
    %v1707 = vsub.f32 %v1483, %v1706
    %v1708 = vand.u32 %v1707, 4294901760
    %v1709 = vsub.f32 %v1707, %v1708
    %v1710 = vand.u32 %v1709, 4294901760
    %1711 = vmatpush1.msra.mxu0 %v1710
    %1712 = vmatprep.subr.mxu0 0.0
    %v1713 = vand.u32 %v1484, 4294901760
    %v1714 = vsub.f32 %v1484, %v1713
    %v1715 = vand.u32 %v1714, 4294901760
    %v1716 = vsub.f32 %v1714, %v1715
    %v1717 = vand.u32 %v1716, 4294901760
    %1718 = vmatpush1.msra.mxu0 %v1717
    %1719 = vmatprep.subr.mxu0 0.0
    %v1720 = vand.u32 %v1485, 4294901760
    %v1721 = vsub.f32 %v1485, %v1720
    %v1722 = vand.u32 %v1721, 4294901760
    %v1723 = vsub.f32 %v1721, %v1722
    %v1724 = vand.u32 %v1723, 4294901760
    %1725 = vmatpush1.msra.mxu0 %v1724
    %1726 = vmatprep.subr.mxu0 0.0
    %1727 = vmatpush1.msra.mxu0 0.0
    %1728 = vmatprep.subr.mxu0 0.0
    %1729 = vmatpush1.msra.mxu0 0.0
    %1730 = vmatprep.subr.mxu0 0.0
    %1731 = vmatpush1.msra.mxu0 0.0
    %1732 = vmatprep.subr.mxu0 0.0
    %1733 = vmatpush1.msra.mxu0 0.0
    %1734 = vmatprep.subr.mxu0 0.0
    %1735 = vmatpush1.msra.mxu0 0.0
    %1736 = vmatprep.subr.mxu0 0.0
    %1737 = vmatpush1.msra.mxu0 0.0
    %1738 = vmatprep.subr.mxu0 0.0
    %1739 = vmatpush1.msra.mxu0 0.0
    %1740 = vmatprep.subr.mxu0 0.0
    %1741 = vmatpush1.msra.mxu0 0.0
    %1742 = vmatprep.subr.mxu0 0.0
    %1743 = vmatpush1.msra.mxu0 0.0
    %1744 = vmatprep.subr.mxu0 0.0
    %1745 = vmatpush1.msra.mxu0 0.0
    %1746 = vmatprep.subr.mxu0 0.0
    %1747 = vmatpush1.msra.mxu0 0.0
    %1748 = vmatprep.subr.mxu0 0.0
    %1749 = vmatpush1.msra.mxu0 0.0
    %1750 = vmatprep.subr.mxu0 0.0
    %1751 = vmatpush1.msra.mxu0 0.0
    %1752 = vmatprep.subr.mxu0 0.0
    %1753 = vmatpush1.msra.mxu0 0.0
    %1754 = vmatprep.subr.mxu0 0.0
    %1755 = vmatpush1.msra.mxu0 0.0
    %1756 = vmatprep.subr.mxu0 0.0
    %1757 = vmatpush1.msra.mxu0 0.0
    %1758 = vmatprep.mubr.f32.mxu0 0.0
    %v1759 = vand.u32 %v1466, 4294901760
    %1760 = vmatmul.mubr.f32.gmra.mrb[0].mxu0 %v1759
    %v1761 = vpop.f32.mrb[0].mxu0
    %v1762 = vadd.f32 %v1581, %v1761
    %v1763 = vpop.f32.mrb[0].mxu0
    %1764 = vmatprep.mubr.f32.mxu0 0.0
    %v1765 = vand.u32 %v1467, 4294901760
    %1766 = vmatmul.mubr.f32.gmra.mrb[0].mxu0 %v1765
    %v1767 = vpop.f32.mrb[0].mxu0
    %v1768 = vadd.f32 %v1591, %v1767
    %v1769 = vpop.f32.mrb[0].mxu0
    %1770 = vmatprep.mubr.f32.mxu0 0.0
    %v1771 = vand.u32 %v1468, 4294901760
    %1772 = vmatmul.mubr.f32.gmra.mrb[0].mxu0 %v1771
    %v1773 = vpop.f32.mrb[0].mxu0
    %v1774 = vadd.f32 %v1601, %v1773
    %v1775 = vpop.f32.mrb[0].mxu0
    %1776 = vmatprep.mubr.f32.mxu0 0.0
    %v1777 = vand.u32 %v1469, 4294901760
    %1778 = vmatmul.mubr.f32.gmra.mrb[0].mxu0 %v1777
    %v1779 = vpop.f32.mrb[0].mxu0
    %v1780 = vadd.f32 %v1611, %v1779
    %v1781 = vpop.f32.mrb[0].mxu0
    %1782 = vdwg.mxu0
    %1783 = vmatprep.subr.mxu0 0.0
    %v1784 = vand.u32 %v1470, 4294901760
    %v1785 = vsub.f32 %v1470, %v1784
    %1786 = vmatpush1.msra.mxu0 %v1785
    %1787 = vmatprep.subr.mxu0 0.0
    %v1788 = vand.u32 %v1471, 4294901760
    %v1789 = vsub.f32 %v1471, %v1788
    %1790 = vmatpush1.msra.mxu0 %v1789
    %1791 = vmatprep.subr.mxu0 0.0
    %v1792 = vand.u32 %v1472, 4294901760
    %v1793 = vsub.f32 %v1472, %v1792
    %1794 = vmatpush1.msra.mxu0 %v1793
    %1795 = vmatprep.subr.mxu0 0.0
    %v1796 = vand.u32 %v1473, 4294901760
    %v1797 = vsub.f32 %v1473, %v1796
    %1798 = vmatpush1.msra.mxu0 %v1797
    %1799 = vmatprep.subr.mxu0 0.0
    %v1800 = vand.u32 %v1474, 4294901760
    %v1801 = vsub.f32 %v1474, %v1800
    %1802 = vmatpush1.msra.mxu0 %v1801
    %1803 = vmatprep.subr.mxu0 0.0
    %v1804 = vand.u32 %v1475, 4294901760
    %v1805 = vsub.f32 %v1475, %v1804
    %1806 = vmatpush1.msra.mxu0 %v1805
    %1807 = vmatprep.subr.mxu0 0.0
    %v1808 = vand.u32 %v1476, 4294901760
    %v1809 = vsub.f32 %v1476, %v1808
    %1810 = vmatpush1.msra.mxu0 %v1809
    %1811 = vmatprep.subr.mxu0 0.0
    %v1812 = vand.u32 %v1477, 4294901760
    %v1813 = vsub.f32 %v1477, %v1812
    %1814 = vmatpush1.msra.mxu0 %v1813
    %1815 = vmatprep.subr.mxu0 0.0
    %v1816 = vand.u32 %v1478, 4294901760
    %v1817 = vsub.f32 %v1478, %v1816
    %1818 = vmatpush1.msra.mxu0 %v1817
    %1819 = vmatprep.subr.mxu0 0.0
    %v1820 = vand.u32 %v1479, 4294901760
    %v1821 = vsub.f32 %v1479, %v1820
    %1822 = vmatpush1.msra.mxu0 %v1821
    %1823 = vmatprep.subr.mxu0 0.0
    %v1824 = vand.u32 %v1480, 4294901760
    %v1825 = vsub.f32 %v1480, %v1824
    %1826 = vmatpush1.msra.mxu0 %v1825
    %1827 = vmatprep.subr.mxu0 0.0
    %v1828 = vand.u32 %v1481, 4294901760
    %v1829 = vsub.f32 %v1481, %v1828
    %1830 = vmatpush1.msra.mxu0 %v1829
    %1831 = vmatprep.subr.mxu0 0.0
    %v1832 = vand.u32 %v1482, 4294901760
    %v1833 = vsub.f32 %v1482, %v1832
    %1834 = vmatpush1.msra.mxu0 %v1833
    %1835 = vmatprep.subr.mxu0 0.0
    %v1836 = vand.u32 %v1483, 4294901760
    %v1837 = vsub.f32 %v1483, %v1836
    %1838 = vmatpush1.msra.mxu0 %v1837
    %1839 = vmatprep.subr.mxu0 0.0
    %v1840 = vand.u32 %v1484, 4294901760
    %v1841 = vsub.f32 %v1484, %v1840
    %1842 = vmatpush1.msra.mxu0 %v1841
    %1843 = vmatprep.subr.mxu0 0.0
    %v1844 = vand.u32 %v1485, 4294901760
    %v1845 = vsub.f32 %v1485, %v1844
    %1846 = vmatpush1.msra.mxu0 %v1845
    %1847 = vmatprep.subr.mxu0 0.0
    %1848 = vmatpush1.msra.mxu0 0.0
    %1849 = vmatprep.subr.mxu0 0.0
    %1850 = vmatpush1.msra.mxu0 0.0
    %1851 = vmatprep.subr.mxu0 0.0
    %1852 = vmatpush1.msra.mxu0 0.0
    %1853 = vmatprep.subr.mxu0 0.0
    %1854 = vmatpush1.msra.mxu0 0.0
    %1855 = vmatprep.subr.mxu0 0.0
    %1856 = vmatpush1.msra.mxu0 0.0
    %1857 = vmatprep.subr.mxu0 0.0
    %1858 = vmatpush1.msra.mxu0 0.0
    %1859 = vmatprep.subr.mxu0 0.0
    %1860 = vmatpush1.msra.mxu0 0.0
    %1861 = vmatprep.subr.mxu0 0.0
    %1862 = vmatpush1.msra.mxu0 0.0
    %1863 = vmatprep.subr.mxu0 0.0
    %1864 = vmatpush1.msra.mxu0 0.0
    %1865 = vmatprep.subr.mxu0 0.0
    %1866 = vmatpush1.msra.mxu0 0.0
    %1867 = vmatprep.subr.mxu0 0.0
    %1868 = vmatpush1.msra.mxu0 0.0
    %1869 = vmatprep.subr.mxu0 0.0
    %1870 = vmatpush1.msra.mxu0 0.0
    %1871 = vmatprep.subr.mxu0 0.0
    %1872 = vmatpush1.msra.mxu0 0.0
    %1873 = vmatprep.subr.mxu0 0.0
    %1874 = vmatpush1.msra.mxu0 0.0
    %1875 = vmatprep.subr.mxu0 0.0
    %1876 = vmatpush1.msra.mxu0 0.0
    %1877 = vmatprep.subr.mxu0 0.0
    %1878 = vmatpush1.msra.mxu0 0.0
    %1879 = vmatprep.mubr.f32.mxu0 0.0
    %v1880 = vand.u32 %v1466, 4294901760
    %v1881 = vsub.f32 %v1466, %v1880
    %1882 = vmatmul.mubr.f32.gmra.mrb[0].mxu0 %v1881
    %v1883 = vpop.f32.mrb[0].mxu0
    %v1884 = vadd.f32 %v1762, %v1883
    %v1885 = vpop.f32.mrb[0].mxu0
    %1886 = vmatprep.mubr.f32.mxu0 0.0
    %v1887 = vand.u32 %v1467, 4294901760
    %v1888 = vsub.f32 %v1467, %v1887
    %1889 = vmatmul.mubr.f32.gmra.mrb[0].mxu0 %v1888
    %v1890 = vpop.f32.mrb[0].mxu0
    %v1891 = vadd.f32 %v1768, %v1890
    %v1892 = vpop.f32.mrb[0].mxu0
    %1893 = vmatprep.mubr.f32.mxu0 0.0
    %v1894 = vand.u32 %v1468, 4294901760
    %v1895 = vsub.f32 %v1468, %v1894
    %1896 = vmatmul.mubr.f32.gmra.mrb[0].mxu0 %v1895
    %v1897 = vpop.f32.mrb[0].mxu0
    %v1898 = vadd.f32 %v1774, %v1897
    %v1899 = vpop.f32.mrb[0].mxu0
    %1900 = vmatprep.mubr.f32.mxu0 0.0
    %v1901 = vand.u32 %v1469, 4294901760
    %v1902 = vsub.f32 %v1469, %v1901
    %1903 = vmatmul.mubr.f32.gmra.mrb[0].mxu0 %v1902
    %v1904 = vpop.f32.mrb[0].mxu0
    %v1905 = vadd.f32 %v1780, %v1904
    %v1906 = vpop.f32.mrb[0].mxu0
    %1907 = vdwg.mxu0
    %1908 = vmatprep.subr.mxu0 0.0
    %v1909 = vand.u32 %v1470, 4294901760
    %1910 = vmatpush1.msra.mxu0 %v1909
    %1911 = vmatprep.subr.mxu0 0.0
    %v1912 = vand.u32 %v1471, 4294901760
    %1913 = vmatpush1.msra.mxu0 %v1912
    %1914 = vmatprep.subr.mxu0 0.0
    %v1915 = vand.u32 %v1472, 4294901760
    %1916 = vmatpush1.msra.mxu0 %v1915
    %1917 = vmatprep.subr.mxu0 0.0
    %v1918 = vand.u32 %v1473, 4294901760
    %1919 = vmatpush1.msra.mxu0 %v1918
    %1920 = vmatprep.subr.mxu0 0.0
    %v1921 = vand.u32 %v1474, 4294901760
    %1922 = vmatpush1.msra.mxu0 %v1921
    %1923 = vmatprep.subr.mxu0 0.0
    %v1924 = vand.u32 %v1475, 4294901760
    %1925 = vmatpush1.msra.mxu0 %v1924
    %1926 = vmatprep.subr.mxu0 0.0
    %v1927 = vand.u32 %v1476, 4294901760
    %1928 = vmatpush1.msra.mxu0 %v1927
    %1929 = vmatprep.subr.mxu0 0.0
    %v1930 = vand.u32 %v1477, 4294901760
    %1931 = vmatpush1.msra.mxu0 %v1930
    %1932 = vmatprep.subr.mxu0 0.0
    %v1933 = vand.u32 %v1478, 4294901760
    %1934 = vmatpush1.msra.mxu0 %v1933
    %1935 = vmatprep.subr.mxu0 0.0
    %v1936 = vand.u32 %v1479, 4294901760
    %1937 = vmatpush1.msra.mxu0 %v1936
    %1938 = vmatprep.subr.mxu0 0.0
    %v1939 = vand.u32 %v1480, 4294901760
    %1940 = vmatpush1.msra.mxu0 %v1939
    %1941 = vmatprep.subr.mxu0 0.0
    %v1942 = vand.u32 %v1481, 4294901760
    %1943 = vmatpush1.msra.mxu0 %v1942
    %1944 = vmatprep.subr.mxu0 0.0
    %v1945 = vand.u32 %v1482, 4294901760
    %1946 = vmatpush1.msra.mxu0 %v1945
    %1947 = vmatprep.subr.mxu0 0.0
    %v1948 = vand.u32 %v1483, 4294901760
    %1949 = vmatpush1.msra.mxu0 %v1948
    %1950 = vmatprep.subr.mxu0 0.0
    %v1951 = vand.u32 %v1484, 4294901760
    %1952 = vmatpush1.msra.mxu0 %v1951
    %1953 = vmatprep.subr.mxu0 0.0
    %v1954 = vand.u32 %v1485, 4294901760
    %1955 = vmatpush1.msra.mxu0 %v1954
    %1956 = vmatprep.subr.mxu0 0.0
    %1957 = vmatpush1.msra.mxu0 0.0
    %1958 = vmatprep.subr.mxu0 0.0
    %1959 = vmatpush1.msra.mxu0 0.0
    %1960 = vmatprep.subr.mxu0 0.0
    %1961 = vmatpush1.msra.mxu0 0.0
    %1962 = vmatprep.subr.mxu0 0.0
    %1963 = vmatpush1.msra.mxu0 0.0
    %1964 = vmatprep.subr.mxu0 0.0
    %1965 = vmatpush1.msra.mxu0 0.0
    %1966 = vmatprep.subr.mxu0 0.0
    %1967 = vmatpush1.msra.mxu0 0.0
    %1968 = vmatprep.subr.mxu0 0.0
    %1969 = vmatpush1.msra.mxu0 0.0
    %1970 = vmatprep.subr.mxu0 0.0
    %1971 = vmatpush1.msra.mxu0 0.0
    %1972 = vmatprep.subr.mxu0 0.0
    %1973 = vmatpush1.msra.mxu0 0.0
    %1974 = vmatprep.subr.mxu0 0.0
    %1975 = vmatpush1.msra.mxu0 0.0
    %1976 = vmatprep.subr.mxu0 0.0
    %1977 = vmatpush1.msra.mxu0 0.0
    %1978 = vmatprep.subr.mxu0 0.0
    %1979 = vmatpush1.msra.mxu0 0.0
    %1980 = vmatprep.subr.mxu0 0.0
    %1981 = vmatpush1.msra.mxu0 0.0
    %1982 = vmatprep.subr.mxu0 0.0
    %1983 = vmatpush1.msra.mxu0 0.0
    %1984 = vmatprep.subr.mxu0 0.0
    %1985 = vmatpush1.msra.mxu0 0.0
    %1986 = vmatprep.subr.mxu0 0.0
    %1987 = vmatpush1.msra.mxu0 0.0
    %1988 = vmatprep.mubr.f32.mxu0 0.0
    %v1989 = vand.u32 %v1466, 4294901760
    %v1990 = vsub.f32 %v1466, %v1989
    %v1991 = vand.u32 %v1990, 4294901760
    %1992 = vmatmul.mubr.f32.gmra.mrb[0].mxu0 %v1991
    %v1993 = vpop.f32.mrb[0].mxu0
    %v1994 = vadd.f32 %v1884, %v1993
    %v1995 = vpop.f32.mrb[0].mxu0
    %1996 = vmatprep.mubr.f32.mxu0 0.0
    %v1997 = vand.u32 %v1467, 4294901760
    %v1998 = vsub.f32 %v1467, %v1997
    %v1999 = vand.u32 %v1998, 4294901760
    %2000 = vmatmul.mubr.f32.gmra.mrb[0].mxu0 %v1999
    %v2001 = vpop.f32.mrb[0].mxu0
    %v2002 = vadd.f32 %v1891, %v2001
    %v2003 = vpop.f32.mrb[0].mxu0
    %2004 = vmatprep.mubr.f32.mxu0 0.0
    %v2005 = vand.u32 %v1468, 4294901760
    %v2006 = vsub.f32 %v1468, %v2005
    %v2007 = vand.u32 %v2006, 4294901760
    %2008 = vmatmul.mubr.f32.gmra.mrb[0].mxu0 %v2007
    %v2009 = vpop.f32.mrb[0].mxu0
    %v2010 = vadd.f32 %v1898, %v2009
    %v2011 = vpop.f32.mrb[0].mxu0
    %2012 = vmatprep.mubr.f32.mxu0 0.0
    %v2013 = vand.u32 %v1469, 4294901760
    %v2014 = vsub.f32 %v1469, %v2013
    %v2015 = vand.u32 %v2014, 4294901760
    %2016 = vmatmul.mubr.f32.gmra.mrb[0].mxu0 %v2015
    %v2017 = vpop.f32.mrb[0].mxu0
    %v2018 = vadd.f32 %v1905, %v2017
    %v2019 = vpop.f32.mrb[0].mxu0
    %2020 = vdwg.mxu0
    %2021 = vmatprep.subr.mxu0 0.0
    %v2022 = vand.u32 %v1470, 4294901760
    %v2023 = vsub.f32 %v1470, %v2022
    %v2024 = vand.u32 %v2023, 4294901760
    %2025 = vmatpush1.msra.mxu0 %v2024
    %2026 = vmatprep.subr.mxu0 0.0
    %v2027 = vand.u32 %v1471, 4294901760
    %v2028 = vsub.f32 %v1471, %v2027
    %v2029 = vand.u32 %v2028, 4294901760
    %2030 = vmatpush1.msra.mxu0 %v2029
    %2031 = vmatprep.subr.mxu0 0.0
    %v2032 = vand.u32 %v1472, 4294901760
    %v2033 = vsub.f32 %v1472, %v2032
    %v2034 = vand.u32 %v2033, 4294901760
    %2035 = vmatpush1.msra.mxu0 %v2034
    %2036 = vmatprep.subr.mxu0 0.0
    %v2037 = vand.u32 %v1473, 4294901760
    %v2038 = vsub.f32 %v1473, %v2037
    %v2039 = vand.u32 %v2038, 4294901760
    %2040 = vmatpush1.msra.mxu0 %v2039
    %2041 = vmatprep.subr.mxu0 0.0
    %v2042 = vand.u32 %v1474, 4294901760
    %v2043 = vsub.f32 %v1474, %v2042
    %v2044 = vand.u32 %v2043, 4294901760
    %2045 = vmatpush1.msra.mxu0 %v2044
    %2046 = vmatprep.subr.mxu0 0.0
    %v2047 = vand.u32 %v1475, 4294901760
    %v2048 = vsub.f32 %v1475, %v2047
    %v2049 = vand.u32 %v2048, 4294901760
    %2050 = vmatpush1.msra.mxu0 %v2049
    %2051 = vmatprep.subr.mxu0 0.0
    %v2052 = vand.u32 %v1476, 4294901760
    %v2053 = vsub.f32 %v1476, %v2052
    %v2054 = vand.u32 %v2053, 4294901760
    %2055 = vmatpush1.msra.mxu0 %v2054
    %2056 = vmatprep.subr.mxu0 0.0
    %v2057 = vand.u32 %v1477, 4294901760
    %v2058 = vsub.f32 %v1477, %v2057
    %v2059 = vand.u32 %v2058, 4294901760
    %2060 = vmatpush1.msra.mxu0 %v2059
    %2061 = vmatprep.subr.mxu0 0.0
    %v2062 = vand.u32 %v1478, 4294901760
    %v2063 = vsub.f32 %v1478, %v2062
    %v2064 = vand.u32 %v2063, 4294901760
    %2065 = vmatpush1.msra.mxu0 %v2064
    %2066 = vmatprep.subr.mxu0 0.0
    %v2067 = vand.u32 %v1479, 4294901760
    %v2068 = vsub.f32 %v1479, %v2067
    %v2069 = vand.u32 %v2068, 4294901760
    %2070 = vmatpush1.msra.mxu0 %v2069
    %2071 = vmatprep.subr.mxu0 0.0
    %v2072 = vand.u32 %v1480, 4294901760
    %v2073 = vsub.f32 %v1480, %v2072
    %v2074 = vand.u32 %v2073, 4294901760
    %2075 = vmatpush1.msra.mxu0 %v2074
    %2076 = vmatprep.subr.mxu0 0.0
    %v2077 = vand.u32 %v1481, 4294901760
    %v2078 = vsub.f32 %v1481, %v2077
    %v2079 = vand.u32 %v2078, 4294901760
    %2080 = vmatpush1.msra.mxu0 %v2079
    %2081 = vmatprep.subr.mxu0 0.0
    %v2082 = vand.u32 %v1482, 4294901760
    %v2083 = vsub.f32 %v1482, %v2082
    %v2084 = vand.u32 %v2083, 4294901760
    %2085 = vmatpush1.msra.mxu0 %v2084
    %2086 = vmatprep.subr.mxu0 0.0
    %v2087 = vand.u32 %v1483, 4294901760
    %v2088 = vsub.f32 %v1483, %v2087
    %v2089 = vand.u32 %v2088, 4294901760
    %2090 = vmatpush1.msra.mxu0 %v2089
    %2091 = vmatprep.subr.mxu0 0.0
    %v2092 = vand.u32 %v1484, 4294901760
    %v2093 = vsub.f32 %v1484, %v2092
    %v2094 = vand.u32 %v2093, 4294901760
    %2095 = vmatpush1.msra.mxu0 %v2094
    %2096 = vmatprep.subr.mxu0 0.0
    %v2097 = vand.u32 %v1485, 4294901760
    %v2098 = vsub.f32 %v1485, %v2097
    %v2099 = vand.u32 %v2098, 4294901760
    %2100 = vmatpush1.msra.mxu0 %v2099
    %2101 = vmatprep.subr.mxu0 0.0
    %2102 = vmatpush1.msra.mxu0 0.0
    %2103 = vmatprep.subr.mxu0 0.0
    %2104 = vmatpush1.msra.mxu0 0.0
    %2105 = vmatprep.subr.mxu0 0.0
    %2106 = vmatpush1.msra.mxu0 0.0
    %2107 = vmatprep.subr.mxu0 0.0
    %2108 = vmatpush1.msra.mxu0 0.0
    %2109 = vmatprep.subr.mxu0 0.0
    %2110 = vmatpush1.msra.mxu0 0.0
    %2111 = vmatprep.subr.mxu0 0.0
    %2112 = vmatpush1.msra.mxu0 0.0
    %2113 = vmatprep.subr.mxu0 0.0
    %2114 = vmatpush1.msra.mxu0 0.0
    %2115 = vmatprep.subr.mxu0 0.0
    %2116 = vmatpush1.msra.mxu0 0.0
    %2117 = vmatprep.subr.mxu0 0.0
    %2118 = vmatpush1.msra.mxu0 0.0
    %2119 = vmatprep.subr.mxu0 0.0
    %2120 = vmatpush1.msra.mxu0 0.0
    %2121 = vmatprep.subr.mxu0 0.0
    %2122 = vmatpush1.msra.mxu0 0.0
    %2123 = vmatprep.subr.mxu0 0.0
    %2124 = vmatpush1.msra.mxu0 0.0
    %2125 = vmatprep.subr.mxu0 0.0
    %2126 = vmatpush1.msra.mxu0 0.0
    %2127 = vmatprep.subr.mxu0 0.0
    %2128 = vmatpush1.msra.mxu0 0.0
    %2129 = vmatprep.subr.mxu0 0.0
    %2130 = vmatpush1.msra.mxu0 0.0
    %2131 = vmatprep.subr.mxu0 0.0
    %2132 = vmatpush1.msra.mxu0 0.0
    %2133 = vmatprep.mubr.f32.mxu0 0.0
    %v2134 = vand.u32 %v1466, 4294901760
    %2135 = vmatmul.mubr.f32.gmra.mrb[0].mxu0 %v2134
    %v2136 = vpop.f32.mrb[0].mxu0
    %v2137 = vadd.f32 %v1994, %v2136
    %v2138 = vpop.f32.mrb[0].mxu0
    %2139 = vmatprep.mubr.f32.mxu0 0.0
    %v2140 = vand.u32 %v1467, 4294901760
    %2141 = vmatmul.mubr.f32.gmra.mrb[0].mxu0 %v2140
    %v2142 = vpop.f32.mrb[0].mxu0
    %v2143 = vadd.f32 %v2002, %v2142
    %v2144 = vpop.f32.mrb[0].mxu0
    %2145 = vmatprep.mubr.f32.mxu0 0.0
    %v2146 = vand.u32 %v1468, 4294901760
    %2147 = vmatmul.mubr.f32.gmra.mrb[0].mxu0 %v2146
    %v2148 = vpop.f32.mrb[0].mxu0
    %v2149 = vadd.f32 %v2010, %v2148
    %v2150 = vpop.f32.mrb[0].mxu0
    %2151 = vmatprep.mubr.f32.mxu0 0.0
    %v2152 = vand.u32 %v1469, 4294901760
    %2153 = vmatmul.mubr.f32.gmra.mrb[0].mxu0 %v2152
    %v2154 = vpop.f32.mrb[0].mxu0
    %v2155 = vadd.f32 %v2018, %v2154
    %v2156 = vpop.f32.mrb[0].mxu0
    %2157 = vdwg.mxu0
    %2158 = vmatprep.subr.mxu0 0.0
    %v2159 = vand.u32 %v1470, 4294901760
    %2160 = vmatpush1.msra.mxu0 %v2159
    %2161 = vmatprep.subr.mxu0 0.0
    %v2162 = vand.u32 %v1471, 4294901760
    %2163 = vmatpush1.msra.mxu0 %v2162
    %2164 = vmatprep.subr.mxu0 0.0
    %v2165 = vand.u32 %v1472, 4294901760
    %2166 = vmatpush1.msra.mxu0 %v2165
    %2167 = vmatprep.subr.mxu0 0.0
    %v2168 = vand.u32 %v1473, 4294901760
    %2169 = vmatpush1.msra.mxu0 %v2168
    %2170 = vmatprep.subr.mxu0 0.0
    %v2171 = vand.u32 %v1474, 4294901760
    %2172 = vmatpush1.msra.mxu0 %v2171
    %2173 = vmatprep.subr.mxu0 0.0
    %v2174 = vand.u32 %v1475, 4294901760
    %2175 = vmatpush1.msra.mxu0 %v2174
    %2176 = vmatprep.subr.mxu0 0.0
    %v2177 = vand.u32 %v1476, 4294901760
    %2178 = vmatpush1.msra.mxu0 %v2177
    %2179 = vmatprep.subr.mxu0 0.0
    %v2180 = vand.u32 %v1477, 4294901760
    %2181 = vmatpush1.msra.mxu0 %v2180
    %2182 = vmatprep.subr.mxu0 0.0
    %v2183 = vand.u32 %v1478, 4294901760
    %2184 = vmatpush1.msra.mxu0 %v2183
    %2185 = vmatprep.subr.mxu0 0.0
    %v2186 = vand.u32 %v1479, 4294901760
    %2187 = vmatpush1.msra.mxu0 %v2186
    %2188 = vmatprep.subr.mxu0 0.0
    %v2189 = vand.u32 %v1480, 4294901760
    %2190 = vmatpush1.msra.mxu0 %v2189
    %2191 = vmatprep.subr.mxu0 0.0
    %v2192 = vand.u32 %v1481, 4294901760
    %2193 = vmatpush1.msra.mxu0 %v2192
    %2194 = vmatprep.subr.mxu0 0.0
    %v2195 = vand.u32 %v1482, 4294901760
    %2196 = vmatpush1.msra.mxu0 %v2195
    %2197 = vmatprep.subr.mxu0 0.0
    %v2198 = vand.u32 %v1483, 4294901760
    %2199 = vmatpush1.msra.mxu0 %v2198
    %2200 = vmatprep.subr.mxu0 0.0
    %v2201 = vand.u32 %v1484, 4294901760
    %2202 = vmatpush1.msra.mxu0 %v2201
    %2203 = vmatprep.subr.mxu0 0.0
    %v2204 = vand.u32 %v1485, 4294901760
    %2205 = vmatpush1.msra.mxu0 %v2204
    %2206 = vmatprep.subr.mxu0 0.0
    %2207 = vmatpush1.msra.mxu0 0.0
    %2208 = vmatprep.subr.mxu0 0.0
    %2209 = vmatpush1.msra.mxu0 0.0
    %2210 = vmatprep.subr.mxu0 0.0
    %2211 = vmatpush1.msra.mxu0 0.0
    %2212 = vmatprep.subr.mxu0 0.0
    %2213 = vmatpush1.msra.mxu0 0.0
    %2214 = vmatprep.subr.mxu0 0.0
    %2215 = vmatpush1.msra.mxu0 0.0
    %2216 = vmatprep.subr.mxu0 0.0
    %2217 = vmatpush1.msra.mxu0 0.0
    %2218 = vmatprep.subr.mxu0 0.0
    %2219 = vmatpush1.msra.mxu0 0.0
    %2220 = vmatprep.subr.mxu0 0.0
    %2221 = vmatpush1.msra.mxu0 0.0
    %2222 = vmatprep.subr.mxu0 0.0
    %2223 = vmatpush1.msra.mxu0 0.0
    %2224 = vmatprep.subr.mxu0 0.0
    %2225 = vmatpush1.msra.mxu0 0.0
    %2226 = vmatprep.subr.mxu0 0.0
    %2227 = vmatpush1.msra.mxu0 0.0
    %2228 = vmatprep.subr.mxu0 0.0
    %2229 = vmatpush1.msra.mxu0 0.0
    %2230 = vmatprep.subr.mxu0 0.0
    %2231 = vmatpush1.msra.mxu0 0.0
    %2232 = vmatprep.subr.mxu0 0.0
    %2233 = vmatpush1.msra.mxu0 0.0
    %2234 = vmatprep.subr.mxu0 0.0
    %2235 = vmatpush1.msra.mxu0 0.0
    %2236 = vmatprep.subr.mxu0 0.0
    %2237 = vmatpush1.msra.mxu0 0.0
    %2238 = vmatprep.mubr.f32.mxu0 0.0
    %v2239 = vand.u32 %v1466, 4294901760
    %2240 = vmatmul.mubr.f32.gmra.mrb[0].mxu0 %v2239
    %v2241 = vpop.f32.mrb[0].mxu0
    %v2242 = vadd.f32 %v2137, %v2241
    %v2243 = vpop.f32.mrb[0].mxu0
    %2244 = vmatprep.mubr.f32.mxu0 0.0
    %v2245 = vand.u32 %v1467, 4294901760
    %2246 = vmatmul.mubr.f32.gmra.mrb[0].mxu0 %v2245
    %v2247 = vpop.f32.mrb[0].mxu0
    %v2248 = vadd.f32 %v2143, %v2247
    %v2249 = vpop.f32.mrb[0].mxu0
    %2250 = vmatprep.mubr.f32.mxu0 0.0
    %v2251 = vand.u32 %v1468, 4294901760
    %2252 = vmatmul.mubr.f32.gmra.mrb[0].mxu0 %v2251
    %v2253 = vpop.f32.mrb[0].mxu0
    %v2254 = vadd.f32 %v2149, %v2253
    %v2255 = vpop.f32.mrb[0].mxu0
    %2256 = vmatprep.mubr.f32.mxu0 0.0
    %v2257 = vand.u32 %v1469, 4294901760
    %2258 = vmatmul.mubr.f32.gmra.mrb[0].mxu0 %v2257
    %v2259 = vpop.f32.mrb[0].mxu0
    %v2260 = vadd.f32 %v2155, %v2259
    %v2261 = vpop.f32.mrb[0].mxu0
    %2262 = vdwg.mxu0
    %2263 = vmax.xlane.f32.xlu0 %v2242
    %v2264 = vpop.xlane.xlu0 %2263
    %2265 = vmax.xlane.f32.xlu0 %v2248
    %v2266 = vpop.xlane.xlu0 %2265
    %2267 = vmax.xlane.f32.xlu0 %v2254
    %v2268 = vpop.xlane.xlu0 %2267
    %2269 = vmax.xlane.f32.xlu0 %v2260
    %v2270 = vpop.xlane.xlu0 %2269
    %v2271 = vsub.f32 %v2242, %v2264
    %v2272 = vsub.f32 %v2248, %v2266
    %v2273 = vsub.f32 %v2254, %v2268
    %v2274 = vsub.f32 %v2260, %v2270
    %v2275 = vmul.f32 %v2271, 1.442695
    %v2276 = vpow.pop %v2275
    %v2277 = vmul.f32 %v2272, 1.442695
    %v2278 = vpow.pop %v2277
    %v2279 = vmul.f32 %v2273, 1.442695
    %v2280 = vpow.pop %v2279
    %v2281 = vmul.f32 %v2274, 1.442695
    %v2282 = vpow.pop %v2281
    %2283 = vadd.xlane.f32.xlu0 %v2276
    %v2284 = vpop.xlane.xlu0 %2283
    %2285 = vadd.xlane.f32.xlu0 %v2278
    %v2286 = vpop.xlane.xlu0 %2285
    %2287 = vadd.xlane.f32.xlu0 %v2280
    %v2288 = vpop.xlane.xlu0 %2287
    %2289 = vadd.xlane.f32.xlu0 %v2282
    %v2290 = vpop.xlane.xlu0 %2289
    %v2291 = vrcp.pop %v2284
    %v2292 = vmul.f32 %v2276, %v2291
    %v2293 = vrcp.pop %v2286
    %v2294 = vmul.f32 %v2278, %v2293
    %v2295 = vrcp.pop %v2288
    %v2296 = vmul.f32 %v2280, %v2295
    %v2297 = vrcp.pop %v2290
    %v2298 = vmul.f32 %v2282, %v2297
    %2299 = vst [vmem:[#allocation7] sm:$0xff] %v2292
    %2300 = vst [vmem:[#allocation7 + $0x8] sm:$0xff] %v2294
    %2301 = vst [vmem:[#allocation7 + $0x10] sm:$0xff] %v2296
    %2302 = vst [vmem:[#allocation7 + $0x18] sm:$0xff] %v2298
    // Predicated region
    $region38: #{tpu_custom_call.1} parent=1 // pred_check
      _
    $region39: #{tpu_custom_call.1} parent=1 // pred_check_branch
      %2304 = sbr.rel (0) target = $region41
    $region40: #{tpu_custom_call.1} parent=1 // pred_region
      %s2306 = ssub.s32 512, 512
      %2307 = vsyncadd [#allocation4], %s2306
      %s2308 = sshll.u32 [#allocation7], 4
      %s2309 = int_to_ptr.vmem [resolvable:$true] %s2308
      %2314 = dma.vmem_to_hbm [thread:$0]  %s2309, 512, %s7, [#allocation4], 128, 128, 8
    $region41: #{tpu_custom_call.1} parent=1 // pred_fallthru
      _
    // Predicated region
    $region42: #{tpu_custom_call.1} parent=1 // pred_check
      _
    $region43: #{tpu_custom_call.1} parent=1 // pred_check_branch
      %2316 = sbr.rel (0) target = $region45
    $region44: #{tpu_custom_call.1} parent=1 // pred_region
      %2317 = dma.done [#allocation4], 512
    $region45: #{tpu_custom_call.1} parent=1 // pred_fallthru
      _
    %2318 = vsyncpa [#allocation3], 1
    %2319 = vsyncpa [#allocation6], 1
    %2320 = vsyncpa [#allocation4], 1

// kernel: tpu_custom_call.1
$region0: #{tpu_custom_call.1}
  #allocation0 [shape = 'u32[]', space=smem, size = 0x4, offset = 0x4, fixed_abs, tag = 'smem constant byte address 0x4 - core index']
  #allocation1 [shape = 'u32[144,128]{1,0:T(1,128)}', space=vmem, size = 0x12000, scoped, tag = 'internal scratch']
  %s0 = inlined_call_operand.vmem [shape: f32[32,16], index: 0, kind: input, shape index: {}]
  %s1 = inlined_call_operand.vmem [shape: f32[16,128], index: 1, kind: input, shape index: {}]
  %s2 = inlined_call_operand.vmem [shape: f32[1,128], index: 2, kind: input, shape index: {}]
  %s3 = inlined_call_operand.hbm [shape: f32[128,128], index: 3, kind: input, shape index: {}]
  %s4 = inlined_call_operand.vmem [shape: f32[1,128], index: 4, kind: input, shape index: {}]
  %s5 = inlined_call_operand.hbm [shape: f32[128,128], index: 5, kind: input, shape index: {}]
  %s6 = inlined_call_operand.vmem [shape: f32[1,128], index: 6, kind: input, shape index: {}]
  %s7 = inlined_call_operand.hbm [shape: f32[32,128], index: 7, kind: output, shape index: {}]
  %s8 = sld [smem:[#allocation0]]
  $region46: #{tpu_custom_call.1} parent=0
    _
  %s10 = ssub.s32 1, %s8
  %s11 = scalar_select 0, %s10, %s8
  $region1: #{tpu_custom_call.1} parent=0
    #allocation2 [shape = 'u8[65536]{0}', space=vmem, size = 0x10000, scoped, tag = 'input window, operand 3, single buffered']
    #allocation3 [shape = 's32[1]{0}', space=sflag, size = 0x4, scoped, tag = 'scoped memory for tpu_custom_call.1']
    #allocation4 [shape = 's32[1]{0}', space=sflag, size = 0x4, scoped, tag = 'scoped memory for tpu_custom_call.1']
    #allocation5 [shape = 'u8[65536]{0}', space=vmem, size = 0x10000, scoped, tag = 'input window, operand 5, single buffered']
    #allocation6 [shape = 's32[1]{0}', space=sflag, size = 0x4, scoped, tag = 'scoped memory for tpu_custom_call.1']
    #allocation7 [shape = 'u8[16384]{0}', space=vmem, size = 0x4000, scoped, tag = 'output window, operand 0, single buffered']
    %12 = vsyncpa [#allocation3], 0
    %13 = vsyncpa [#allocation6], 0
    %14 = vsyncpa [#allocation4], 0
    // Predicated region
    $region2: #{tpu_custom_call.1} parent=1 // pred_check
      _
    $region3: #{tpu_custom_call.1} parent=1 // pred_check_branch
      %16 = sbr.rel (0) target = $region5
    $region4: #{tpu_custom_call.1} parent=1 // pred_region
      _
    $region5: #{tpu_custom_call.1} parent=1 // pred_fallthru
      _
    // Predicated region
    $region6: #{tpu_custom_call.1} parent=1 // pred_check
      _
    $region7: #{tpu_custom_call.1} parent=1 // pred_check_branch
      %18 = sbr.rel (0) target = $region9
    $region8: #{tpu_custom_call.1} parent=1 // pred_region
      _
    $region9: #{tpu_custom_call.1} parent=1 // pred_fallthru
      _
    // Predicated region
    $region10: #{tpu_custom_call.1} parent=1 // pred_check
      _
    $region11: #{tpu_custom_call.1} parent=1 // pred_check_branch
      %20 = sbr.rel (0) target = $region13
    $region12: #{tpu_custom_call.1} parent=1 // pred_region
      _
    $region13: #{tpu_custom_call.1} parent=1 // pred_fallthru
      _
    // Predicated region
    $region14: #{tpu_custom_call.1} parent=1 // pred_check
      _
    $region15: #{tpu_custom_call.1} parent=1 // pred_check_branch
      %22 = sbr.rel (0) target = $region17
    $region16: #{tpu_custom_call.1} parent=1 // pred_region
      %s24 = ssub.s32 2048, 2048
      %25 = vsyncadd [#allocation3], %s24
      %s26 = sshll.u32 [#allocation2], 4
      %s27 = int_to_ptr.vmem [resolvable:$true] %s26
      %32 = dma.hbm_to_vmem [thread:$0]  %s3, 2048, %s27, [#allocation3], 128, 128, 8
    $region17: #{tpu_custom_call.1} parent=1 // pred_fallthru
      _
    // Predicated region
    $region18: #{tpu_custom_call.1} parent=1 // pred_check
      _
    $region19: #{tpu_custom_call.1} parent=1 // pred_check_branch
      %34 = sbr.rel (0) target = $region21
    $region20: #{tpu_custom_call.1} parent=1 // pred_region
      _
    $region21: #{tpu_custom_call.1} parent=1 // pred_fallthru
      _
    // Predicated region
    $region22: #{tpu_custom_call.1} parent=1 // pred_check
      _
    $region23: #{tpu_custom_call.1} parent=1 // pred_check_branch
      %36 = sbr.rel (0) target = $region25
    $region24: #{tpu_custom_call.1} parent=1 // pred_region
      %s38 = ssub.s32 2048, 2048
      %39 = vsyncadd [#allocation6], %s38
      %s40 = sshll.u32 [#allocation5], 4
      %s41 = int_to_ptr.vmem [resolvable:$true] %s40
      %46 = dma.hbm_to_vmem [thread:$0]  %s5, 2048, %s41, [#allocation6], 128, 128, 8
    $region25: #{tpu_custom_call.1} parent=1 // pred_fallthru
      _
    // Predicated region
    $region26: #{tpu_custom_call.1} parent=1 // pred_check
      _
    $region27: #{tpu_custom_call.1} parent=1 // pred_check_branch
      %48 = sbr.rel (0) target = $region29
    $region28: #{tpu_custom_call.1} parent=1 // pred_region
      _
    $region29: #{tpu_custom_call.1} parent=1 // pred_fallthru
      _
    // Predicated region
    $region30: #{tpu_custom_call.1} parent=1 // pred_check
      _
    $region31: #{tpu_custom_call.1} parent=1 // pred_check_branch
      %50 = sbr.rel (0) target = $region33
    $region32: #{tpu_custom_call.1} parent=1 // pred_region
      %51 = dma.done [#allocation3], 2048
    $region33: #{tpu_custom_call.1} parent=1 // pred_fallthru
      _
    // Predicated region
    $region34: #{tpu_custom_call.1} parent=1 // pred_check
      _
    $region35: #{tpu_custom_call.1} parent=1 // pred_check_branch
      %53 = sbr.rel (0) target = $region37
    $region36: #{tpu_custom_call.1} parent=1 // pred_region
      %54 = dma.done [#allocation6], 2048
    $region37: #{tpu_custom_call.1} parent=1 // pred_fallthru
      _
    %v55 = vld [vmem:[%s0] sm:$0xff]
    %v56 = vld [vmem:[%s0 + $0x8] sm:$0xff]
    %v57 = vld [vmem:[%s0 + $0x10] sm:$0xff]
    %v58 = vld [vmem:[%s0 + $0x18] sm:$0xff]
    %v59 = vld [vmem:[%s1] sm:$0xff]
    %v60 = vld [vmem:[%s1 + $0x8] sm:$0xff]
    %v61 = vld [vmem:[%s2] sm:$0x1]
    %v63 = vlaneseq
    %v64 = vshrl.u32 %v63, 7
    %v65 = vsub.s32 0, %v64
    %v66 = vrot.slane %v61, %v65
    %vm68 = vcmask 130048
    %v70 = vsel %vm68, %v55, 0
    %v73 = vsel %vm68, %v56, 0
    %v76 = vsel %vm68, %v57, 0
    %v79 = vsel %vm68, %v58, 0
    %81 = vmatprep.subr.mxu0 0.0
    %v82 = vand.u32 %v59, 4294901760
    %83 = vmatpush1.msra.mxu0 %v82
    %84 = vmatprep.subr.mxu0 0.0
    %v85 = vand.u32 %v60, 4294901760
    %86 = vmatpush1.msra.mxu0 %v85
    %87 = vmatprep.subr.mxu0 0.0
    %88 = vmatpush1.msra.mxu0 0.0
    %89 = vmatprep.subr.mxu0 0.0
    %90 = vmatpush1.msra.mxu0 0.0
    %91 = vmatprep.subr.mxu0 0.0
    %92 = vmatpush1.msra.mxu0 0.0
    %93 = vmatprep.subr.mxu0 0.0
    %94 = vmatpush1.msra.mxu0 0.0
    %95 = vmatprep.subr.mxu0 0.0
    %96 = vmatpush1.msra.mxu0 0.0
    %97 = vmatprep.subr.mxu0 0.0
    %98 = vmatpush1.msra.mxu0 0.0
    %99 = vmatprep.subr.mxu0 0.0
    %100 = vmatpush1.msra.mxu0 0.0
    %101 = vmatprep.subr.mxu0 0.0
    %102 = vmatpush1.msra.mxu0 0.0
    %103 = vmatprep.subr.mxu0 0.0
    %104 = vmatpush1.msra.mxu0 0.0
    %105 = vmatprep.subr.mxu0 0.0
    %106 = vmatpush1.msra.mxu0 0.0
    %107 = vmatprep.subr.mxu0 0.0
    %108 = vmatpush1.msra.mxu0 0.0
    %109 = vmatprep.subr.mxu0 0.0
    %110 = vmatpush1.msra.mxu0 0.0
    %111 = vmatprep.subr.mxu0 0.0
    %112 = vmatpush1.msra.mxu0 0.0
    %113 = vmatprep.subr.mxu0 0.0
    %114 = vmatpush1.msra.mxu0 0.0
    %115 = vmatprep.subr.mxu0 0.0
    %116 = vmatpush1.msra.mxu0 0.0
    %117 = vmatprep.subr.mxu0 0.0
    %118 = vmatpush1.msra.mxu0 0.0
    %119 = vmatprep.subr.mxu0 0.0
    %120 = vmatpush1.msra.mxu0 0.0
    %121 = vmatprep.subr.mxu0 0.0
    %122 = vmatpush1.msra.mxu0 0.0
    %123 = vmatprep.subr.mxu0 0.0
    %124 = vmatpush1.msra.mxu0 0.0
    %125 = vmatprep.subr.mxu0 0.0
    %126 = vmatpush1.msra.mxu0 0.0
    %127 = vmatprep.subr.mxu0 0.0
    %128 = vmatpush1.msra.mxu0 0.0
    %129 = vmatprep.subr.mxu0 0.0
    %130 = vmatpush1.msra.mxu0 0.0
    %131 = vmatprep.subr.mxu0 0.0
    %132 = vmatpush1.msra.mxu0 0.0
    %133 = vmatprep.subr.mxu0 0.0
    %134 = vmatpush1.msra.mxu0 0.0
    %135 = vmatprep.subr.mxu0 0.0
    %136 = vmatpush1.msra.mxu0 0.0
    %137 = vmatprep.subr.mxu0 0.0
    %138 = vmatpush1.msra.mxu0 0.0
    %139 = vmatprep.subr.mxu0 0.0
    %140 = vmatpush1.msra.mxu0 0.0
    %141 = vmatprep.subr.mxu0 0.0
    %142 = vmatpush1.msra.mxu0 0.0
    %143 = vmatprep.subr.mxu0 0.0
    %144 = vmatpush1.msra.mxu0 0.0
    %145 = vmatprep.subr.mxu0 0.0
    %146 = vmatpush1.msra.mxu0 0.0
    %147 = vmatprep.mubr.f32.mxu0 0.0
    %v148 = vand.u32 %v70, 4294901760
    %v149 = vsub.f32 %v70, %v148
    %v150 = vand.u32 %v149, 4294901760
    %v151 = vsub.f32 %v149, %v150
    %v152 = vand.u32 %v151, 4294901760
    %153 = vmatmul.mubr.f32.gmra.mrb[0].mxu0 %v152
    %v154 = vpop.f32.mrb[0].mxu0
    %v155 = vadd.f32 %v66, %v154
    %v156 = vpop.f32.mrb[0].mxu0
    %157 = vmatprep.mubr.f32.mxu0 0.0
    %v158 = vand.u32 %v73, 4294901760
    %v159 = vsub.f32 %v73, %v158
    %v160 = vand.u32 %v159, 4294901760
    %v161 = vsub.f32 %v159, %v160
    %v162 = vand.u32 %v161, 4294901760
    %163 = vmatmul.mubr.f32.gmra.mrb[0].mxu0 %v162
    %v164 = vpop.f32.mrb[0].mxu0
    %v165 = vadd.f32 %v66, %v164
    %v166 = vpop.f32.mrb[0].mxu0
    %167 = vmatprep.mubr.f32.mxu0 0.0
    %v168 = vand.u32 %v76, 4294901760
    %v169 = vsub.f32 %v76, %v168
    %v170 = vand.u32 %v169, 4294901760
    %v171 = vsub.f32 %v169, %v170
    %v172 = vand.u32 %v171, 4294901760
    %173 = vmatmul.mubr.f32.gmra.mrb[0].mxu0 %v172
    %v174 = vpop.f32.mrb[0].mxu0
    %v175 = vadd.f32 %v66, %v174
    %v176 = vpop.f32.mrb[0].mxu0
    %177 = vmatprep.mubr.f32.mxu0 0.0
    %v178 = vand.u32 %v79, 4294901760
    %v179 = vsub.f32 %v79, %v178
    %v180 = vand.u32 %v179, 4294901760
    %v181 = vsub.f32 %v179, %v180
    %v182 = vand.u32 %v181, 4294901760
    %183 = vmatmul.mubr.f32.gmra.mrb[0].mxu0 %v182
    %v184 = vpop.f32.mrb[0].mxu0
    %v185 = vadd.f32 %v66, %v184
    %v186 = vpop.f32.mrb[0].mxu0
    %187 = vdwg.mxu0
    %188 = vmatprep.subr.mxu0 0.0
    %v189 = vand.u32 %v59, 4294901760
    %v190 = vsub.f32 %v59, %v189
    %v191 = vand.u32 %v190, 4294901760
    %v192 = vsub.f32 %v190, %v191
    %v193 = vand.u32 %v192, 4294901760
    %194 = vmatpush1.msra.mxu0 %v193
    %195 = vmatprep.subr.mxu0 0.0
    %v196 = vand.u32 %v60, 4294901760
    %v197 = vsub.f32 %v60, %v196
    %v198 = vand.u32 %v197, 4294901760
    %v199 = vsub.f32 %v197, %v198
    %v200 = vand.u32 %v199, 4294901760
    %201 = vmatpush1.msra.mxu0 %v200
    %202 = vmatprep.subr.mxu0 0.0
    %203 = vmatpush1.msra.mxu0 0.0
    %204 = vmatprep.subr.mxu0 0.0
    %205 = vmatpush1.msra.mxu0 0.0
    %206 = vmatprep.subr.mxu0 0.0
    %207 = vmatpush1.msra.mxu0 0.0
    %208 = vmatprep.subr.mxu0 0.0
    %209 = vmatpush1.msra.mxu0 0.0
    %210 = vmatprep.subr.mxu0 0.0
    %211 = vmatpush1.msra.mxu0 0.0
    %212 = vmatprep.subr.mxu0 0.0
    %213 = vmatpush1.msra.mxu0 0.0
    %214 = vmatprep.subr.mxu0 0.0
    %215 = vmatpush1.msra.mxu0 0.0
    %216 = vmatprep.subr.mxu0 0.0
    %217 = vmatpush1.msra.mxu0 0.0
    %218 = vmatprep.subr.mxu0 0.0
    %219 = vmatpush1.msra.mxu0 0.0
    %220 = vmatprep.subr.mxu0 0.0
    %221 = vmatpush1.msra.mxu0 0.0
    %222 = vmatprep.subr.mxu0 0.0
    %223 = vmatpush1.msra.mxu0 0.0
    %224 = vmatprep.subr.mxu0 0.0
    %225 = vmatpush1.msra.mxu0 0.0
    %226 = vmatprep.subr.mxu0 0.0
    %227 = vmatpush1.msra.mxu0 0.0
    %228 = vmatprep.subr.mxu0 0.0
    %229 = vmatpush1.msra.mxu0 0.0
    %230 = vmatprep.subr.mxu0 0.0
    %231 = vmatpush1.msra.mxu0 0.0
    %232 = vmatprep.subr.mxu0 0.0
    %233 = vmatpush1.msra.mxu0 0.0
    %234 = vmatprep.subr.mxu0 0.0
    %235 = vmatpush1.msra.mxu0 0.0
    %236 = vmatprep.subr.mxu0 0.0
    %237 = vmatpush1.msra.mxu0 0.0
    %238 = vmatprep.subr.mxu0 0.0
    %239 = vmatpush1.msra.mxu0 0.0
    %240 = vmatprep.subr.mxu0 0.0
    %241 = vmatpush1.msra.mxu0 0.0
    %242 = vmatprep.subr.mxu0 0.0
    %243 = vmatpush1.msra.mxu0 0.0
    %244 = vmatprep.subr.mxu0 0.0
    %245 = vmatpush1.msra.mxu0 0.0
    %246 = vmatprep.subr.mxu0 0.0
    %247 = vmatpush1.msra.mxu0 0.0
    %248 = vmatprep.subr.mxu0 0.0
    %249 = vmatpush1.msra.mxu0 0.0
    %250 = vmatprep.subr.mxu0 0.0
    %251 = vmatpush1.msra.mxu0 0.0
    %252 = vmatprep.subr.mxu0 0.0
    %253 = vmatpush1.msra.mxu0 0.0
    %254 = vmatprep.subr.mxu0 0.0
    %255 = vmatpush1.msra.mxu0 0.0
    %256 = vmatprep.subr.mxu0 0.0
    %257 = vmatpush1.msra.mxu0 0.0
    %258 = vmatprep.subr.mxu0 0.0
    %259 = vmatpush1.msra.mxu0 0.0
    %260 = vmatprep.subr.mxu0 0.0
    %261 = vmatpush1.msra.mxu0 0.0
    %262 = vmatprep.mubr.f32.mxu0 0.0
    %v263 = vand.u32 %v70, 4294901760
    %264 = vmatmul.mubr.f32.gmra.mrb[0].mxu0 %v263
    %v265 = vpop.f32.mrb[0].mxu0
    %v266 = vadd.f32 %v155, %v265
    %v267 = vpop.f32.mrb[0].mxu0
    %268 = vmatprep.mubr.f32.mxu0 0.0
    %v269 = vand.u32 %v73, 4294901760
    %270 = vmatmul.mubr.f32.gmra.mrb[0].mxu0 %v269
    %v271 = vpop.f32.mrb[0].mxu0
    %v272 = vadd.f32 %v165, %v271
    %v273 = vpop.f32.mrb[0].mxu0
    %274 = vmatprep.mubr.f32.mxu0 0.0
    %v275 = vand.u32 %v76, 4294901760
    %276 = vmatmul.mubr.f32.gmra.mrb[0].mxu0 %v275
    %v277 = vpop.f32.mrb[0].mxu0
    %v278 = vadd.f32 %v175, %v277
    %v279 = vpop.f32.mrb[0].mxu0
    %280 = vmatprep.mubr.f32.mxu0 0.0
    %v281 = vand.u32 %v79, 4294901760
    %282 = vmatmul.mubr.f32.gmra.mrb[0].mxu0 %v281
    %v283 = vpop.f32.mrb[0].mxu0
    %v284 = vadd.f32 %v185, %v283
    %v285 = vpop.f32.mrb[0].mxu0
    %286 = vdwg.mxu0
    %287 = vmatprep.subr.mxu0 0.0
    %v288 = vand.u32 %v59, 4294901760
    %v289 = vsub.f32 %v59, %v288
    %290 = vmatpush1.msra.mxu0 %v289
    %291 = vmatprep.subr.mxu0 0.0
    %v292 = vand.u32 %v60, 4294901760
    %v293 = vsub.f32 %v60, %v292
    %294 = vmatpush1.msra.mxu0 %v293
    %295 = vmatprep.subr.mxu0 0.0
    %296 = vmatpush1.msra.mxu0 0.0
    %297 = vmatprep.subr.mxu0 0.0
    %298 = vmatpush1.msra.mxu0 0.0
    %299 = vmatprep.subr.mxu0 0.0
    %300 = vmatpush1.msra.mxu0 0.0
    %301 = vmatprep.subr.mxu0 0.0
    %302 = vmatpush1.msra.mxu0 0.0
    %303 = vmatprep.subr.mxu0 0.0
    %304 = vmatpush1.msra.mxu0 0.0
    %305 = vmatprep.subr.mxu0 0.0
    %306 = vmatpush1.msra.mxu0 0.0
    %307 = vmatprep.subr.mxu0 0.0
    %308 = vmatpush1.msra.mxu0 0.0
    %309 = vmatprep.subr.mxu0 0.0
    %310 = vmatpush1.msra.mxu0 0.0
    %311 = vmatprep.subr.mxu0 0.0
    %312 = vmatpush1.msra.mxu0 0.0
    %313 = vmatprep.subr.mxu0 0.0
    %314 = vmatpush1.msra.mxu0 0.0
    %315 = vmatprep.subr.mxu0 0.0
    %316 = vmatpush1.msra.mxu0 0.0
    %317 = vmatprep.subr.mxu0 0.0
    %318 = vmatpush1.msra.mxu0 0.0
    %319 = vmatprep.subr.mxu0 0.0
    %320 = vmatpush1.msra.mxu0 0.0
    %321 = vmatprep.subr.mxu0 0.0
    %322 = vmatpush1.msra.mxu0 0.0
    %323 = vmatprep.subr.mxu0 0.0
    %324 = vmatpush1.msra.mxu0 0.0
    %325 = vmatprep.subr.mxu0 0.0
    %326 = vmatpush1.msra.mxu0 0.0
    %327 = vmatprep.subr.mxu0 0.0
    %328 = vmatpush1.msra.mxu0 0.0
    %329 = vmatprep.subr.mxu0 0.0
    %330 = vmatpush1.msra.mxu0 0.0
    %331 = vmatprep.subr.mxu0 0.0
    %332 = vmatpush1.msra.mxu0 0.0
    %333 = vmatprep.subr.mxu0 0.0
    %334 = vmatpush1.msra.mxu0 0.0
    %335 = vmatprep.subr.mxu0 0.0
    %336 = vmatpush1.msra.mxu0 0.0
    %337 = vmatprep.subr.mxu0 0.0
    %338 = vmatpush1.msra.mxu0 0.0
    %339 = vmatprep.subr.mxu0 0.0
    %340 = vmatpush1.msra.mxu0 0.0
    %341 = vmatprep.subr.mxu0 0.0
    %342 = vmatpush1.msra.mxu0 0.0
    %343 = vmatprep.subr.mxu0 0.0
    %344 = vmatpush1.msra.mxu0 0.0
    %345 = vmatprep.subr.mxu0 0.0
    %346 = vmatpush1.msra.mxu0 0.0
    %347 = vmatprep.subr.mxu0 0.0
    %348 = vmatpush1.msra.mxu0 0.0
    %349 = vmatprep.subr.mxu0 0.0
    %350 = vmatpush1.msra.mxu0 0.0
    %351 = vmatprep.subr.mxu0 0.0
    %352 = vmatpush1.msra.mxu0 0.0
    %353 = vmatprep.subr.mxu0 0.0
    %354 = vmatpush1.msra.mxu0 0.0
    %355 = vmatprep.mubr.f32.mxu0 0.0
    %v356 = vand.u32 %v70, 4294901760
    %v357 = vsub.f32 %v70, %v356
    %358 = vmatmul.mubr.f32.gmra.mrb[0].mxu0 %v357
    %v359 = vpop.f32.mrb[0].mxu0
    %v360 = vadd.f32 %v266, %v359
    %v361 = vpop.f32.mrb[0].mxu0
    %362 = vmatprep.mubr.f32.mxu0 0.0
    %v363 = vand.u32 %v73, 4294901760
    %v364 = vsub.f32 %v73, %v363
    %365 = vmatmul.mubr.f32.gmra.mrb[0].mxu0 %v364
    %v366 = vpop.f32.mrb[0].mxu0
    %v367 = vadd.f32 %v272, %v366
    %v368 = vpop.f32.mrb[0].mxu0
    %369 = vmatprep.mubr.f32.mxu0 0.0
    %v370 = vand.u32 %v76, 4294901760
    %v371 = vsub.f32 %v76, %v370
    %372 = vmatmul.mubr.f32.gmra.mrb[0].mxu0 %v371
    %v373 = vpop.f32.mrb[0].mxu0
    %v374 = vadd.f32 %v278, %v373
    %v375 = vpop.f32.mrb[0].mxu0
    %376 = vmatprep.mubr.f32.mxu0 0.0
    %v377 = vand.u32 %v79, 4294901760
    %v378 = vsub.f32 %v79, %v377
    %379 = vmatmul.mubr.f32.gmra.mrb[0].mxu0 %v378
    %v380 = vpop.f32.mrb[0].mxu0
    %v381 = vadd.f32 %v284, %v380
    %v382 = vpop.f32.mrb[0].mxu0
    %383 = vdwg.mxu0
    %384 = vmatprep.subr.mxu0 0.0
    %v385 = vand.u32 %v59, 4294901760
    %386 = vmatpush1.msra.mxu0 %v385
    %387 = vmatprep.subr.mxu0 0.0
    %v388 = vand.u32 %v60, 4294901760
    %389 = vmatpush1.msra.mxu0 %v388
    %390 = vmatprep.subr.mxu0 0.0
    %391 = vmatpush1.msra.mxu0 0.0
    %392 = vmatprep.subr.mxu0 0.0
    %393 = vmatpush1.msra.mxu0 0.0
    %394 = vmatprep.subr.mxu0 0.0
    %395 = vmatpush1.msra.mxu0 0.0
    %396 = vmatprep.subr.mxu0 0.0
    %397 = vmatpush1.msra.mxu0 0.0
    %398 = vmatprep.subr.mxu0 0.0
    %399 = vmatpush1.msra.mxu0 0.0
    %400 = vmatprep.subr.mxu0 0.0
    %401 = vmatpush1.msra.mxu0 0.0
    %402 = vmatprep.subr.mxu0 0.0
    %403 = vmatpush1.msra.mxu0 0.0
    %404 = vmatprep.subr.mxu0 0.0
    %405 = vmatpush1.msra.mxu0 0.0
    %406 = vmatprep.subr.mxu0 0.0
    %407 = vmatpush1.msra.mxu0 0.0
    %408 = vmatprep.subr.mxu0 0.0
    %409 = vmatpush1.msra.mxu0 0.0
    %410 = vmatprep.subr.mxu0 0.0
    %411 = vmatpush1.msra.mxu0 0.0
    %412 = vmatprep.subr.mxu0 0.0
    %413 = vmatpush1.msra.mxu0 0.0
    %414 = vmatprep.subr.mxu0 0.0
    %415 = vmatpush1.msra.mxu0 0.0
    %416 = vmatprep.subr.mxu0 0.0
    %417 = vmatpush1.msra.mxu0 0.0
    %418 = vmatprep.subr.mxu0 0.0
    %419 = vmatpush1.msra.mxu0 0.0
    %420 = vmatprep.subr.mxu0 0.0
    %421 = vmatpush1.msra.mxu0 0.0
    %422 = vmatprep.subr.mxu0 0.0
    %423 = vmatpush1.msra.mxu0 0.0
    %424 = vmatprep.subr.mxu0 0.0
    %425 = vmatpush1.msra.mxu0 0.0
    %426 = vmatprep.subr.mxu0 0.0
    %427 = vmatpush1.msra.mxu0 0.0
    %428 = vmatprep.subr.mxu0 0.0
    %429 = vmatpush1.msra.mxu0 0.0
    %430 = vmatprep.subr.mxu0 0.0
    %431 = vmatpush1.msra.mxu0 0.0
    %432 = vmatprep.subr.mxu0 0.0
    %433 = vmatpush1.msra.mxu0 0.0
    %434 = vmatprep.subr.mxu0 0.0
    %435 = vmatpush1.msra.mxu0 0.0
    %436 = vmatprep.subr.mxu0 0.0
    %437 = vmatpush1.msra.mxu0 0.0
    %438 = vmatprep.subr.mxu0 0.0
    %439 = vmatpush1.msra.mxu0 0.0
    %440 = vmatprep.subr.mxu0 0.0
    %441 = vmatpush1.msra.mxu0 0.0
    %442 = vmatprep.subr.mxu0 0.0
    %443 = vmatpush1.msra.mxu0 0.0
    %444 = vmatprep.subr.mxu0 0.0
    %445 = vmatpush1.msra.mxu0 0.0
    %446 = vmatprep.subr.mxu0 0.0
    %447 = vmatpush1.msra.mxu0 0.0
    %448 = vmatprep.subr.mxu0 0.0
    %449 = vmatpush1.msra.mxu0 0.0
    %450 = vmatprep.mubr.f32.mxu0 0.0
    %v451 = vand.u32 %v70, 4294901760
    %v452 = vsub.f32 %v70, %v451
    %v453 = vand.u32 %v452, 4294901760
    %454 = vmatmul.mubr.f32.gmra.mrb[0].mxu0 %v453
    %v455 = vpop.f32.mrb[0].mxu0
    %v456 = vadd.f32 %v360, %v455
    %v457 = vpop.f32.mrb[0].mxu0
    %458 = vmatprep.mubr.f32.mxu0 0.0
    %v459 = vand.u32 %v73, 4294901760
    %v460 = vsub.f32 %v73, %v459
    %v461 = vand.u32 %v460, 4294901760
    %462 = vmatmul.mubr.f32.gmra.mrb[0].mxu0 %v461
    %v463 = vpop.f32.mrb[0].mxu0
    %v464 = vadd.f32 %v367, %v463
    %v465 = vpop.f32.mrb[0].mxu0
    %466 = vmatprep.mubr.f32.mxu0 0.0
    %v467 = vand.u32 %v76, 4294901760
    %v468 = vsub.f32 %v76, %v467
    %v469 = vand.u32 %v468, 4294901760
    %470 = vmatmul.mubr.f32.gmra.mrb[0].mxu0 %v469
    %v471 = vpop.f32.mrb[0].mxu0
    %v472 = vadd.f32 %v374, %v471
    %v473 = vpop.f32.mrb[0].mxu0
    %474 = vmatprep.mubr.f32.mxu0 0.0
    %v475 = vand.u32 %v79, 4294901760
    %v476 = vsub.f32 %v79, %v475
    %v477 = vand.u32 %v476, 4294901760
    %478 = vmatmul.mubr.f32.gmra.mrb[0].mxu0 %v477
    %v479 = vpop.f32.mrb[0].mxu0
    %v480 = vadd.f32 %v381, %v479
    %v481 = vpop.f32.mrb[0].mxu0
    %482 = vdwg.mxu0
    %483 = vmatprep.subr.mxu0 0.0
    %v484 = vand.u32 %v59, 4294901760
    %v485 = vsub.f32 %v59, %v484
    %v486 = vand.u32 %v485, 4294901760
    %487 = vmatpush1.msra.mxu0 %v486
    %488 = vmatprep.subr.mxu0 0.0
    %v489 = vand.u32 %v60, 4294901760
    %v490 = vsub.f32 %v60, %v489
    %v491 = vand.u32 %v490, 4294901760
    %492 = vmatpush1.msra.mxu0 %v491
    %493 = vmatprep.subr.mxu0 0.0
    %494 = vmatpush1.msra.mxu0 0.0
    %495 = vmatprep.subr.mxu0 0.0
    %496 = vmatpush1.msra.mxu0 0.0
    %497 = vmatprep.subr.mxu0 0.0
    %498 = vmatpush1.msra.mxu0 0.0
    %499 = vmatprep.subr.mxu0 0.0
    %500 = vmatpush1.msra.mxu0 0.0
    %501 = vmatprep.subr.mxu0 0.0
    %502 = vmatpush1.msra.mxu0 0.0
    %503 = vmatprep.subr.mxu0 0.0
    %504 = vmatpush1.msra.mxu0 0.0
    %505 = vmatprep.subr.mxu0 0.0
    %506 = vmatpush1.msra.mxu0 0.0
    %507 = vmatprep.subr.mxu0 0.0
    %508 = vmatpush1.msra.mxu0 0.0
    %509 = vmatprep.subr.mxu0 0.0
    %510 = vmatpush1.msra.mxu0 0.0
    %511 = vmatprep.subr.mxu0 0.0
    %512 = vmatpush1.msra.mxu0 0.0
    %513 = vmatprep.subr.mxu0 0.0
    %514 = vmatpush1.msra.mxu0 0.0
    %515 = vmatprep.subr.mxu0 0.0
    %516 = vmatpush1.msra.mxu0 0.0
    %517 = vmatprep.subr.mxu0 0.0
    %518 = vmatpush1.msra.mxu0 0.0
    %519 = vmatprep.subr.mxu0 0.0
    %520 = vmatpush1.msra.mxu0 0.0
    %521 = vmatprep.subr.mxu0 0.0
    %522 = vmatpush1.msra.mxu0 0.0
    %523 = vmatprep.subr.mxu0 0.0
    %524 = vmatpush1.msra.mxu0 0.0
    %525 = vmatprep.subr.mxu0 0.0
    %526 = vmatpush1.msra.mxu0 0.0
    %527 = vmatprep.subr.mxu0 0.0
    %528 = vmatpush1.msra.mxu0 0.0
    %529 = vmatprep.subr.mxu0 0.0
    %530 = vmatpush1.msra.mxu0 0.0
    %531 = vmatprep.subr.mxu0 0.0
    %532 = vmatpush1.msra.mxu0 0.0
    %533 = vmatprep.subr.mxu0 0.0
    %534 = vmatpush1.msra.mxu0 0.0
    %535 = vmatprep.subr.mxu0 0.0
    %536 = vmatpush1.msra.mxu0 0.0
    %537 = vmatprep.subr.mxu0 0.0
    %538 = vmatpush1.msra.mxu0 0.0
    %539 = vmatprep.subr.mxu0 0.0
    %540 = vmatpush1.msra.mxu0 0.0
    %541 = vmatprep.subr.mxu0 0.0
    %542 = vmatpush1.msra.mxu0 0.0
    %543 = vmatprep.subr.mxu0 0.0
    %544 = vmatpush1.msra.mxu0 0.0
    %545 = vmatprep.subr.mxu0 0.0
    %546 = vmatpush1.msra.mxu0 0.0
    %547 = vmatprep.subr.mxu0 0.0
    %548 = vmatpush1.msra.mxu0 0.0
    %549 = vmatprep.subr.mxu0 0.0
    %550 = vmatpush1.msra.mxu0 0.0
    %551 = vmatprep.subr.mxu0 0.0
    %552 = vmatpush1.msra.mxu0 0.0
    %553 = vmatprep.mubr.f32.mxu0 0.0
    %v554 = vand.u32 %v70, 4294901760
    %555 = vmatmul.mubr.f32.gmra.mrb[0].mxu0 %v554
    %v556 = vpop.f32.mrb[0].mxu0
    %v557 = vadd.f32 %v456, %v556
    %v558 = vpop.f32.mrb[0].mxu0
    %559 = vmatprep.mubr.f32.mxu0 0.0
    %v560 = vand.u32 %v73, 4294901760
    %561 = vmatmul.mubr.f32.gmra.mrb[0].mxu0 %v560
    %v562 = vpop.f32.mrb[0].mxu0
    %v563 = vadd.f32 %v464, %v562
    %v564 = vpop.f32.mrb[0].mxu0
    %565 = vmatprep.mubr.f32.mxu0 0.0
    %v566 = vand.u32 %v76, 4294901760
    %567 = vmatmul.mubr.f32.gmra.mrb[0].mxu0 %v566
    %v568 = vpop.f32.mrb[0].mxu0
    %v569 = vadd.f32 %v472, %v568
    %v570 = vpop.f32.mrb[0].mxu0
    %571 = vmatprep.mubr.f32.mxu0 0.0
    %v572 = vand.u32 %v79, 4294901760
    %573 = vmatmul.mubr.f32.gmra.mrb[0].mxu0 %v572
    %v574 = vpop.f32.mrb[0].mxu0
    %v575 = vadd.f32 %v480, %v574
    %v576 = vpop.f32.mrb[0].mxu0
    %577 = vdwg.mxu0
    %578 = vmatprep.subr.mxu0 0.0
    %v579 = vand.u32 %v59, 4294901760
    %580 = vmatpush1.msra.mxu0 %v579
    %581 = vmatprep.subr.mxu0 0.0
    %v582 = vand.u32 %v60, 4294901760
    %583 = vmatpush1.msra.mxu0 %v582
    %584 = vmatprep.subr.mxu0 0.0
    %585 = vmatpush1.msra.mxu0 0.0
    %586 = vmatprep.subr.mxu0 0.0
    %587 = vmatpush1.msra.mxu0 0.0
    %588 = vmatprep.subr.mxu0 0.0
    %589 = vmatpush1.msra.mxu0 0.0
    %590 = vmatprep.subr.mxu0 0.0
    %591 = vmatpush1.msra.mxu0 0.0
    %592 = vmatprep.subr.mxu0 0.0
    %593 = vmatpush1.msra.mxu0 0.0
    %594 = vmatprep.subr.mxu0 0.0
    %595 = vmatpush1.msra.mxu0 0.0
    %596 = vmatprep.subr.mxu0 0.0
    %597 = vmatpush1.msra.mxu0 0.0
    %598 = vmatprep.subr.mxu0 0.0
    %599 = vmatpush1.msra.mxu0 0.0
    %600 = vmatprep.subr.mxu0 0.0
    %601 = vmatpush1.msra.mxu0 0.0
    %602 = vmatprep.subr.mxu0 0.0
    %603 = vmatpush1.msra.mxu0 0.0
    %604 = vmatprep.subr.mxu0 0.0
    %605 = vmatpush1.msra.mxu0 0.0
    %606 = vmatprep.subr.mxu0 0.0
    %607 = vmatpush1.msra.mxu0 0.0
    %608 = vmatprep.subr.mxu0 0.0
    %609 = vmatpush1.msra.mxu0 0.0
    %610 = vmatprep.subr.mxu0 0.0
    %611 = vmatpush1.msra.mxu0 0.0
    %612 = vmatprep.subr.mxu0 0.0
    %613 = vmatpush1.msra.mxu0 0.0
    %614 = vmatprep.subr.mxu0 0.0
    %615 = vmatpush1.msra.mxu0 0.0
    %616 = vmatprep.subr.mxu0 0.0
    %617 = vmatpush1.msra.mxu0 0.0
    %618 = vmatprep.subr.mxu0 0.0
    %619 = vmatpush1.msra.mxu0 0.0
    %620 = vmatprep.subr.mxu0 0.0
    %621 = vmatpush1.msra.mxu0 0.0
    %622 = vmatprep.subr.mxu0 0.0
    %623 = vmatpush1.msra.mxu0 0.0
    %624 = vmatprep.subr.mxu0 0.0
    %625 = vmatpush1.msra.mxu0 0.0
    %626 = vmatprep.subr.mxu0 0.0
    %627 = vmatpush1.msra.mxu0 0.0
    %628 = vmatprep.subr.mxu0 0.0
    %629 = vmatpush1.msra.mxu0 0.0
    %630 = vmatprep.subr.mxu0 0.0
    %631 = vmatpush1.msra.mxu0 0.0
    %632 = vmatprep.subr.mxu0 0.0
    %633 = vmatpush1.msra.mxu0 0.0
    %634 = vmatprep.subr.mxu0 0.0
    %635 = vmatpush1.msra.mxu0 0.0
    %636 = vmatprep.subr.mxu0 0.0
    %637 = vmatpush1.msra.mxu0 0.0
    %638 = vmatprep.subr.mxu0 0.0
    %639 = vmatpush1.msra.mxu0 0.0
    %640 = vmatprep.subr.mxu0 0.0
    %641 = vmatpush1.msra.mxu0 0.0
    %642 = vmatprep.subr.mxu0 0.0
    %643 = vmatpush1.msra.mxu0 0.0
    %644 = vmatprep.mubr.f32.mxu0 0.0
    %v645 = vand.u32 %v70, 4294901760
    %646 = vmatmul.mubr.f32.gmra.mrb[0].mxu0 %v645
    %v647 = vpop.f32.mrb[0].mxu0
    %v648 = vadd.f32 %v557, %v647
    %v649 = vpop.f32.mrb[0].mxu0
    %650 = vmatprep.mubr.f32.mxu0 0.0
    %v651 = vand.u32 %v73, 4294901760
    %652 = vmatmul.mubr.f32.gmra.mrb[0].mxu0 %v651
    %v653 = vpop.f32.mrb[0].mxu0
    %v654 = vadd.f32 %v563, %v653
    %v655 = vpop.f32.mrb[0].mxu0
    %656 = vmatprep.mubr.f32.mxu0 0.0
    %v657 = vand.u32 %v76, 4294901760
    %658 = vmatmul.mubr.f32.gmra.mrb[0].mxu0 %v657
    %v659 = vpop.f32.mrb[0].mxu0
    %v660 = vadd.f32 %v569, %v659
    %v661 = vpop.f32.mrb[0].mxu0
    %662 = vmatprep.mubr.f32.mxu0 0.0
    %v663 = vand.u32 %v79, 4294901760
    %664 = vmatmul.mubr.f32.gmra.mrb[0].mxu0 %v663
    %v665 = vpop.f32.mrb[0].mxu0
    %v666 = vadd.f32 %v575, %v665
    %v667 = vpop.f32.mrb[0].mxu0
    %668 = vdwg.mxu0
    %v669 = vmax.f32 %v648, 0.0
    %v670 = vmax.f32 %v654, 0.0
    %v671 = vmax.f32 %v660, 0.0
    %v672 = vmax.f32 %v666, 0.0
    %v673 = vld [vmem:[#allocation2] sm:$0xff]
    %v674 = vld [vmem:[#allocation2 + $0x8] sm:$0xff]
    %v675 = vld [vmem:[#allocation2 + $0x10] sm:$0xff]
    %v676 = vld [vmem:[#allocation2 + $0x18] sm:$0xff]
    %v677 = vld [vmem:[#allocation2 + $0x20] sm:$0xff]
    %v678 = vld [vmem:[#allocation2 + $0x28] sm:$0xff]
    %v679 = vld [vmem:[#allocation2 + $0x30] sm:$0xff]
    %v680 = vld [vmem:[#allocation2 + $0x38] sm:$0xff]
    %v681 = vld [vmem:[#allocation2 + $0x40] sm:$0xff]
    %v682 = vld [vmem:[#allocation2 + $0x48] sm:$0xff]
    %v683 = vld [vmem:[#allocation2 + $0x50] sm:$0xff]
    %v684 = vld [vmem:[#allocation2 + $0x58] sm:$0xff]
    %v685 = vld [vmem:[#allocation2 + $0x60] sm:$0xff]
    %v686 = vld [vmem:[#allocation2 + $0x68] sm:$0xff]
    %v687 = vld [vmem:[#allocation2 + $0x70] sm:$0xff]
    %v688 = vld [vmem:[#allocation2 + $0x78] sm:$0xff]
    %v689 = vld [vmem:[%s4] sm:$0x1]
    %v691 = vlaneseq
    %v692 = vshrl.u32 %v691, 7
    %v693 = vsub.s32 0, %v692
    %v694 = vrot.slane %v689, %v693
    %696 = vmatprep.subr.mxu0 0.0
    %v697 = vand.u32 %v673, 4294901760
    %698 = vmatpush1.msra.mxu0 %v697
    %699 = vmatprep.subr.mxu0 0.0
    %v700 = vand.u32 %v674, 4294901760
    %701 = vmatpush1.msra.mxu0 %v700
    %702 = vmatprep.subr.mxu0 0.0
    %v703 = vand.u32 %v675, 4294901760
    %704 = vmatpush1.msra.mxu0 %v703
    %705 = vmatprep.subr.mxu0 0.0
    %v706 = vand.u32 %v676, 4294901760
    %707 = vmatpush1.msra.mxu0 %v706
    %708 = vmatprep.subr.mxu0 0.0
    %v709 = vand.u32 %v677, 4294901760
    %710 = vmatpush1.msra.mxu0 %v709
    %711 = vmatprep.subr.mxu0 0.0
    %v712 = vand.u32 %v678, 4294901760
    %713 = vmatpush1.msra.mxu0 %v712
    %714 = vmatprep.subr.mxu0 0.0
    %v715 = vand.u32 %v679, 4294901760
    %716 = vmatpush1.msra.mxu0 %v715
    %717 = vmatprep.subr.mxu0 0.0
    %v718 = vand.u32 %v680, 4294901760
    %719 = vmatpush1.msra.mxu0 %v718
    %720 = vmatprep.subr.mxu0 0.0
    %v721 = vand.u32 %v681, 4294901760
    %722 = vmatpush1.msra.mxu0 %v721
    %723 = vmatprep.subr.mxu0 0.0
    %v724 = vand.u32 %v682, 4294901760
    %725 = vmatpush1.msra.mxu0 %v724
    %726 = vmatprep.subr.mxu0 0.0
    %v727 = vand.u32 %v683, 4294901760
    %728 = vmatpush1.msra.mxu0 %v727
    %729 = vmatprep.subr.mxu0 0.0
    %v730 = vand.u32 %v684, 4294901760
    %731 = vmatpush1.msra.mxu0 %v730
    %732 = vmatprep.subr.mxu0 0.0
    %v733 = vand.u32 %v685, 4294901760
    %734 = vmatpush1.msra.mxu0 %v733
    %735 = vmatprep.subr.mxu0 0.0
    %v736 = vand.u32 %v686, 4294901760
    %737 = vmatpush1.msra.mxu0 %v736
    %738 = vmatprep.subr.mxu0 0.0
    %v739 = vand.u32 %v687, 4294901760
    %740 = vmatpush1.msra.mxu0 %v739
    %741 = vmatprep.subr.mxu0 0.0
    %v742 = vand.u32 %v688, 4294901760
    %743 = vmatpush1.msra.mxu0 %v742
    %744 = vmatprep.subr.mxu0 0.0
    %745 = vmatpush1.msra.mxu0 0.0
    %746 = vmatprep.subr.mxu0 0.0
    %747 = vmatpush1.msra.mxu0 0.0
    %748 = vmatprep.subr.mxu0 0.0
    %749 = vmatpush1.msra.mxu0 0.0
    %750 = vmatprep.subr.mxu0 0.0
    %751 = vmatpush1.msra.mxu0 0.0
    %752 = vmatprep.subr.mxu0 0.0
    %753 = vmatpush1.msra.mxu0 0.0
    %754 = vmatprep.subr.mxu0 0.0
    %755 = vmatpush1.msra.mxu0 0.0
    %756 = vmatprep.subr.mxu0 0.0
    %757 = vmatpush1.msra.mxu0 0.0
    %758 = vmatprep.subr.mxu0 0.0
    %759 = vmatpush1.msra.mxu0 0.0
    %760 = vmatprep.subr.mxu0 0.0
    %761 = vmatpush1.msra.mxu0 0.0
    %762 = vmatprep.subr.mxu0 0.0
    %763 = vmatpush1.msra.mxu0 0.0
    %764 = vmatprep.subr.mxu0 0.0
    %765 = vmatpush1.msra.mxu0 0.0
    %766 = vmatprep.subr.mxu0 0.0
    %767 = vmatpush1.msra.mxu0 0.0
    %768 = vmatprep.subr.mxu0 0.0
    %769 = vmatpush1.msra.mxu0 0.0
    %770 = vmatprep.subr.mxu0 0.0
    %771 = vmatpush1.msra.mxu0 0.0
    %772 = vmatprep.subr.mxu0 0.0
    %773 = vmatpush1.msra.mxu0 0.0
    %774 = vmatprep.subr.mxu0 0.0
    %775 = vmatpush1.msra.mxu0 0.0
    %776 = vmatprep.mubr.f32.mxu0 0.0
    %v777 = vand.u32 %v669, 4294901760
    %v778 = vsub.f32 %v669, %v777
    %v779 = vand.u32 %v778, 4294901760
    %v780 = vsub.f32 %v778, %v779
    %v781 = vand.u32 %v780, 4294901760
    %782 = vmatmul.mubr.f32.gmra.mrb[0].mxu0 %v781
    %v783 = vpop.f32.mrb[0].mxu0
    %v784 = vadd.f32 %v694, %v783
    %v785 = vpop.f32.mrb[0].mxu0
    %786 = vmatprep.mubr.f32.mxu0 0.0
    %v787 = vand.u32 %v670, 4294901760
    %v788 = vsub.f32 %v670, %v787
    %v789 = vand.u32 %v788, 4294901760
    %v790 = vsub.f32 %v788, %v789
    %v791 = vand.u32 %v790, 4294901760
    %792 = vmatmul.mubr.f32.gmra.mrb[0].mxu0 %v791
    %v793 = vpop.f32.mrb[0].mxu0
    %v794 = vadd.f32 %v694, %v793
    %v795 = vpop.f32.mrb[0].mxu0
    %796 = vmatprep.mubr.f32.mxu0 0.0
    %v797 = vand.u32 %v671, 4294901760
    %v798 = vsub.f32 %v671, %v797
    %v799 = vand.u32 %v798, 4294901760
    %v800 = vsub.f32 %v798, %v799
    %v801 = vand.u32 %v800, 4294901760
    %802 = vmatmul.mubr.f32.gmra.mrb[0].mxu0 %v801
    %v803 = vpop.f32.mrb[0].mxu0
    %v804 = vadd.f32 %v694, %v803
    %v805 = vpop.f32.mrb[0].mxu0
    %806 = vmatprep.mubr.f32.mxu0 0.0
    %v807 = vand.u32 %v672, 4294901760
    %v808 = vsub.f32 %v672, %v807
    %v809 = vand.u32 %v808, 4294901760
    %v810 = vsub.f32 %v808, %v809
    %v811 = vand.u32 %v810, 4294901760
    %812 = vmatmul.mubr.f32.gmra.mrb[0].mxu0 %v811
    %v813 = vpop.f32.mrb[0].mxu0
    %v814 = vadd.f32 %v694, %v813
    %v815 = vpop.f32.mrb[0].mxu0
    %816 = vdwg.mxu0
    %817 = vmatprep.subr.mxu0 0.0
    %v818 = vand.u32 %v673, 4294901760
    %v819 = vsub.f32 %v673, %v818
    %v820 = vand.u32 %v819, 4294901760
    %v821 = vsub.f32 %v819, %v820
    %v822 = vand.u32 %v821, 4294901760
    %823 = vmatpush1.msra.mxu0 %v822
    %824 = vmatprep.subr.mxu0 0.0
    %v825 = vand.u32 %v674, 4294901760
    %v826 = vsub.f32 %v674, %v825
    %v827 = vand.u32 %v826, 4294901760
    %v828 = vsub.f32 %v826, %v827
    %v829 = vand.u32 %v828, 4294901760
    %830 = vmatpush1.msra.mxu0 %v829
    %831 = vmatprep.subr.mxu0 0.0
    %v832 = vand.u32 %v675, 4294901760
    %v833 = vsub.f32 %v675, %v832
    %v834 = vand.u32 %v833, 4294901760
    %v835 = vsub.f32 %v833, %v834
    %v836 = vand.u32 %v835, 4294901760
    %837 = vmatpush1.msra.mxu0 %v836
    %838 = vmatprep.subr.mxu0 0.0
    %v839 = vand.u32 %v676, 4294901760
    %v840 = vsub.f32 %v676, %v839
    %v841 = vand.u32 %v840, 4294901760
    %v842 = vsub.f32 %v840, %v841
    %v843 = vand.u32 %v842, 4294901760
    %844 = vmatpush1.msra.mxu0 %v843
    %845 = vmatprep.subr.mxu0 0.0
    %v846 = vand.u32 %v677, 4294901760
    %v847 = vsub.f32 %v677, %v846
    %v848 = vand.u32 %v847, 4294901760
    %v849 = vsub.f32 %v847, %v848
    %v850 = vand.u32 %v849, 4294901760
    %851 = vmatpush1.msra.mxu0 %v850
    %852 = vmatprep.subr.mxu0 0.0
    %v853 = vand.u32 %v678, 4294901760
    %v854 = vsub.f32 %v678, %v853
    %v855 = vand.u32 %v854, 4294901760
    %v856 = vsub.f32 %v854, %v855
    %v857 = vand.u32 %v856, 4294901760
    %858 = vmatpush1.msra.mxu0 %v857
    %859 = vmatprep.subr.mxu0 0.0
    %v860 = vand.u32 %v679, 4294901760
    %v861 = vsub.f32 %v679, %v860
    %v862 = vand.u32 %v861, 4294901760
    %v863 = vsub.f32 %v861, %v862
    %v864 = vand.u32 %v863, 4294901760
    %865 = vmatpush1.msra.mxu0 %v864
    %866 = vmatprep.subr.mxu0 0.0
    %v867 = vand.u32 %v680, 4294901760
    %v868 = vsub.f32 %v680, %v867
    %v869 = vand.u32 %v868, 4294901760
    %v870 = vsub.f32 %v868, %v869
    %v871 = vand.u32 %v870, 4294901760
    %872 = vmatpush1.msra.mxu0 %v871
    %873 = vmatprep.subr.mxu0 0.0
    %v874 = vand.u32 %v681, 4294901760
    %v875 = vsub.f32 %v681, %v874
    %v876 = vand.u32 %v875, 4294901760
    %v877 = vsub.f32 %v875, %v876
    %v878 = vand.u32 %v877, 4294901760
    %879 = vmatpush1.msra.mxu0 %v878
    %880 = vmatprep.subr.mxu0 0.0
    %v881 = vand.u32 %v682, 4294901760
    %v882 = vsub.f32 %v682, %v881
    %v883 = vand.u32 %v882, 4294901760
    %v884 = vsub.f32 %v882, %v883
    %v885 = vand.u32 %v884, 4294901760
    %886 = vmatpush1.msra.mxu0 %v885
    %887 = vmatprep.subr.mxu0 0.0
    %v888 = vand.u32 %v683, 4294901760
    %v889 = vsub.f32 %v683, %v888
    %v890 = vand.u32 %v889, 4294901760
    %v891 = vsub.f32 %v889, %v890
    %v892 = vand.u32 %v891, 4294901760
    %893 = vmatpush1.msra.mxu0 %v892
    %894 = vmatprep.subr.mxu0 0.0
    %v895 = vand.u32 %v684, 4294901760
    %v896 = vsub.f32 %v684, %v895
    %v897 = vand.u32 %v896, 4294901760
    %v898 = vsub.f32 %v896, %v897
    %v899 = vand.u32 %v898, 4294901760
    %900 = vmatpush1.msra.mxu0 %v899
    %901 = vmatprep.subr.mxu0 0.0
    %v902 = vand.u32 %v685, 4294901760
    %v903 = vsub.f32 %v685, %v902
    %v904 = vand.u32 %v903, 4294901760
    %v905 = vsub.f32 %v903, %v904
    %v906 = vand.u32 %v905, 4294901760
    %907 = vmatpush1.msra.mxu0 %v906
    %908 = vmatprep.subr.mxu0 0.0
    %v909 = vand.u32 %v686, 4294901760
    %v910 = vsub.f32 %v686, %v909
    %v911 = vand.u32 %v910, 4294901760
    %v912 = vsub.f32 %v910, %v911
    %v913 = vand.u32 %v912, 4294901760
    %914 = vmatpush1.msra.mxu0 %v913
    %915 = vmatprep.subr.mxu0 0.0
    %v916 = vand.u32 %v687, 4294901760
    %v917 = vsub.f32 %v687, %v916
    %v918 = vand.u32 %v917, 4294901760
    %v919 = vsub.f32 %v917, %v918
    %v920 = vand.u32 %v919, 4294901760
    %921 = vmatpush1.msra.mxu0 %v920
    %922 = vmatprep.subr.mxu0 0.0
    %v923 = vand.u32 %v688, 4294901760
    %v924 = vsub.f32 %v688, %v923
    %v925 = vand.u32 %v924, 4294901760
    %v926 = vsub.f32 %v924, %v925
    %v927 = vand.u32 %v926, 4294901760
    %928 = vmatpush1.msra.mxu0 %v927
    %929 = vmatprep.subr.mxu0 0.0
    %930 = vmatpush1.msra.mxu0 0.0
    %931 = vmatprep.subr.mxu0 0.0
    %932 = vmatpush1.msra.mxu0 0.0
    %933 = vmatprep.subr.mxu0 0.0
    %934 = vmatpush1.msra.mxu0 0.0
    %935 = vmatprep.subr.mxu0 0.0
    %936 = vmatpush1.msra.mxu0 0.0
    %937 = vmatprep.subr.mxu0 0.0
    %938 = vmatpush1.msra.mxu0 0.0
    %939 = vmatprep.subr.mxu0 0.0
    %940 = vmatpush1.msra.mxu0 0.0
    %941 = vmatprep.subr.mxu0 0.0
    %942 = vmatpush1.msra.mxu0 0.0
    %943 = vmatprep.subr.mxu0 0.0
    %944 = vmatpush1.msra.mxu0 0.0
    %945 = vmatprep.subr.mxu0 0.0
    %946 = vmatpush1.msra.mxu0 0.0
    %947 = vmatprep.subr.mxu0 0.0
    %948 = vmatpush1.msra.mxu0 0.0
    %949 = vmatprep.subr.mxu0 0.0
    %950 = vmatpush1.msra.mxu0 0.0
    %951 = vmatprep.subr.mxu0 0.0
    %952 = vmatpush1.msra.mxu0 0.0
    %953 = vmatprep.subr.mxu0 0.0
    %954 = vmatpush1.msra.mxu0 0.0
    %955 = vmatprep.subr.mxu0 0.0
    %956 = vmatpush1.msra.mxu0 0.0
    %957 = vmatprep.subr.mxu0 0.0
    %958 = vmatpush1.msra.mxu0 0.0
    %959 = vmatprep.subr.mxu0 0.0
    %960 = vmatpush1.msra.mxu0 0.0
    %961 = vmatprep.mubr.f32.mxu0 0.0
    %v962 = vand.u32 %v669, 4294901760
    %963 = vmatmul.mubr.f32.gmra.mrb[0].mxu0 %v962
    %v964 = vpop.f32.mrb[0].mxu0
    %v965 = vadd.f32 %v784, %v964
    %v966 = vpop.f32.mrb[0].mxu0
    %967 = vmatprep.mubr.f32.mxu0 0.0
    %v968 = vand.u32 %v670, 4294901760
    %969 = vmatmul.mubr.f32.gmra.mrb[0].mxu0 %v968
    %v970 = vpop.f32.mrb[0].mxu0
    %v971 = vadd.f32 %v794, %v970
    %v972 = vpop.f32.mrb[0].mxu0
    %973 = vmatprep.mubr.f32.mxu0 0.0
    %v974 = vand.u32 %v671, 4294901760
    %975 = vmatmul.mubr.f32.gmra.mrb[0].mxu0 %v974
    %v976 = vpop.f32.mrb[0].mxu0
    %v977 = vadd.f32 %v804, %v976
    %v978 = vpop.f32.mrb[0].mxu0
    %979 = vmatprep.mubr.f32.mxu0 0.0
    %v980 = vand.u32 %v672, 4294901760
    %981 = vmatmul.mubr.f32.gmra.mrb[0].mxu0 %v980
    %v982 = vpop.f32.mrb[0].mxu0
    %v983 = vadd.f32 %v814, %v982
    %v984 = vpop.f32.mrb[0].mxu0
    %985 = vdwg.mxu0
    %986 = vmatprep.subr.mxu0 0.0
    %v987 = vand.u32 %v673, 4294901760
    %v988 = vsub.f32 %v673, %v987
    %989 = vmatpush1.msra.mxu0 %v988
    %990 = vmatprep.subr.mxu0 0.0
    %v991 = vand.u32 %v674, 4294901760
    %v992 = vsub.f32 %v674, %v991
    %993 = vmatpush1.msra.mxu0 %v992
    %994 = vmatprep.subr.mxu0 0.0
    %v995 = vand.u32 %v675, 4294901760
    %v996 = vsub.f32 %v675, %v995
    %997 = vmatpush1.msra.mxu0 %v996
    %998 = vmatprep.subr.mxu0 0.0
    %v999 = vand.u32 %v676, 4294901760
    %v1000 = vsub.f32 %v676, %v999
    %1001 = vmatpush1.msra.mxu0 %v1000
    %1002 = vmatprep.subr.mxu0 0.0
    %v1003 = vand.u32 %v677, 4294901760
    %v1004 = vsub.f32 %v677, %v1003
    %1005 = vmatpush1.msra.mxu0 %v1004
    %1006 = vmatprep.subr.mxu0 0.0
    %v1007 = vand.u32 %v678, 4294901760
    %v1008 = vsub.f32 %v678, %v1007
    %1009 = vmatpush1.msra.mxu0 %v1008
    %1010 = vmatprep.subr.mxu0 0.0
    %v1011 = vand.u32 %v679, 4294901760
    %v1012 = vsub.f32 %v679, %v1011
    %1013 = vmatpush1.msra.mxu0 %v1012
    %1014 = vmatprep.subr.mxu0 0.0
    %v1015 = vand.u32 %v680, 4294901760
    %v1016 = vsub.f32 %v680, %v1015
    %1017 = vmatpush1.msra.mxu0 %v1016
    %1018 = vmatprep.subr.mxu0 0.0
    %v1019 = vand.u32 %v681, 4294901760
    %v1020 = vsub.f32 %v681, %v1019
    %1021 = vmatpush1.msra.mxu0 %v1020
    %1022 = vmatprep.subr.mxu0 0.0
    %v1023 = vand.u32 %v682, 4294901760
    %v1024 = vsub.f32 %v682, %v1023
    %1025 = vmatpush1.msra.mxu0 %v1024
    %1026 = vmatprep.subr.mxu0 0.0
    %v1027 = vand.u32 %v683, 4294901760
    %v1028 = vsub.f32 %v683, %v1027
    %1029 = vmatpush1.msra.mxu0 %v1028
    %1030 = vmatprep.subr.mxu0 0.0
    %v1031 = vand.u32 %v684, 4294901760
    %v1032 = vsub.f32 %v684, %v1031
    %1033 = vmatpush1.msra.mxu0 %v1032
    %1034 = vmatprep.subr.mxu0 0.0
    %v1035 = vand.u32 %v685, 4294901760
    %v1036 = vsub.f32 %v685, %v1035
    %1037 = vmatpush1.msra.mxu0 %v1036
    %1038 = vmatprep.subr.mxu0 0.0
    %v1039 = vand.u32 %v686, 4294901760
    %v1040 = vsub.f32 %v686, %v1039
    %1041 = vmatpush1.msra.mxu0 %v1040
    %1042 = vmatprep.subr.mxu0 0.0
    %v1043 = vand.u32 %v687, 4294901760
    %v1044 = vsub.f32 %v687, %v1043
    %1045 = vmatpush1.msra.mxu0 %v1044
    %1046 = vmatprep.subr.mxu0 0.0
    %v1047 = vand.u32 %v688, 4294901760
    %v1048 = vsub.f32 %v688, %v1047
    %1049 = vmatpush1.msra.mxu0 %v1048
    %1050 = vmatprep.subr.mxu0 0.0
    %1051 = vmatpush1.msra.mxu0 0.0
    %1052 = vmatprep.subr.mxu0 0.0
    %1053 = vmatpush1.msra.mxu0 0.0
    %1054 = vmatprep.subr.mxu0 0.0
    %1055 = vmatpush1.msra.mxu0 0.0
    %1056 = vmatprep.subr.mxu0 0.0
    %1057 = vmatpush1.msra.mxu0 0.0
    %1058 = vmatprep.subr.mxu0 0.0
    %1059 = vmatpush1.msra.mxu0 0.0
    %1060 = vmatprep.subr.mxu0 0.0
    %1061 = vmatpush1.msra.mxu0 0.0
    %1062 = vmatprep.subr.mxu0 0.0
    %1063 = vmatpush1.msra.mxu0 0.0
    %1064 = vmatprep.subr.mxu0 0.0
    %1065 = vmatpush1.msra.mxu0 0.0
    %1066 = vmatprep.subr.mxu0 0.0
    %1067 = vmatpush1.msra.mxu0 0.0
    %1068 = vmatprep.subr.mxu0 0.0
    %1069 = vmatpush1.msra.mxu0 0.0
    %1070 = vmatprep.subr.mxu0 0.0
    %1071 = vmatpush1.msra.mxu0 0.0
    %1072 = vmatprep.subr.mxu0 0.0
    %1073 = vmatpush1.msra.mxu0 0.0
    %1074 = vmatprep.subr.mxu0 0.0
    %1075 = vmatpush1.msra.mxu0 0.0
    %1076 = vmatprep.subr.mxu0 0.0
    %1077 = vmatpush1.msra.mxu0 0.0
    %1078 = vmatprep.subr.mxu0 0.0
    %1079 = vmatpush1.msra.mxu0 0.0
    %1080 = vmatprep.subr.mxu0 0.0
    %1081 = vmatpush1.msra.mxu0 0.0
    %1082 = vmatprep.mubr.f32.mxu0 0.0
    %v1083 = vand.u32 %v669, 4294901760
    %v1084 = vsub.f32 %v669, %v1083
    %1085 = vmatmul.mubr.f32.gmra.mrb[0].mxu0 %v1084
    %v1086 = vpop.f32.mrb[0].mxu0
    %v1087 = vadd.f32 %v965, %v1086
    %v1088 = vpop.f32.mrb[0].mxu0
    %1089 = vmatprep.mubr.f32.mxu0 0.0
    %v1090 = vand.u32 %v670, 4294901760
    %v1091 = vsub.f32 %v670, %v1090
    %1092 = vmatmul.mubr.f32.gmra.mrb[0].mxu0 %v1091
    %v1093 = vpop.f32.mrb[0].mxu0
    %v1094 = vadd.f32 %v971, %v1093
    %v1095 = vpop.f32.mrb[0].mxu0
    %1096 = vmatprep.mubr.f32.mxu0 0.0
    %v1097 = vand.u32 %v671, 4294901760
    %v1098 = vsub.f32 %v671, %v1097
    %1099 = vmatmul.mubr.f32.gmra.mrb[0].mxu0 %v1098
    %v1100 = vpop.f32.mrb[0].mxu0
    %v1101 = vadd.f32 %v977, %v1100
    %v1102 = vpop.f32.mrb[0].mxu0
    %1103 = vmatprep.mubr.f32.mxu0 0.0
    %v1104 = vand.u32 %v672, 4294901760
    %v1105 = vsub.f32 %v672, %v1104
    %1106 = vmatmul.mubr.f32.gmra.mrb[0].mxu0 %v1105
    %v1107 = vpop.f32.mrb[0].mxu0
    %v1108 = vadd.f32 %v983, %v1107
    %v1109 = vpop.f32.mrb[0].mxu0
    %1110 = vdwg.mxu0
    %1111 = vmatprep.subr.mxu0 0.0
    %v1112 = vand.u32 %v673, 4294901760
    %1113 = vmatpush1.msra.mxu0 %v1112
    %1114 = vmatprep.subr.mxu0 0.0
    %v1115 = vand.u32 %v674, 4294901760
    %1116 = vmatpush1.msra.mxu0 %v1115
    %1117 = vmatprep.subr.mxu0 0.0
    %v1118 = vand.u32 %v675, 4294901760
    %1119 = vmatpush1.msra.mxu0 %v1118
    %1120 = vmatprep.subr.mxu0 0.0
    %v1121 = vand.u32 %v676, 4294901760
    %1122 = vmatpush1.msra.mxu0 %v1121
    %1123 = vmatprep.subr.mxu0 0.0
    %v1124 = vand.u32 %v677, 4294901760
    %1125 = vmatpush1.msra.mxu0 %v1124
    %1126 = vmatprep.subr.mxu0 0.0
    %v1127 = vand.u32 %v678, 4294901760
    %1128 = vmatpush1.msra.mxu0 %v1127
    %1129 = vmatprep.subr.mxu0 0.0
    %v1130 = vand.u32 %v679, 4294901760
    %1131 = vmatpush1.msra.mxu0 %v1130
    %1132 = vmatprep.subr.mxu0 0.0
    %v1133 = vand.u32 %v680, 4294901760
    %1134 = vmatpush1.msra.mxu0 %v1133
    %1135 = vmatprep.subr.mxu0 0.0
    %v1136 = vand.u32 %v681, 4294901760
    %1137 = vmatpush1.msra.mxu0 %v1136
    %1138 = vmatprep.subr.mxu0 0.0
    %v1139 = vand.u32 %v682, 4294901760
    %1140 = vmatpush1.msra.mxu0 %v1139
    %1141 = vmatprep.subr.mxu0 0.0
    %v1142 = vand.u32 %v683, 4294901760
    %1143 = vmatpush1.msra.mxu0 %v1142
    %1144 = vmatprep.subr.mxu0 0.0
    %v1145 = vand.u32 %v684, 4294901760
    %1146 = vmatpush1.msra.mxu0 %v1145
    %1147 = vmatprep.subr.mxu0 0.0
    %v1148 = vand.u32 %v685, 4294901760
    %1149 = vmatpush1.msra.mxu0 %v1148
    %1150 = vmatprep.subr.mxu0 0.0
    %v1151 = vand.u32 %v686, 4294901760
    %1152 = vmatpush1.msra.mxu0 %v1151
    %1153 = vmatprep.subr.mxu0 0.0
    %v1154 = vand.u32 %v687, 4294901760
    %1155 = vmatpush1.msra.mxu0 %v1154
    %1156 = vmatprep.subr.mxu0 0.0
    %v1157 = vand.u32 %v688, 4294901760
    %1158 = vmatpush1.msra.mxu0 %v1157
    %1159 = vmatprep.subr.mxu0 0.0
    %1160 = vmatpush1.msra.mxu0 0.0
    %1161 = vmatprep.subr.mxu0 0.0
    %1162 = vmatpush1.msra.mxu0 0.0
    %1163 = vmatprep.subr.mxu0 0.0
    %1164 = vmatpush1.msra.mxu0 0.0
    %1165 = vmatprep.subr.mxu0 0.0
    %1166 = vmatpush1.msra.mxu0 0.0
    %1167 = vmatprep.subr.mxu0 0.0
    %1168 = vmatpush1.msra.mxu0 0.0
    %1169 = vmatprep.subr.mxu0 0.0
    %1170 = vmatpush1.msra.mxu0 0.0
    %1171 = vmatprep.subr.mxu0 0.0
    %1172 = vmatpush1.msra.mxu0 0.0
    %1173 = vmatprep.subr.mxu0 0.0
    %1174 = vmatpush1.msra.mxu0 0.0
    %1175 = vmatprep.subr.mxu0 0.0
    %1176 = vmatpush1.msra.mxu0 0.0
    %1177 = vmatprep.subr.mxu0 0.0
    %1178 = vmatpush1.msra.mxu0 0.0
    %1179 = vmatprep.subr.mxu0 0.0
    %1180 = vmatpush1.msra.mxu0 0.0
    %1181 = vmatprep.subr.mxu0 0.0
    %1182 = vmatpush1.msra.mxu0 0.0
    %1183 = vmatprep.subr.mxu0 0.0
    %1184 = vmatpush1.msra.mxu0 0.0
    %1185 = vmatprep.subr.mxu0 0.0
    %1186 = vmatpush1.msra.mxu0 0.0
    %1187 = vmatprep.subr.mxu0 0.0
    %1188 = vmatpush1.msra.mxu0 0.0
    %1189 = vmatprep.subr.mxu0 0.0
    %1190 = vmatpush1.msra.mxu0 0.0
    %1191 = vmatprep.mubr.f32.mxu0 0.0
    %v1192 = vand.u32 %v669, 4294901760
    %v1193 = vsub.f32 %v669, %v1192
    %v1194 = vand.u32 %v1193, 4294901760
    %1195 = vmatmul.mubr.f32.gmra.mrb[0].mxu0 %v1194
    %v1196 = vpop.f32.mrb[0].mxu0
    %v1197 = vadd.f32 %v1087, %v1196
    %v1198 = vpop.f32.mrb[0].mxu0
    %1199 = vmatprep.mubr.f32.mxu0 0.0
    %v1200 = vand.u32 %v670, 4294901760
    %v1201 = vsub.f32 %v670, %v1200
    %v1202 = vand.u32 %v1201, 4294901760
    %1203 = vmatmul.mubr.f32.gmra.mrb[0].mxu0 %v1202
    %v1204 = vpop.f32.mrb[0].mxu0
    %v1205 = vadd.f32 %v1094, %v1204
    %v1206 = vpop.f32.mrb[0].mxu0
    %1207 = vmatprep.mubr.f32.mxu0 0.0
    %v1208 = vand.u32 %v671, 4294901760
    %v1209 = vsub.f32 %v671, %v1208
    %v1210 = vand.u32 %v1209, 4294901760
    %1211 = vmatmul.mubr.f32.gmra.mrb[0].mxu0 %v1210
    %v1212 = vpop.f32.mrb[0].mxu0
    %v1213 = vadd.f32 %v1101, %v1212
    %v1214 = vpop.f32.mrb[0].mxu0
    %1215 = vmatprep.mubr.f32.mxu0 0.0
    %v1216 = vand.u32 %v672, 4294901760
    %v1217 = vsub.f32 %v672, %v1216
    %v1218 = vand.u32 %v1217, 4294901760
    %1219 = vmatmul.mubr.f32.gmra.mrb[0].mxu0 %v1218
    %v1220 = vpop.f32.mrb[0].mxu0
    %v1221 = vadd.f32 %v1108, %v1220
    %v1222 = vpop.f32.mrb[0].mxu0
    %1223 = vdwg.mxu0
    %1224 = vmatprep.subr.mxu0 0.0
    %v1225 = vand.u32 %v673, 4294901760
    %v1226 = vsub.f32 %v673, %v1225
    %v1227 = vand.u32 %v1226, 4294901760
    %1228 = vmatpush1.msra.mxu0 %v1227
    %1229 = vmatprep.subr.mxu0 0.0
    %v1230 = vand.u32 %v674, 4294901760
    %v1231 = vsub.f32 %v674, %v1230
    %v1232 = vand.u32 %v1231, 4294901760
    %1233 = vmatpush1.msra.mxu0 %v1232
    %1234 = vmatprep.subr.mxu0 0.0
    %v1235 = vand.u32 %v675, 4294901760
    %v1236 = vsub.f32 %v675, %v1235
    %v1237 = vand.u32 %v1236, 4294901760
    %1238 = vmatpush1.msra.mxu0 %v1237
    %1239 = vmatprep.subr.mxu0 0.0
    %v1240 = vand.u32 %v676, 4294901760
    %v1241 = vsub.f32 %v676, %v1240
    %v1242 = vand.u32 %v1241, 4294901760
    %1243 = vmatpush1.msra.mxu0 %v1242
    %1244 = vmatprep.subr.mxu0 0.0
    %v1245 = vand.u32 %v677, 4294901760
    %v1246 = vsub.f32 %v677, %v1245
    %v1247 = vand.u32 %v1246, 4294901760
    %1248 = vmatpush1.msra.mxu0 %v1247
    %1249 = vmatprep.subr.mxu0 0.0
    %v1250 = vand.u32 %v678, 4294901760
    %v1251 = vsub.f32 %v678, %v1250
    %v1252 = vand.u32 %v1251, 4294901760
    %1253 = vmatpush1.msra.mxu0 %v1252
    %1254 = vmatprep.subr.mxu0 0.0
    %v1255 = vand.u32 %v679, 4294901760
    %v1256 = vsub.f32 %v679, %v1255
    %v1257 = vand.u32 %v1256, 4294901760
    %1258 = vmatpush1.msra.mxu0 %v1257
    %1259 = vmatprep.subr.mxu0 0.0
    %v1260 = vand.u32 %v680, 4294901760
    %v1261 = vsub.f32 %v680, %v1260
    %v1262 = vand.u32 %v1261, 4294901760
    %1263 = vmatpush1.msra.mxu0 %v1262
    %1264 = vmatprep.subr.mxu0 0.0
    %v1265 = vand.u32 %v681, 4294901760
    %v1266 = vsub.f32 %v681, %v1265
    %v1267 = vand.u32 %v1266, 4294901760
    %1268 = vmatpush1.msra.mxu0 %v1267
    %1269 = vmatprep.subr.mxu0 0.0
    %v1270 = vand.u32 %v682, 4294901760
    %v1271 = vsub.f32 %v682, %v1270
    %v1272 = vand.u32 %v1271, 4294901760
    %1273 = vmatpush1.msra.mxu0 %v1272
    %1274 = vmatprep.subr.mxu0 0.0
    %v1275 = vand.u32 %v683, 4294901760
    %v1276 = vsub.f32 %v683, %v1275
    %v1277 = vand.u32 %v1276, 4294901760
    %1278 = vmatpush1.msra.mxu0 %v1277
    %1279 = vmatprep.subr.mxu0 0.0
    %v1280 = vand.u32 %v684, 4294901760
    %v1281 = vsub.f32 %v684, %v1280
    %v1282 = vand.u32 %v1281, 4294901760
    %1283 = vmatpush1.msra.mxu0 %v1282
    %1284 = vmatprep.subr.mxu0 0.0
    %v1285 = vand.u32 %v685, 4294901760
    %v1286 = vsub.f32 %v685, %v1285
    %v1287 = vand.u32 %v1286, 4294901760
    %1288 = vmatpush1.msra.mxu0 %v1287
    %1289 = vmatprep.subr.mxu0 0.0
    %v1290 = vand.u32 %v686, 4294901760
    %v1291 = vsub.f32 %v686, %v1290
    %v1292 = vand.u32 %v1291, 4294901760
    %1293 = vmatpush1.msra.mxu0 %v1292
    %1294 = vmatprep.subr.mxu0 0.0
    %v1295 = vand.u32 %v687, 4294901760
    %v1296 = vsub.f32 %v687, %v1295
    %v1297 = vand.u32 %v1296, 4294901760
    %1298 = vmatpush1.msra.mxu0 %v1297
    %1299 = vmatprep.subr.mxu0 0.0
    %v1300 = vand.u32 %v688, 4294901760
    %v1301 = vsub.f32 %v688, %v1300
    %v1302 = vand.u32 %v1301, 4294901760
    %1303 = vmatpush1.msra.mxu0 %v1302
    %1304 = vmatprep.subr.mxu0 0.0
    %1305 = vmatpush1.msra.mxu0 0.0
    %1306 = vmatprep.subr.mxu0 0.0
    %1307 = vmatpush1.msra.mxu0 0.0
    %1308 = vmatprep.subr.mxu0 0.0
    %1309 = vmatpush1.msra.mxu0 0.0
    %1310 = vmatprep.subr.mxu0 0.0
    %1311 = vmatpush1.msra.mxu0 0.0
    %1312 = vmatprep.subr.mxu0 0.0
    %1313 = vmatpush1.msra.mxu0 0.0
    %1314 = vmatprep.subr.mxu0 0.0
    %1315 = vmatpush1.msra.mxu0 0.0
    %1316 = vmatprep.subr.mxu0 0.0
    %1317 = vmatpush1.msra.mxu0 0.0
    %1318 = vmatprep.subr.mxu0 0.0
    %1319 = vmatpush1.msra.mxu0 0.0
    %1320 = vmatprep.subr.mxu0 0.0
    %1321 = vmatpush1.msra.mxu0 0.0
    %1322 = vmatprep.subr.mxu0 0.0
    %1323 = vmatpush1.msra.mxu0 0.0
    %1324 = vmatprep.subr.mxu0 0.0
    %1325 = vmatpush1.msra.mxu0 0.0
    %1326 = vmatprep.subr.mxu0 0.0
    %1327 = vmatpush1.msra.mxu0 0.0
    %1328 = vmatprep.subr.mxu0 0.0
    %1329 = vmatpush1.msra.mxu0 0.0
    %1330 = vmatprep.subr.mxu0 0.0
    %1331 = vmatpush1.msra.mxu0 0.0
    %1332 = vmatprep.subr.mxu0 0.0
    %1333 = vmatpush1.msra.mxu0 0.0
    %1334 = vmatprep.subr.mxu0 0.0
    %1335 = vmatpush1.msra.mxu0 0.0
    %1336 = vmatprep.mubr.f32.mxu0 0.0
    %v1337 = vand.u32 %v669, 4294901760
    %1338 = vmatmul.mubr.f32.gmra.mrb[0].mxu0 %v1337
    %v1339 = vpop.f32.mrb[0].mxu0
    %v1340 = vadd.f32 %v1197, %v1339
    %v1341 = vpop.f32.mrb[0].mxu0
    %1342 = vmatprep.mubr.f32.mxu0 0.0
    %v1343 = vand.u32 %v670, 4294901760
    %1344 = vmatmul.mubr.f32.gmra.mrb[0].mxu0 %v1343
    %v1345 = vpop.f32.mrb[0].mxu0
    %v1346 = vadd.f32 %v1205, %v1345
    %v1347 = vpop.f32.mrb[0].mxu0
    %1348 = vmatprep.mubr.f32.mxu0 0.0
    %v1349 = vand.u32 %v671, 4294901760
    %1350 = vmatmul.mubr.f32.gmra.mrb[0].mxu0 %v1349
    %v1351 = vpop.f32.mrb[0].mxu0
    %v1352 = vadd.f32 %v1213, %v1351
    %v1353 = vpop.f32.mrb[0].mxu0
    %1354 = vmatprep.mubr.f32.mxu0 0.0
    %v1355 = vand.u32 %v672, 4294901760
    %1356 = vmatmul.mubr.f32.gmra.mrb[0].mxu0 %v1355
    %v1357 = vpop.f32.mrb[0].mxu0
    %v1358 = vadd.f32 %v1221, %v1357
    %v1359 = vpop.f32.mrb[0].mxu0
    %1360 = vdwg.mxu0
    %1361 = vmatprep.subr.mxu0 0.0
    %v1362 = vand.u32 %v673, 4294901760
    %1363 = vmatpush1.msra.mxu0 %v1362
    %1364 = vmatprep.subr.mxu0 0.0
    %v1365 = vand.u32 %v674, 4294901760
    %1366 = vmatpush1.msra.mxu0 %v1365
    %1367 = vmatprep.subr.mxu0 0.0
    %v1368 = vand.u32 %v675, 4294901760
    %1369 = vmatpush1.msra.mxu0 %v1368
    %1370 = vmatprep.subr.mxu0 0.0
    %v1371 = vand.u32 %v676, 4294901760
    %1372 = vmatpush1.msra.mxu0 %v1371
    %1373 = vmatprep.subr.mxu0 0.0
    %v1374 = vand.u32 %v677, 4294901760
    %1375 = vmatpush1.msra.mxu0 %v1374
    %1376 = vmatprep.subr.mxu0 0.0
    %v1377 = vand.u32 %v678, 4294901760
    %1378 = vmatpush1.msra.mxu0 %v1377
    %1379 = vmatprep.subr.mxu0 0.0
    %v1380 = vand.u32 %v679, 4294901760
    %1381 = vmatpush1.msra.mxu0 %v1380
    %1382 = vmatprep.subr.mxu0 0.0
    %v1383 = vand.u32 %v680, 4294901760
    %1384 = vmatpush1.msra.mxu0 %v1383
    %1385 = vmatprep.subr.mxu0 0.0
    %v1386 = vand.u32 %v681, 4294901760
    %1387 = vmatpush1.msra.mxu0 %v1386
    %1388 = vmatprep.subr.mxu0 0.0
    %v1389 = vand.u32 %v682, 4294901760
    %1390 = vmatpush1.msra.mxu0 %v1389
    %1391 = vmatprep.subr.mxu0 0.0
    %v1392 = vand.u32 %v683, 4294901760
    %1393 = vmatpush1.msra.mxu0 %v1392
    %1394 = vmatprep.subr.mxu0 0.0
    %v1395 = vand.u32 %v684, 4294901760
    %1396 = vmatpush1.msra.mxu0 %v1395
    %1397 = vmatprep.subr.mxu0 0.0
    %v1398 = vand.u32 %v685, 4294901760
    %1399 = vmatpush1.msra.mxu0 %v1398
    %1400 = vmatprep.subr.mxu0 0.0
    %v1401 = vand.u32 %v686, 4294901760
    %1402 = vmatpush1.msra.mxu0 %v1401
    %1403 = vmatprep.subr.mxu0 0.0
    %v1404 = vand.u32 %v687, 4294901760
    %1405 = vmatpush1.msra.mxu0 %v1404
    %1406 = vmatprep.subr.mxu0 0.0
    %v1407 = vand.u32 %v688, 4294901760
    %1408 = vmatpush1.msra.mxu0 %v1407
    %1409 = vmatprep.subr.mxu0 0.0
    %1410 = vmatpush1.msra.mxu0 0.0
    %1411 = vmatprep.subr.mxu0 0.0
    %1412 = vmatpush1.msra.mxu0 0.0
    %1413 = vmatprep.subr.mxu0 0.0
    %1414 = vmatpush1.msra.mxu0 0.0
    %1415 = vmatprep.subr.mxu0 0.0
    %1416 = vmatpush1.msra.mxu0 0.0
    %1417 = vmatprep.subr.mxu0 0.0
    %1418 = vmatpush1.msra.mxu0 0.0
    %1419 = vmatprep.subr.mxu0 0.0
    %1420 = vmatpush1.msra.mxu0 0.0
    %1421 = vmatprep.subr.mxu0 0.0
    %1422 = vmatpush1.msra.mxu0 0.0
    %1423 = vmatprep.subr.mxu0 0.0
    %1424 = vmatpush1.msra.mxu0 0.0
    %1425 = vmatprep.subr.mxu0 0.0
    %1426 = vmatpush1.msra.mxu0 0.0
    %1427 = vmatprep.subr.mxu0 0.0
    %1428 = vmatpush1.msra.mxu0 0.0
    %1429 = vmatprep.subr.mxu0 0.0
    %1430 = vmatpush1.msra.mxu0 0.0
    %1431 = vmatprep.subr.mxu0 0.0
    %1432 = vmatpush1.msra.mxu0 0.0
    %1433 = vmatprep.subr.mxu0 0.0
    %1434 = vmatpush1.msra.mxu0 0.0
    %1435 = vmatprep.subr.mxu0 0.0
    %1436 = vmatpush1.msra.mxu0 0.0
    %1437 = vmatprep.subr.mxu0 0.0
    %1438 = vmatpush1.msra.mxu0 0.0
    %1439 = vmatprep.subr.mxu0 0.0
    %1440 = vmatpush1.msra.mxu0 0.0
    %1441 = vmatprep.mubr.f32.mxu0 0.0
    %v1442 = vand.u32 %v669, 4294901760
    %1443 = vmatmul.mubr.f32.gmra.mrb[0].mxu0 %v1442
    %v1444 = vpop.f32.mrb[0].mxu0
    %v1445 = vadd.f32 %v1340, %v1444
    %v1446 = vpop.f32.mrb[0].mxu0
    %1447 = vmatprep.mubr.f32.mxu0 0.0
    %v1448 = vand.u32 %v670, 4294901760
    %1449 = vmatmul.mubr.f32.gmra.mrb[0].mxu0 %v1448
    %v1450 = vpop.f32.mrb[0].mxu0
    %v1451 = vadd.f32 %v1346, %v1450
    %v1452 = vpop.f32.mrb[0].mxu0
    %1453 = vmatprep.mubr.f32.mxu0 0.0
    %v1454 = vand.u32 %v671, 4294901760
    %1455 = vmatmul.mubr.f32.gmra.mrb[0].mxu0 %v1454
    %v1456 = vpop.f32.mrb[0].mxu0
    %v1457 = vadd.f32 %v1352, %v1456
    %v1458 = vpop.f32.mrb[0].mxu0
    %1459 = vmatprep.mubr.f32.mxu0 0.0
    %v1460 = vand.u32 %v672, 4294901760
    %1461 = vmatmul.mubr.f32.gmra.mrb[0].mxu0 %v1460
    %v1462 = vpop.f32.mrb[0].mxu0
    %v1463 = vadd.f32 %v1358, %v1462
    %v1464 = vpop.f32.mrb[0].mxu0
    %1465 = vdwg.mxu0
    %v1466 = vmax.f32 %v1445, 0.0
    %v1467 = vmax.f32 %v1451, 0.0
    %v1468 = vmax.f32 %v1457, 0.0
    %v1469 = vmax.f32 %v1463, 0.0
    %v1470 = vld [vmem:[#allocation5] sm:$0xff]
    %v1471 = vld [vmem:[#allocation5 + $0x8] sm:$0xff]
    %v1472 = vld [vmem:[#allocation5 + $0x10] sm:$0xff]
    %v1473 = vld [vmem:[#allocation5 + $0x18] sm:$0xff]
    %v1474 = vld [vmem:[#allocation5 + $0x20] sm:$0xff]
    %v1475 = vld [vmem:[#allocation5 + $0x28] sm:$0xff]
    %v1476 = vld [vmem:[#allocation5 + $0x30] sm:$0xff]
    %v1477 = vld [vmem:[#allocation5 + $0x38] sm:$0xff]
    %v1478 = vld [vmem:[#allocation5 + $0x40] sm:$0xff]
    %v1479 = vld [vmem:[#allocation5 + $0x48] sm:$0xff]
    %v1480 = vld [vmem:[#allocation5 + $0x50] sm:$0xff]
    %v1481 = vld [vmem:[#allocation5 + $0x58] sm:$0xff]
    %v1482 = vld [vmem:[#allocation5 + $0x60] sm:$0xff]
    %v1483 = vld [vmem:[#allocation5 + $0x68] sm:$0xff]
    %v1484 = vld [vmem:[#allocation5 + $0x70] sm:$0xff]
    %v1485 = vld [vmem:[#allocation5 + $0x78] sm:$0xff]
    %v1486 = vld [vmem:[%s6] sm:$0x1]
    %v1488 = vlaneseq
    %v1489 = vshrl.u32 %v1488, 7
    %v1490 = vsub.s32 0, %v1489
    %v1491 = vrot.slane %v1486, %v1490
    %1493 = vmatprep.subr.mxu0 0.0
    %v1494 = vand.u32 %v1470, 4294901760
    %1495 = vmatpush1.msra.mxu0 %v1494
    %1496 = vmatprep.subr.mxu0 0.0
    %v1497 = vand.u32 %v1471, 4294901760
    %1498 = vmatpush1.msra.mxu0 %v1497
    %1499 = vmatprep.subr.mxu0 0.0
    %v1500 = vand.u32 %v1472, 4294901760
    %1501 = vmatpush1.msra.mxu0 %v1500
    %1502 = vmatprep.subr.mxu0 0.0
    %v1503 = vand.u32 %v1473, 4294901760
    %1504 = vmatpush1.msra.mxu0 %v1503
    %1505 = vmatprep.subr.mxu0 0.0
    %v1506 = vand.u32 %v1474, 4294901760
    %1507 = vmatpush1.msra.mxu0 %v1506
    %1508 = vmatprep.subr.mxu0 0.0
    %v1509 = vand.u32 %v1475, 4294901760
    %1510 = vmatpush1.msra.mxu0 %v1509
    %1511 = vmatprep.subr.mxu0 0.0
    %v1512 = vand.u32 %v1476, 4294901760
    %1513 = vmatpush1.msra.mxu0 %v1512
    %1514 = vmatprep.subr.mxu0 0.0
    %v1515 = vand.u32 %v1477, 4294901760
    %1516 = vmatpush1.msra.mxu0 %v1515
    %1517 = vmatprep.subr.mxu0 0.0
    %v1518 = vand.u32 %v1478, 4294901760
    %1519 = vmatpush1.msra.mxu0 %v1518
    %1520 = vmatprep.subr.mxu0 0.0
    %v1521 = vand.u32 %v1479, 4294901760
    %1522 = vmatpush1.msra.mxu0 %v1521
    %1523 = vmatprep.subr.mxu0 0.0
    %v1524 = vand.u32 %v1480, 4294901760
    %1525 = vmatpush1.msra.mxu0 %v1524
    %1526 = vmatprep.subr.mxu0 0.0
    %v1527 = vand.u32 %v1481, 4294901760
    %1528 = vmatpush1.msra.mxu0 %v1527
    %1529 = vmatprep.subr.mxu0 0.0
    %v1530 = vand.u32 %v1482, 4294901760
    %1531 = vmatpush1.msra.mxu0 %v1530
    %1532 = vmatprep.subr.mxu0 0.0
    %v1533 = vand.u32 %v1483, 4294901760
    %1534 = vmatpush1.msra.mxu0 %v1533
    %1535 = vmatprep.subr.mxu0 0.0
    %v1536 = vand.u32 %v1484, 4294901760
    %1537 = vmatpush1.msra.mxu0 %v1536
    %1538 = vmatprep.subr.mxu0 0.0
    %v1539 = vand.u32 %v1485, 4294901760
    %1540 = vmatpush1.msra.mxu0 %v1539
    %1541 = vmatprep.subr.mxu0 0.0
    %1542 = vmatpush1.msra.mxu0 0.0
    %1543 = vmatprep.subr.mxu0 0.0
    %1544 = vmatpush1.msra.mxu0 0.0
    %1545 = vmatprep.subr.mxu0 0.0
    %1546 = vmatpush1.msra.mxu0 0.0
    %1547 = vmatprep.subr.mxu0 0.0
    %1548 = vmatpush1.msra.mxu0 0.0
    %1549 = vmatprep.subr.mxu0 0.0
    %1550 = vmatpush1.msra.mxu0 0.0
    %1551 = vmatprep.subr.mxu0 0.0
    %1552 = vmatpush1.msra.mxu0 0.0
    %1553 = vmatprep.subr.mxu0 0.0
    %1554 = vmatpush1.msra.mxu0 0.0
    %1555 = vmatprep.subr.mxu0 0.0
    %1556 = vmatpush1.msra.mxu0 0.0
    %1557 = vmatprep.subr.mxu0 0.0
    %1558 = vmatpush1.msra.mxu0 0.0
    %1559 = vmatprep.subr.mxu0 0.0
    %1560 = vmatpush1.msra.mxu0 0.0
    %1561 = vmatprep.subr.mxu0 0.0
    %1562 = vmatpush1.msra.mxu0 0.0
    %1563 = vmatprep.subr.mxu0 0.0
    %1564 = vmatpush1.msra.mxu0 0.0
    %1565 = vmatprep.subr.mxu0 0.0
    %1566 = vmatpush1.msra.mxu0 0.0
    %1567 = vmatprep.subr.mxu0 0.0
    %1568 = vmatpush1.msra.mxu0 0.0
    %1569 = vmatprep.subr.mxu0 0.0
    %1570 = vmatpush1.msra.mxu0 0.0
    %1571 = vmatprep.subr.mxu0 0.0
    %1572 = vmatpush1.msra.mxu0 0.0
    %1573 = vmatprep.mubr.f32.mxu0 0.0
    %v1574 = vand.u32 %v1466, 4294901760
    %v1575 = vsub.f32 %v1466, %v1574
    %v1576 = vand.u32 %v1575, 4294901760
    %v1577 = vsub.f32 %v1575, %v1576
    %v1578 = vand.u32 %v1577, 4294901760
    %1579 = vmatmul.mubr.f32.gmra.mrb[0].mxu0 %v1578
    %v1580 = vpop.f32.mrb[0].mxu0
    %v1581 = vadd.f32 %v1491, %v1580
    %v1582 = vpop.f32.mrb[0].mxu0
    %1583 = vmatprep.mubr.f32.mxu0 0.0
    %v1584 = vand.u32 %v1467, 4294901760
    %v1585 = vsub.f32 %v1467, %v1584
    %v1586 = vand.u32 %v1585, 4294901760
    %v1587 = vsub.f32 %v1585, %v1586
    %v1588 = vand.u32 %v1587, 4294901760
    %1589 = vmatmul.mubr.f32.gmra.mrb[0].mxu0 %v1588
    %v1590 = vpop.f32.mrb[0].mxu0
    %v1591 = vadd.f32 %v1491, %v1590
    %v1592 = vpop.f32.mrb[0].mxu0
    %1593 = vmatprep.mubr.f32.mxu0 0.0
    %v1594 = vand.u32 %v1468, 4294901760
    %v1595 = vsub.f32 %v1468, %v1594
    %v1596 = vand.u32 %v1595, 4294901760
    %v1597 = vsub.f32 %v1595, %v1596
    %v1598 = vand.u32 %v1597, 4294901760
    %1599 = vmatmul.mubr.f32.gmra.mrb[0].mxu0 %v1598
    %v1600 = vpop.f32.mrb[0].mxu0
    %v1601 = vadd.f32 %v1491, %v1600
    %v1602 = vpop.f32.mrb[0].mxu0
    %1603 = vmatprep.mubr.f32.mxu0 0.0
    %v1604 = vand.u32 %v1469, 4294901760
    %v1605 = vsub.f32 %v1469, %v1604
    %v1606 = vand.u32 %v1605, 4294901760
    %v1607 = vsub.f32 %v1605, %v1606
    %v1608 = vand.u32 %v1607, 4294901760
    %1609 = vmatmul.mubr.f32.gmra.mrb[0].mxu0 %v1608
    %v1610 = vpop.f32.mrb[0].mxu0
    %v1611 = vadd.f32 %v1491, %v1610
    %v1612 = vpop.f32.mrb[0].mxu0
    %1613 = vdwg.mxu0
    %1614 = vmatprep.subr.mxu0 0.0
    %v1615 = vand.u32 %v1470, 4294901760
    %v1616 = vsub.f32 %v1470, %v1615
    %v1617 = vand.u32 %v1616, 4294901760
    %v1618 = vsub.f32 %v1616, %v1617
    %v1619 = vand.u32 %v1618, 4294901760
    %1620 = vmatpush1.msra.mxu0 %v1619
    %1621 = vmatprep.subr.mxu0 0.0
    %v1622 = vand.u32 %v1471, 4294901760
    %v1623 = vsub.f32 %v1471, %v1622
    %v1624 = vand.u32 %v1623, 4294901760
    %v1625 = vsub.f32 %v1623, %v1624
    %v1626 = vand.u32 %v1625, 4294901760
    %1627 = vmatpush1.msra.mxu0 %v1626
    %1628 = vmatprep.subr.mxu0 0.0
    %v1629 = vand.u32 %v1472, 4294901760
    %v1630 = vsub.f32 %v1472, %v1629
    %v1631 = vand.u32 %v1630, 4294901760
    %v1632 = vsub.f32 %v1630, %v1631
    %v1633 = vand.u32 %v1632, 4294901760
    %1634 = vmatpush1.msra.mxu0 %v1633
    %1635 = vmatprep.subr.mxu0 0.0
    %v1636 = vand.u32 %v1473, 4294901760
    %v1637 = vsub.f32 %v1473, %v1636
    %v1638 = vand.u32 %v1637, 4294901760
    %v1639 = vsub.f32 %v1637, %v1638
    %v1640 = vand.u32 %v1639, 4294901760
    %1641 = vmatpush1.msra.mxu0 %v1640
    %1642 = vmatprep.subr.mxu0 0.0
    %v1643 = vand.u32 %v1474, 4294901760
    %v1644 = vsub.f32 %v1474, %v1643
    %v1645 = vand.u32 %v1644, 4294901760
    %v1646 = vsub.f32 %v1644, %v1645
    %v1647 = vand.u32 %v1646, 4294901760
    %1648 = vmatpush1.msra.mxu0 %v1647
    %1649 = vmatprep.subr.mxu0 0.0
    %v1650 = vand.u32 %v1475, 4294901760
    %v1651 = vsub.f32 %v1475, %v1650
    %v1652 = vand.u32 %v1651, 4294901760
    %v1653 = vsub.f32 %v1651, %v1652
    %v1654 = vand.u32 %v1653, 4294901760
    %1655 = vmatpush1.msra.mxu0 %v1654
    %1656 = vmatprep.subr.mxu0 0.0
    %v1657 = vand.u32 %v1476, 4294901760
    %v1658 = vsub.f32 %v1476, %v1657
    %v1659 = vand.u32 %v1658, 4294901760
    %v1660 = vsub.f32 %v1658, %v1659
    %v1661 = vand.u32 %v1660, 4294901760
    %1662 = vmatpush1.msra.mxu0 %v1661
    %1663 = vmatprep.subr.mxu0 0.0
    %v1664 = vand.u32 %v1477, 4294901760
    %v1665 = vsub.f32 %v1477, %v1664
    %v1666 = vand.u32 %v1665, 4294901760
    %v1667 = vsub.f32 %v1665, %v1666
    %v1668 = vand.u32 %v1667, 4294901760
    %1669 = vmatpush1.msra.mxu0 %v1668
    %1670 = vmatprep.subr.mxu0 0.0
    %v1671 = vand.u32 %v1478, 4294901760
    %v1672 = vsub.f32 %v1478, %v1671
    %v1673 = vand.u32 %v1672, 4294901760
    %v1674 = vsub.f32 %v1672, %v1673
    %v1675 = vand.u32 %v1674, 4294901760
    %1676 = vmatpush1.msra.mxu0 %v1675
    %1677 = vmatprep.subr.mxu0 0.0
    %v1678 = vand.u32 %v1479, 4294901760
    %v1679 = vsub.f32 %v1479, %v1678
    %v1680 = vand.u32 %v1679, 4294901760
    %v1681 = vsub.f32 %v1679, %v1680
    %v1682 = vand.u32 %v1681, 4294901760
    %1683 = vmatpush1.msra.mxu0 %v1682
    %1684 = vmatprep.subr.mxu0 0.0
    %v1685 = vand.u32 %v1480, 4294901760
    %v1686 = vsub.f32 %v1480, %v1685
    %v1687 = vand.u32 %v1686, 4294901760
    %v1688 = vsub.f32 %v1686, %v1687
    %v1689 = vand.u32 %v1688, 4294901760
    %1690 = vmatpush1.msra.mxu0 %v1689
    %1691 = vmatprep.subr.mxu0 0.0
    %v1692 = vand.u32 %v1481, 4294901760
    %v1693 = vsub.f32 %v1481, %v1692
    %v1694 = vand.u32 %v1693, 4294901760
    %v1695 = vsub.f32 %v1693, %v1694
    %v1696 = vand.u32 %v1695, 4294901760
    %1697 = vmatpush1.msra.mxu0 %v1696
    %1698 = vmatprep.subr.mxu0 0.0
    %v1699 = vand.u32 %v1482, 4294901760
    %v1700 = vsub.f32 %v1482, %v1699
    %v1701 = vand.u32 %v1700, 4294901760
    %v1702 = vsub.f32 %v1700, %v1701
    %v1703 = vand.u32 %v1702, 4294901760
    %1704 = vmatpush1.msra.mxu0 %v1703
    %1705 = vmatprep.subr.mxu0 0.0
    %v1706 = vand.u32 %v1483, 4294901760
    %v1707 = vsub.f32 %v1483, %v1706
    %v1708 = vand.u32 %v1707, 4294901760
    %v1709 = vsub.f32 %v1707, %v1708
    %v1710 = vand.u32 %v1709, 4294901760
    %1711 = vmatpush1.msra.mxu0 %v1710
    %1712 = vmatprep.subr.mxu0 0.0
    %v1713 = vand.u32 %v1484, 4294901760
    %v1714 = vsub.f32 %v1484, %v1713
    %v1715 = vand.u32 %v1714, 4294901760
    %v1716 = vsub.f32 %v1714, %v1715
    %v1717 = vand.u32 %v1716, 4294901760
    %1718 = vmatpush1.msra.mxu0 %v1717
    %1719 = vmatprep.subr.mxu0 0.0
    %v1720 = vand.u32 %v1485, 4294901760
    %v1721 = vsub.f32 %v1485, %v1720
    %v1722 = vand.u32 %v1721, 4294901760
    %v1723 = vsub.f32 %v1721, %v1722
    %v1724 = vand.u32 %v1723, 4294901760
    %1725 = vmatpush1.msra.mxu0 %v1724
    %1726 = vmatprep.subr.mxu0 0.0
    %1727 = vmatpush1.msra.mxu0 0.0
    %1728 = vmatprep.subr.mxu0 0.0
    %1729 = vmatpush1.msra.mxu0 0.0
    %1730 = vmatprep.subr.mxu0 0.0
    %1731 = vmatpush1.msra.mxu0 0.0
    %1732 = vmatprep.subr.mxu0 0.0
    %1733 = vmatpush1.msra.mxu0 0.0
    %1734 = vmatprep.subr.mxu0 0.0
    %1735 = vmatpush1.msra.mxu0 0.0
    %1736 = vmatprep.subr.mxu0 0.0
    %1737 = vmatpush1.msra.mxu0 0.0
    %1738 = vmatprep.subr.mxu0 0.0
    %1739 = vmatpush1.msra.mxu0 0.0
    %1740 = vmatprep.subr.mxu0 0.0
    %1741 = vmatpush1.msra.mxu0 0.0
    %1742 = vmatprep.subr.mxu0 0.0
    %1743 = vmatpush1.msra.mxu0 0.0
    %1744 = vmatprep.subr.mxu0 0.0
    %1745 = vmatpush1.msra.mxu0 0.0
    %1746 = vmatprep.subr.mxu0 0.0
    %1747 = vmatpush1.msra.mxu0 0.0
    %1748 = vmatprep.subr.mxu0 0.0
    %1749 = vmatpush1.msra.mxu0 0.0
    %1750 = vmatprep.subr.mxu0 0.0
    %1751 = vmatpush1.msra.mxu0 0.0
    %1752 = vmatprep.subr.mxu0 0.0
    %1753 = vmatpush1.msra.mxu0 0.0
    %1754 = vmatprep.subr.mxu0 0.0
    %1755 = vmatpush1.msra.mxu0 0.0
    %1756 = vmatprep.subr.mxu0 0.0
    %1757 = vmatpush1.msra.mxu0 0.0
    %1758 = vmatprep.mubr.f32.mxu0 0.0
    %v1759 = vand.u32 %v1466, 4294901760
    %1760 = vmatmul.mubr.f32.gmra.mrb[0].mxu0 %v1759
    %v1761 = vpop.f32.mrb[0].mxu0
    %v1762 = vadd.f32 %v1581, %v1761
    %v1763 = vpop.f32.mrb[0].mxu0
    %1764 = vmatprep.mubr.f32.mxu0 0.0
    %v1765 = vand.u32 %v1467, 4294901760
    %1766 = vmatmul.mubr.f32.gmra.mrb[0].mxu0 %v1765
    %v1767 = vpop.f32.mrb[0].mxu0
    %v1768 = vadd.f32 %v1591, %v1767
    %v1769 = vpop.f32.mrb[0].mxu0
    %1770 = vmatprep.mubr.f32.mxu0 0.0
    %v1771 = vand.u32 %v1468, 4294901760
    %1772 = vmatmul.mubr.f32.gmra.mrb[0].mxu0 %v1771
    %v1773 = vpop.f32.mrb[0].mxu0
    %v1774 = vadd.f32 %v1601, %v1773
    %v1775 = vpop.f32.mrb[0].mxu0
    %1776 = vmatprep.mubr.f32.mxu0 0.0
    %v1777 = vand.u32 %v1469, 4294901760
    %1778 = vmatmul.mubr.f32.gmra.mrb[0].mxu0 %v1777
    %v1779 = vpop.f32.mrb[0].mxu0
    %v1780 = vadd.f32 %v1611, %v1779
    %v1781 = vpop.f32.mrb[0].mxu0
    %1782 = vdwg.mxu0
    %1783 = vmatprep.subr.mxu0 0.0
    %v1784 = vand.u32 %v1470, 4294901760
    %v1785 = vsub.f32 %v1470, %v1784
    %1786 = vmatpush1.msra.mxu0 %v1785
    %1787 = vmatprep.subr.mxu0 0.0
    %v1788 = vand.u32 %v1471, 4294901760
    %v1789 = vsub.f32 %v1471, %v1788
    %1790 = vmatpush1.msra.mxu0 %v1789
    %1791 = vmatprep.subr.mxu0 0.0
    %v1792 = vand.u32 %v1472, 4294901760
    %v1793 = vsub.f32 %v1472, %v1792
    %1794 = vmatpush1.msra.mxu0 %v1793
    %1795 = vmatprep.subr.mxu0 0.0
    %v1796 = vand.u32 %v1473, 4294901760
    %v1797 = vsub.f32 %v1473, %v1796
    %1798 = vmatpush1.msra.mxu0 %v1797
    %1799 = vmatprep.subr.mxu0 0.0
    %v1800 = vand.u32 %v1474, 4294901760
    %v1801 = vsub.f32 %v1474, %v1800
    %1802 = vmatpush1.msra.mxu0 %v1801
    %1803 = vmatprep.subr.mxu0 0.0
    %v1804 = vand.u32 %v1475, 4294901760
    %v1805 = vsub.f32 %v1475, %v1804
    %1806 = vmatpush1.msra.mxu0 %v1805
    %1807 = vmatprep.subr.mxu0 0.0
    %v1808 = vand.u32 %v1476, 4294901760
    %v1809 = vsub.f32 %v1476, %v1808
    %1810 = vmatpush1.msra.mxu0 %v1809
    %1811 = vmatprep.subr.mxu0 0.0
    %v1812 = vand.u32 %v1477, 4294901760
    %v1813 = vsub.f32 %v1477, %v1812
    %1814 = vmatpush1.msra.mxu0 %v1813
    %1815 = vmatprep.subr.mxu0 0.0
    %v1816 = vand.u32 %v1478, 4294901760
    %v1817 = vsub.f32 %v1478, %v1816
    %1818 = vmatpush1.msra.mxu0 %v1817
    %1819 = vmatprep.subr.mxu0 0.0
    %v1820 = vand.u32 %v1479, 4294901760
    %v1821 = vsub.f32 %v1479, %v1820
    %1822 = vmatpush1.msra.mxu0 %v1821
    %1823 = vmatprep.subr.mxu0 0.0
    %v1824 = vand.u32 %v1480, 4294901760
    %v1825 = vsub.f32 %v1480, %v1824
    %1826 = vmatpush1.msra.mxu0 %v1825
    %1827 = vmatprep.subr.mxu0 0.0
    %v1828 = vand.u32 %v1481, 4294901760
    %v1829 = vsub.f32 %v1481, %v1828
    %1830 = vmatpush1.msra.mxu0 %v1829
    %1831 = vmatprep.subr.mxu0 0.0
    %v1832 = vand.u32 %v1482, 4294901760
    %v1833 = vsub.f32 %v1482, %v1832
    %1834 = vmatpush1.msra.mxu0 %v1833
    %1835 = vmatprep.subr.mxu0 0.0
    %v1836 = vand.u32 %v1483, 4294901760
    %v1837 = vsub.f32 %v1483, %v1836
    %1838 = vmatpush1.msra.mxu0 %v1837
    %1839 = vmatprep.subr.mxu0 0.0
    %v1840 = vand.u32 %v1484, 4294901760
    %v1841 = vsub.f32 %v1484, %v1840
    %1842 = vmatpush1.msra.mxu0 %v1841
    %1843 = vmatprep.subr.mxu0 0.0
    %v1844 = vand.u32 %v1485, 4294901760
    %v1845 = vsub.f32 %v1485, %v1844
    %1846 = vmatpush1.msra.mxu0 %v1845
    %1847 = vmatprep.subr.mxu0 0.0
    %1848 = vmatpush1.msra.mxu0 0.0
    %1849 = vmatprep.subr.mxu0 0.0
    %1850 = vmatpush1.msra.mxu0 0.0
    %1851 = vmatprep.subr.mxu0 0.0
    %1852 = vmatpush1.msra.mxu0 0.0
    %1853 = vmatprep.subr.mxu0 0.0
    %1854 = vmatpush1.msra.mxu0 0.0
    %1855 = vmatprep.subr.mxu0 0.0
    %1856 = vmatpush1.msra.mxu0 0.0
    %1857 = vmatprep.subr.mxu0 0.0
    %1858 = vmatpush1.msra.mxu0 0.0
    %1859 = vmatprep.subr.mxu0 0.0
    %1860 = vmatpush1.msra.mxu0 0.0
    %1861 = vmatprep.subr.mxu0 0.0
    %1862 = vmatpush1.msra.mxu0 0.0
    %1863 = vmatprep.subr.mxu0 0.0
    %1864 = vmatpush1.msra.mxu0 0.0
    %1865 = vmatprep.subr.mxu0 0.0
    %1866 = vmatpush1.msra.mxu0 0.0
    %1867 = vmatprep.subr.mxu0 0.0
    %1868 = vmatpush1.msra.mxu0 0.0
    %1869 = vmatprep.subr.mxu0 0.0
    %1870 = vmatpush1.msra.mxu0 0.0
    %1871 = vmatprep.subr.mxu0 0.0
    %1872 = vmatpush1.msra.mxu0 0.0
    %1873 = vmatprep.subr.mxu0 0.0
    %1874 = vmatpush1.msra.mxu0 0.0
    %1875 = vmatprep.subr.mxu0 0.0
    %1876 = vmatpush1.msra.mxu0 0.0
    %1877 = vmatprep.subr.mxu0 0.0
    %1878 = vmatpush1.msra.mxu0 0.0
    %1879 = vmatprep.mubr.f32.mxu0 0.0
    %v1880 = vand.u32 %v1466, 4294901760
    %v1881 = vsub.f32 %v1466, %v1880
    %1882 = vmatmul.mubr.f32.gmra.mrb[0].mxu0 %v1881
    %v1883 = vpop.f32.mrb[0].mxu0
    %v1884 = vadd.f32 %v1762, %v1883
    %v1885 = vpop.f32.mrb[0].mxu0
    %1886 = vmatprep.mubr.f32.mxu0 0.0
    %v1887 = vand.u32 %v1467, 4294901760
    %v1888 = vsub.f32 %v1467, %v1887
    %1889 = vmatmul.mubr.f32.gmra.mrb[0].mxu0 %v1888
    %v1890 = vpop.f32.mrb[0].mxu0
    %v1891 = vadd.f32 %v1768, %v1890
    %v1892 = vpop.f32.mrb[0].mxu0
    %1893 = vmatprep.mubr.f32.mxu0 0.0
    %v1894 = vand.u32 %v1468, 4294901760
    %v1895 = vsub.f32 %v1468, %v1894
    %1896 = vmatmul.mubr.f32.gmra.mrb[0].mxu0 %v1895
    %v1897 = vpop.f32.mrb[0].mxu0
    %v1898 = vadd.f32 %v1774, %v1897
    %v1899 = vpop.f32.mrb[0].mxu0
    %1900 = vmatprep.mubr.f32.mxu0 0.0
    %v1901 = vand.u32 %v1469, 4294901760
    %v1902 = vsub.f32 %v1469, %v1901
    %1903 = vmatmul.mubr.f32.gmra.mrb[0].mxu0 %v1902
    %v1904 = vpop.f32.mrb[0].mxu0
    %v1905 = vadd.f32 %v1780, %v1904
    %v1906 = vpop.f32.mrb[0].mxu0
    %1907 = vdwg.mxu0
    %1908 = vmatprep.subr.mxu0 0.0
    %v1909 = vand.u32 %v1470, 4294901760
    %1910 = vmatpush1.msra.mxu0 %v1909
    %1911 = vmatprep.subr.mxu0 0.0
    %v1912 = vand.u32 %v1471, 4294901760
    %1913 = vmatpush1.msra.mxu0 %v1912
    %1914 = vmatprep.subr.mxu0 0.0
    %v1915 = vand.u32 %v1472, 4294901760
    %1916 = vmatpush1.msra.mxu0 %v1915
    %1917 = vmatprep.subr.mxu0 0.0
    %v1918 = vand.u32 %v1473, 4294901760
    %1919 = vmatpush1.msra.mxu0 %v1918
    %1920 = vmatprep.subr.mxu0 0.0
    %v1921 = vand.u32 %v1474, 4294901760
    %1922 = vmatpush1.msra.mxu0 %v1921
    %1923 = vmatprep.subr.mxu0 0.0
    %v1924 = vand.u32 %v1475, 4294901760
    %1925 = vmatpush1.msra.mxu0 %v1924
    %1926 = vmatprep.subr.mxu0 0.0
    %v1927 = vand.u32 %v1476, 4294901760
    %1928 = vmatpush1.msra.mxu0 %v1927
    %1929 = vmatprep.subr.mxu0 0.0
    %v1930 = vand.u32 %v1477, 4294901760
    %1931 = vmatpush1.msra.mxu0 %v1930
    %1932 = vmatprep.subr.mxu0 0.0
    %v1933 = vand.u32 %v1478, 4294901760
    %1934 = vmatpush1.msra.mxu0 %v1933
    %1935 = vmatprep.subr.mxu0 0.0
    %v1936 = vand.u32 %v1479, 4294901760
    %1937 = vmatpush1.msra.mxu0 %v1936
    %1938 = vmatprep.subr.mxu0 0.0
    %v1939 = vand.u32 %v1480, 4294901760
    %1940 = vmatpush1.msra.mxu0 %v1939
    %1941 = vmatprep.subr.mxu0 0.0
    %v1942 = vand.u32 %v1481, 4294901760
    %1943 = vmatpush1.msra.mxu0 %v1942
    %1944 = vmatprep.subr.mxu0 0.0
    %v1945 = vand.u32 %v1482, 4294901760
    %1946 = vmatpush1.msra.mxu0 %v1945
    %1947 = vmatprep.subr.mxu0 0.0
    %v1948 = vand.u32 %v1483, 4294901760
    %1949 = vmatpush1.msra.mxu0 %v1948
    %1950 = vmatprep.subr.mxu0 0.0
    %v1951 = vand.u32 %v1484, 4294901760
    %1952 = vmatpush1.msra.mxu0 %v1951
    %1953 = vmatprep.subr.mxu0 0.0
    %v1954 = vand.u32 %v1485, 4294901760
    %1955 = vmatpush1.msra.mxu0 %v1954
    %1956 = vmatprep.subr.mxu0 0.0
    %1957 = vmatpush1.msra.mxu0 0.0
    %1958 = vmatprep.subr.mxu0 0.0
    %1959 = vmatpush1.msra.mxu0 0.0
    %1960 = vmatprep.subr.mxu0 0.0
    %1961 = vmatpush1.msra.mxu0 0.0
    %1962 = vmatprep.subr.mxu0 0.0
    %1963 = vmatpush1.msra.mxu0 0.0
    %1964 = vmatprep.subr.mxu0 0.0
    %1965 = vmatpush1.msra.mxu0 0.0
    %1966 = vmatprep.subr.mxu0 0.0
    %1967 = vmatpush1.msra.mxu0 0.0
    %1968 = vmatprep.subr.mxu0 0.0
    %1969 = vmatpush1.msra.mxu0 0.0
    %1970 = vmatprep.subr.mxu0 0.0
    %1971 = vmatpush1.msra.mxu0 0.0
    %1972 = vmatprep.subr.mxu0 0.0
    %1973 = vmatpush1.msra.mxu0 0.0
    %1974 = vmatprep.subr.mxu0 0.0
    %1975 = vmatpush1.msra.mxu0 0.0
    %1976 = vmatprep.subr.mxu0 0.0
    %1977 = vmatpush1.msra.mxu0 0.0
    %1978 = vmatprep.subr.mxu0 0.0
    %1979 = vmatpush1.msra.mxu0 0.0
    %1980 = vmatprep.subr.mxu0 0.0
    %1981 = vmatpush1.msra.mxu0 0.0
    %1982 = vmatprep.subr.mxu0 0.0
    %1983 = vmatpush1.msra.mxu0 0.0
    %1984 = vmatprep.subr.mxu0 0.0
    %1985 = vmatpush1.msra.mxu0 0.0
    %1986 = vmatprep.subr.mxu0 0.0
    %1987 = vmatpush1.msra.mxu0 0.0
    %1988 = vmatprep.mubr.f32.mxu0 0.0
    %v1989 = vand.u32 %v1466, 4294901760
    %v1990 = vsub.f32 %v1466, %v1989
    %v1991 = vand.u32 %v1990, 4294901760
    %1992 = vmatmul.mubr.f32.gmra.mrb[0].mxu0 %v1991
    %v1993 = vpop.f32.mrb[0].mxu0
    %v1994 = vadd.f32 %v1884, %v1993
    %v1995 = vpop.f32.mrb[0].mxu0
    %1996 = vmatprep.mubr.f32.mxu0 0.0
    %v1997 = vand.u32 %v1467, 4294901760
    %v1998 = vsub.f32 %v1467, %v1997
    %v1999 = vand.u32 %v1998, 4294901760
    %2000 = vmatmul.mubr.f32.gmra.mrb[0].mxu0 %v1999
    %v2001 = vpop.f32.mrb[0].mxu0
    %v2002 = vadd.f32 %v1891, %v2001
    %v2003 = vpop.f32.mrb[0].mxu0
    %2004 = vmatprep.mubr.f32.mxu0 0.0
    %v2005 = vand.u32 %v1468, 4294901760
    %v2006 = vsub.f32 %v1468, %v2005
    %v2007 = vand.u32 %v2006, 4294901760
    %2008 = vmatmul.mubr.f32.gmra.mrb[0].mxu0 %v2007
    %v2009 = vpop.f32.mrb[0].mxu0
    %v2010 = vadd.f32 %v1898, %v2009
    %v2011 = vpop.f32.mrb[0].mxu0
    %2012 = vmatprep.mubr.f32.mxu0 0.0
    %v2013 = vand.u32 %v1469, 4294901760
    %v2014 = vsub.f32 %v1469, %v2013
    %v2015 = vand.u32 %v2014, 4294901760
    %2016 = vmatmul.mubr.f32.gmra.mrb[0].mxu0 %v2015
    %v2017 = vpop.f32.mrb[0].mxu0
    %v2018 = vadd.f32 %v1905, %v2017
    %v2019 = vpop.f32.mrb[0].mxu0
    %2020 = vdwg.mxu0
    %2021 = vmatprep.subr.mxu0 0.0
    %v2022 = vand.u32 %v1470, 4294901760
    %v2023 = vsub.f32 %v1470, %v2022
    %v2024 = vand.u32 %v2023, 4294901760
    %2025 = vmatpush1.msra.mxu0 %v2024
    %2026 = vmatprep.subr.mxu0 0.0
    %v2027 = vand.u32 %v1471, 4294901760
    %v2028 = vsub.f32 %v1471, %v2027
    %v2029 = vand.u32 %v2028, 4294901760
    %2030 = vmatpush1.msra.mxu0 %v2029
    %2031 = vmatprep.subr.mxu0 0.0
    %v2032 = vand.u32 %v1472, 4294901760
    %v2033 = vsub.f32 %v1472, %v2032
    %v2034 = vand.u32 %v2033, 4294901760
    %2035 = vmatpush1.msra.mxu0 %v2034
    %2036 = vmatprep.subr.mxu0 0.0
    %v2037 = vand.u32 %v1473, 4294901760
    %v2038 = vsub.f32 %v1473, %v2037
    %v2039 = vand.u32 %v2038, 4294901760
    %2040 = vmatpush1.msra.mxu0 %v2039
    %2041 = vmatprep.subr.mxu0 0.0
    %v2042 = vand.u32 %v1474, 4294901760
    %v2043 = vsub.f32 %v1474, %v2042
    %v2044 = vand.u32 %v2043, 4294901760
    %2045 = vmatpush1.msra.mxu0 %v2044
    %2046 = vmatprep.subr.mxu0 0.0
    %v2047 = vand.u32 %v1475, 4294901760
    %v2048 = vsub.f32 %v1475, %v2047
    %v2049 = vand.u32 %v2048, 4294901760
    %2050 = vmatpush1.msra.mxu0 %v2049
    %2051 = vmatprep.subr.mxu0 0.0
    %v2052 = vand.u32 %v1476, 4294901760
    %v2053 = vsub.f32 %v1476, %v2052
    %v2054 = vand.u32 %v2053, 4294901760
    %2055 = vmatpush1.msra.mxu0 %v2054
    %2056 = vmatprep.subr.mxu0 0.0
    %v2057 = vand.u32 %v1477, 4294901760
    %v2058 = vsub.f32 %v1477, %v2057
    %v2059 = vand.u32 %v2058, 4294901760
    %2060 = vmatpush1.msra.mxu0 %v2059
    %2061 = vmatprep.subr.mxu0 0.0
    %v2062 = vand.u32 %v1478, 4294901760
    %v2063 = vsub.f32 %v1478, %v2062
    %v2064 = vand.u32 %v2063, 4294901760
    %2065 = vmatpush1.msra.mxu0 %v2064
    %2066 = vmatprep.subr.mxu0 0.0
    %v2067 = vand.u32 %v1479, 4294901760
    %v2068 = vsub.f32 %v1479, %v2067
    %v2069 = vand.u32 %v2068, 4294901760
    %2070 = vmatpush1.msra.mxu0 %v2069
    %2071 = vmatprep.subr.mxu0 0.0
    %v2072 = vand.u32 %v1480, 4294901760
    %v2073 = vsub.f32 %v1480, %v2072
    %v2074 = vand.u32 %v2073, 4294901760
    %2075 = vmatpush1.msra.mxu0 %v2074
    %2076 = vmatprep.subr.mxu0 0.0
    %v2077 = vand.u32 %v1481, 4294901760
    %v2078 = vsub.f32 %v1481, %v2077
    %v2079 = vand.u32 %v2078, 4294901760
    %2080 = vmatpush1.msra.mxu0 %v2079
    %2081 = vmatprep.subr.mxu0 0.0
    %v2082 = vand.u32 %v1482, 4294901760
    %v2083 = vsub.f32 %v1482, %v2082
    %v2084 = vand.u32 %v2083, 4294901760
    %2085 = vmatpush1.msra.mxu0 %v2084
    %2086 = vmatprep.subr.mxu0 0.0
    %v2087 = vand.u32 %v1483, 4294901760
    %v2088 = vsub.f32 %v1483, %v2087
    %v2089 = vand.u32 %v2088, 4294901760
    %2090 = vmatpush1.msra.mxu0 %v2089
    %2091 = vmatprep.subr.mxu0 0.0
    %v2092 = vand.u32 %v1484, 4294901760
    %v2093 = vsub.f32 %v1484, %v2092
    %v2094 = vand.u32 %v2093, 4294901760
    %2095 = vmatpush1.msra.mxu0 %v2094
    %2096 = vmatprep.subr.mxu0 0.0
    %v2097 = vand.u32 %v1485, 4294901760
    %v2098 = vsub.f32 %v1485, %v2097
    %v2099 = vand.u32 %v2098, 4294901760
    %2100 = vmatpush1.msra.mxu0 %v2099
    %2101 = vmatprep.subr.mxu0 0.0
    %2102 = vmatpush1.msra.mxu0 0.0
    %2103 = vmatprep.subr.mxu0 0.0
    %2104 = vmatpush1.msra.mxu0 0.0
    %2105 = vmatprep.subr.mxu0 0.0
    %2106 = vmatpush1.msra.mxu0 0.0
    %2107 = vmatprep.subr.mxu0 0.0
    %2108 = vmatpush1.msra.mxu0 0.0
    %2109 = vmatprep.subr.mxu0 0.0
    %2110 = vmatpush1.msra.mxu0 0.0
    %2111 = vmatprep.subr.mxu0 0.0
    %2112 = vmatpush1.msra.mxu0 0.0
    %2113 = vmatprep.subr.mxu0 0.0
    %2114 = vmatpush1.msra.mxu0 0.0
    %2115 = vmatprep.subr.mxu0 0.0
    %2116 = vmatpush1.msra.mxu0 0.0
    %2117 = vmatprep.subr.mxu0 0.0
    %2118 = vmatpush1.msra.mxu0 0.0
    %2119 = vmatprep.subr.mxu0 0.0
    %2120 = vmatpush1.msra.mxu0 0.0
    %2121 = vmatprep.subr.mxu0 0.0
    %2122 = vmatpush1.msra.mxu0 0.0
    %2123 = vmatprep.subr.mxu0 0.0
    %2124 = vmatpush1.msra.mxu0 0.0
    %2125 = vmatprep.subr.mxu0 0.0
    %2126 = vmatpush1.msra.mxu0 0.0
    %2127 = vmatprep.subr.mxu0 0.0
    %2128 = vmatpush1.msra.mxu0 0.0
    %2129 = vmatprep.subr.mxu0 0.0
    %2130 = vmatpush1.msra.mxu0 0.0
    %2131 = vmatprep.subr.mxu0 0.0
    %2132 = vmatpush1.msra.mxu0 0.0
    %2133 = vmatprep.mubr.f32.mxu0 0.0
    %v2134 = vand.u32 %v1466, 4294901760
    %2135 = vmatmul.mubr.f32.gmra.mrb[0].mxu0 %v2134
    %v2136 = vpop.f32.mrb[0].mxu0
    %v2137 = vadd.f32 %v1994, %v2136
    %v2138 = vpop.f32.mrb[0].mxu0
    %2139 = vmatprep.mubr.f32.mxu0 0.0
    %v2140 = vand.u32 %v1467, 4294901760
    %2141 = vmatmul.mubr.f32.gmra.mrb[0].mxu0 %v2140
    %v2142 = vpop.f32.mrb[0].mxu0
    %v2143 = vadd.f32 %v2002, %v2142
    %v2144 = vpop.f32.mrb[0].mxu0
    %2145 = vmatprep.mubr.f32.mxu0 0.0
    %v2146 = vand.u32 %v1468, 4294901760
    %2147 = vmatmul.mubr.f32.gmra.mrb[0].mxu0 %v2146
    %v2148 = vpop.f32.mrb[0].mxu0
    %v2149 = vadd.f32 %v2010, %v2148
    %v2150 = vpop.f32.mrb[0].mxu0
    %2151 = vmatprep.mubr.f32.mxu0 0.0
    %v2152 = vand.u32 %v1469, 4294901760
    %2153 = vmatmul.mubr.f32.gmra.mrb[0].mxu0 %v2152
    %v2154 = vpop.f32.mrb[0].mxu0
    %v2155 = vadd.f32 %v2018, %v2154
    %v2156 = vpop.f32.mrb[0].mxu0
    %2157 = vdwg.mxu0
    %2158 = vmatprep.subr.mxu0 0.0
    %v2159 = vand.u32 %v1470, 4294901760
    %2160 = vmatpush1.msra.mxu0 %v2159
    %2161 = vmatprep.subr.mxu0 0.0
    %v2162 = vand.u32 %v1471, 4294901760
    %2163 = vmatpush1.msra.mxu0 %v2162
    %2164 = vmatprep.subr.mxu0 0.0
    %v2165 = vand.u32 %v1472, 4294901760
    %2166 = vmatpush1.msra.mxu0 %v2165
    %2167 = vmatprep.subr.mxu0 0.0
    %v2168 = vand.u32 %v1473, 4294901760
    %2169 = vmatpush1.msra.mxu0 %v2168
    %2170 = vmatprep.subr.mxu0 0.0
    %v2171 = vand.u32 %v1474, 4294901760
    %2172 = vmatpush1.msra.mxu0 %v2171
    %2173 = vmatprep.subr.mxu0 0.0
    %v2174 = vand.u32 %v1475, 4294901760
    %2175 = vmatpush1.msra.mxu0 %v2174
    %2176 = vmatprep.subr.mxu0 0.0
    %v2177 = vand.u32 %v1476, 4294901760
    %2178 = vmatpush1.msra.mxu0 %v2177
    %2179 = vmatprep.subr.mxu0 0.0
    %v2180 = vand.u32 %v1477, 4294901760
    %2181 = vmatpush1.msra.mxu0 %v2180
    %2182 = vmatprep.subr.mxu0 0.0
    %v2183 = vand.u32 %v1478, 4294901760
    %2184 = vmatpush1.msra.mxu0 %v2183
    %2185 = vmatprep.subr.mxu0 0.0
    %v2186 = vand.u32 %v1479, 4294901760
    %2187 = vmatpush1.msra.mxu0 %v2186
    %2188 = vmatprep.subr.mxu0 0.0
    %v2189 = vand.u32 %v1480, 4294901760
    %2190 = vmatpush1.msra.mxu0 %v2189
    %2191 = vmatprep.subr.mxu0 0.0
    %v2192 = vand.u32 %v1481, 4294901760
    %2193 = vmatpush1.msra.mxu0 %v2192
    %2194 = vmatprep.subr.mxu0 0.0
    %v2195 = vand.u32 %v1482, 4294901760
    %2196 = vmatpush1.msra.mxu0 %v2195
    %2197 = vmatprep.subr.mxu0 0.0
    %v2198 = vand.u32 %v1483, 4294901760
    %2199 = vmatpush1.msra.mxu0 %v2198
    %2200 = vmatprep.subr.mxu0 0.0
    %v2201 = vand.u32 %v1484, 4294901760
    %2202 = vmatpush1.msra.mxu0 %v2201
    %2203 = vmatprep.subr.mxu0 0.0
    %v2204 = vand.u32 %v1485, 4294901760
    %2205 = vmatpush1.msra.mxu0 %v2204
    %2206 = vmatprep.subr.mxu0 0.0
    %2207 = vmatpush1.msra.mxu0 0.0
    %2208 = vmatprep.subr.mxu0 0.0
    %2209 = vmatpush1.msra.mxu0 0.0
    %2210 = vmatprep.subr.mxu0 0.0
    %2211 = vmatpush1.msra.mxu0 0.0
    %2212 = vmatprep.subr.mxu0 0.0
    %2213 = vmatpush1.msra.mxu0 0.0
    %2214 = vmatprep.subr.mxu0 0.0
    %2215 = vmatpush1.msra.mxu0 0.0
    %2216 = vmatprep.subr.mxu0 0.0
    %2217 = vmatpush1.msra.mxu0 0.0
    %2218 = vmatprep.subr.mxu0 0.0
    %2219 = vmatpush1.msra.mxu0 0.0
    %2220 = vmatprep.subr.mxu0 0.0
    %2221 = vmatpush1.msra.mxu0 0.0
    %2222 = vmatprep.subr.mxu0 0.0
    %2223 = vmatpush1.msra.mxu0 0.0
    %2224 = vmatprep.subr.mxu0 0.0
    %2225 = vmatpush1.msra.mxu0 0.0
    %2226 = vmatprep.subr.mxu0 0.0
    %2227 = vmatpush1.msra.mxu0 0.0
    %2228 = vmatprep.subr.mxu0 0.0
    %2229 = vmatpush1.msra.mxu0 0.0
    %2230 = vmatprep.subr.mxu0 0.0
    %2231 = vmatpush1.msra.mxu0 0.0
    %2232 = vmatprep.subr.mxu0 0.0
    %2233 = vmatpush1.msra.mxu0 0.0
    %2234 = vmatprep.subr.mxu0 0.0
    %2235 = vmatpush1.msra.mxu0 0.0
    %2236 = vmatprep.subr.mxu0 0.0
    %2237 = vmatpush1.msra.mxu0 0.0
    %2238 = vmatprep.mubr.f32.mxu0 0.0
    %v2239 = vand.u32 %v1466, 4294901760
    %2240 = vmatmul.mubr.f32.gmra.mrb[0].mxu0 %v2239
    %v2241 = vpop.f32.mrb[0].mxu0
    %v2242 = vadd.f32 %v2137, %v2241
    %v2243 = vpop.f32.mrb[0].mxu0
    %2244 = vmatprep.mubr.f32.mxu0 0.0
    %v2245 = vand.u32 %v1467, 4294901760
    %2246 = vmatmul.mubr.f32.gmra.mrb[0].mxu0 %v2245
    %v2247 = vpop.f32.mrb[0].mxu0
    %v2248 = vadd.f32 %v2143, %v2247
    %v2249 = vpop.f32.mrb[0].mxu0
    %2250 = vmatprep.mubr.f32.mxu0 0.0
    %v2251 = vand.u32 %v1468, 4294901760
    %2252 = vmatmul.mubr.f32.gmra.mrb[0].mxu0 %v2251
    %v2253 = vpop.f32.mrb[0].mxu0
    %v2254 = vadd.f32 %v2149, %v2253
    %v2255 = vpop.f32.mrb[0].mxu0
    %2256 = vmatprep.mubr.f32.mxu0 0.0
    %v2257 = vand.u32 %v1469, 4294901760
    %2258 = vmatmul.mubr.f32.gmra.mrb[0].mxu0 %v2257
    %v2259 = vpop.f32.mrb[0].mxu0
    %v2260 = vadd.f32 %v2155, %v2259
    %v2261 = vpop.f32.mrb[0].mxu0
    %2262 = vdwg.mxu0
    %2263 = vmax.xlane.f32.xlu0 %v2242
    %v2264 = vpop.xlane.xlu0 %2263
    %2265 = vmax.xlane.f32.xlu0 %v2248
    %v2266 = vpop.xlane.xlu0 %2265
    %2267 = vmax.xlane.f32.xlu0 %v2254
    %v2268 = vpop.xlane.xlu0 %2267
    %2269 = vmax.xlane.f32.xlu0 %v2260
    %v2270 = vpop.xlane.xlu0 %2269
    %v2271 = vsub.f32 %v2242, %v2264
    %v2272 = vsub.f32 %v2248, %v2266
    %v2273 = vsub.f32 %v2254, %v2268
    %v2274 = vsub.f32 %v2260, %v2270
    %v2275 = vmul.f32 %v2271, 1.442695
    %v2276 = vpow.pop %v2275
    %v2277 = vmul.f32 %v2272, 1.442695
    %v2278 = vpow.pop %v2277
    %v2279 = vmul.f32 %v2273, 1.442695
    %v2280 = vpow.pop %v2279
    %v2281 = vmul.f32 %v2274, 1.442695
    %v2282 = vpow.pop %v2281
    %2283 = vadd.xlane.f32.xlu0 %v2276
    %v2284 = vpop.xlane.xlu0 %2283
    %2285 = vadd.xlane.f32.xlu0 %v2278
    %v2286 = vpop.xlane.xlu0 %2285
    %2287 = vadd.xlane.f32.xlu0 %v2280
    %v2288 = vpop.xlane.xlu0 %2287
    %2289 = vadd.xlane.f32.xlu0 %v2282
    %v2290 = vpop.xlane.xlu0 %2289
    %v2291 = vrcp.pop %v2284
    %v2292 = vmul.f32 %v2276, %v2291
    %v2293 = vrcp.pop %v2286
    %v2294 = vmul.f32 %v2278, %v2293
    %v2295 = vrcp.pop %v2288
    %v2296 = vmul.f32 %v2280, %v2295
    %v2297 = vrcp.pop %v2290
    %v2298 = vmul.f32 %v2282, %v2297
    %2299 = vst [vmem:[#allocation7] sm:$0xff] %v2292
    %2300 = vst [vmem:[#allocation7 + $0x8] sm:$0xff] %v2294
    %2301 = vst [vmem:[#allocation7 + $0x10] sm:$0xff] %v2296
    %2302 = vst [vmem:[#allocation7 + $0x18] sm:$0xff] %v2298
    // Predicated region
    $region38: #{tpu_custom_call.1} parent=1 // pred_check
      _
    $region39: #{tpu_custom_call.1} parent=1 // pred_check_branch
      %2304 = sbr.rel (0) target = $region41
    $region40: #{tpu_custom_call.1} parent=1 // pred_region
      %s2306 = ssub.s32 512, 512
      %2307 = vsyncadd [#allocation4], %s2306
      %s2308 = sshll.u32 [#allocation7], 4
      %s2309 = int_to_ptr.vmem [resolvable:$true] %s2308
      %2314 = dma.vmem_to_hbm [thread:$0]  %s2309, 512, %s7, [#allocation4], 128, 128, 8
    $region41: #{tpu_custom_call.1} parent=1 // pred_fallthru
      _
    // Predicated region
    $region42: #{tpu_custom_call.1} parent=1 // pred_check
      _
    $region43: #{tpu_custom_call.1} parent=1 // pred_check_branch
      %2316 = sbr.rel (0) target = $region45
    $region44: #{tpu_custom_call.1} parent=1 // pred_region
      %2317 = dma.done [#allocation4], 512
    $region45: #{tpu_custom_call.1} parent=1 // pred_fallthru
      _
    %2318 = vsyncpa [#allocation3], 1
    %2319 = vsyncpa [#allocation6], 1
    %2320 = vsyncpa [#allocation4], 1

</llo_original>
